<compile_context>
chip_gen: v6e
topology: v6e:2x2x1
jax: 0.10.0
libtpu: 0.0.40
codegen_flags: <defaults>
</compile_context>

<pallas_src>
import functools

import jax
import jax.numpy as jnp
from jax.experimental import pallas as pl
from jax.experimental.pallas import tpu as pltpu


def _round_up(x, m):
    return (x + m - 1) // m * m


# ----------------------------------------------------------------------------
# TCN kernel: one grid step = (model m, batch tile bt).
# ----------------------------------------------------------------------------
def tcn_kernel(x_ref, sel_ref, *refs, K, dilations, has_downsample,
               P, T, cin0, H, TB):
    """refs = per-level (w1, b1, w2, b2[, wd, bd]) ... , out_ref, scratch_ref."""
    o_ref, xp_ref = refs[-2], refs[-1]
    wrefs = refs[:-2]
    cmax = xp_ref.shape[-1]
    bf16 = xp_ref.dtype

    # Zero the causal-padding prefix once per grid step (TB * P rows — cheap).
    if P > 0:
        xp_ref[:, :P, :] = jnp.zeros((TB, P, cmax), bf16)

    x0 = x_ref[0]                                    # (TB, T, cin0) bf16
    xp_ref[:, P:P + T, :cin0] = x0

    def conv(cin, w, b, dil):
        """Dilated causal conv = K accumulating MXU matmuls -> (TB*T, Cout) f32.

        Equivalent to Conv1d(padding=(K-1)*dil) followed by Chomp1d: the level
        input lives in xp_ref rows [P : P+T), rows [0 : P) are zeros.
        """
        acc = None
        for k in range(K):
            start = P - (K - 1 - k) * dil            # static slice start >= 0
            xs = xp_ref[:, start:start + T, :cin].reshape(TB * T, cin)
            part = jnp.dot(xs, w[k], preferred_element_type=jnp.float32)
            acc = part if acc is None else acc + part
        return acc + b                               # (TB*T, Cout) f32

    cur_f32 = None
    if not has_downsample[0]:
        cur_f32 = x0.astype(jnp.float32).reshape(TB * T, cin0)

    idx = 0
    cur_cin = cin0
    for lvl, dil in enumerate(dilations):
        w1 = wrefs[idx][0]
        b1 = wrefs[idx + 1][0]
        w2 = wrefs[idx + 2][0]
        b2 = wrefs[idx + 3][0]
        idx += 4

        # Residual path — computed BEFORE the scratch is overwritten with h.
        if has_downsample[lvl]:
            wd = wrefs[idx][0]
            bd = wrefs[idx + 1][0]
            idx += 2
            xin = xp_ref[:, P:P + T, :cur_cin].reshape(TB * T, cur_cin)
            res = jnp.dot(xin, wd, preferred_element_type=jnp.float32) + bd
        else:
            res = cur_f32                            # f32 residual

        h = jnp.maximum(conv(cur_cin, w1, b1, dil), 0.0)
        # TODO(synk): TemporalBlock Dropout treated as identity (inference).
        xp_ref[:, P:P + T, :H] = h.reshape(TB, T, H).astype(bf16)
        h2 = jnp.maximum(conv(H, w2, b2, dil), 0.0)

        out = jnp.maximum(h2 + res, 0.0)             # f32 residual add + ReLU
        cur_f32 = out
        xp_ref[:, P:P + T, :H] = out.reshape(TB, T, H).astype(bf16)
        cur_cin = H

    # Last-valid-timestep select via precomputed one-hot (zero row if len == 0).
    sel = sel_ref[0]                                 # (TB, T) f32
    act = cur_f32.reshape(TB, T, H)
    o_ref[0] = jnp.sum(act * sel[:, :, None], axis=1)


def _choose_tb(B, T, Cin, H, P, cmax, max_tb=128, budget_bytes=8 << 20):
    """Largest batch tile (multiple of 8 when tiling) whose per-step working
    set (f32 activations + bf16 scratch + double-buffered input) fits budget —
    conservative enough for v7x's 64 MiB VMEM."""
    def ws(tb):
        act = 4 * tb * T * H * 4                     # h / h2 / res / cur (f32)
        scr = tb * (P + T) * cmax * 2                # bf16 padded scratch
        xin = 2 * tb * T * max(Cin, H) * 2           # 2x-buffered bf16 input
        return act + scr + xin

    if B <= max_tb and ws(B) <= budget_bytes:
        return B                                     # single tile, no padding
    tb = max(8, min((max_tb // 8) * 8, _round_up(B, 8)))
    while tb > 8 and ws(tb) > budget_bytes:
        tb -= 8
    return tb


def run_tcn(x, sel, params, K, H, max_tb=128):
    """x: (M, B, T, Cin), sel: (M, B, T) one-hot last-step mask -> (M, B, H)."""
    M, B, T, Cin = x.shape
    levels = len(params)
    dilations = tuple(2 ** i for i in range(levels))
    has_downsample = tuple("wd" in p for p in params)
    max_pad = (K - 1) * dilations[-1]
    P = _round_up(max_pad, 8) if max_pad > 0 else 0
    cmax = max(Cin, H)

    TB = _choose_tb(B, T, Cin, H, P, cmax, max_tb=max_tb)
    n_bt = -(-B // TB)
    B_pad = n_bt * TB
    if B_pad != B:
        x = jnp.pad(x, ((0, 0), (0, B_pad - B), (0, 0), (0, 0)))
        sel = jnp.pad(sel, ((0, 0), (0, B_pad - B), (0, 0)))

    x = x.astype(jnp.bfloat16)
    sel = sel.astype(jnp.float32)

    flat = []
    for p in params:
        flat.append(p["w1"].astype(jnp.bfloat16))    # (M, K, cin, H)
        flat.append(p["b1"].astype(jnp.float32))     # (M, 1, H)
        flat.append(p["w2"].astype(jnp.bfloat16))    # (M, K, H, H)
        flat.append(p["b2"].astype(jnp.float32))
        if "wd" in p:
            flat.append(p["wd"].astype(jnp.bfloat16))   # (M, cin, H)
            flat.append(p["bd"].astype(jnp.float32))    # (M, 1, H)

    def wmap(ndim):
        return lambda m, bt: (m,) + (0,) * (ndim - 1)

    in_specs = [
        pl.BlockSpec((1, TB, T, Cin), lambda m, bt: (m, bt, 0, 0)),
        pl.BlockSpec((1, TB, T), lambda m, bt: (m, bt, 0)),
    ]
    for fp in flat:
        in_specs.append(pl.BlockSpec((1,) + fp.shape[1:], wmap(fp.ndim)))

    kernel = functools.partial(
        tcn_kernel, K=K, dilations=dilations, has_downsample=has_downsample,
        P=P, T=T, cin0=Cin, H=H, TB=TB)

    out = pl.pallas_call(
        kernel,
        grid=(M, n_bt),                              # bt innermost -> weights stay resident
        in_specs=in_specs,
        out_specs=pl.BlockSpec((1, TB, H), lambda m, bt: (m, bt, 0)),
        out_shape=jax.ShapeDtypeStruct((M, B_pad, H), jnp.float32),
        scratch_shapes=[pltpu.VMEM((TB, P + T, cmax), jnp.bfloat16)],
        compiler_params=pltpu.CompilerParams(
            dimension_semantics=("parallel", "parallel"),
            vmem_limit_bytes=32 * 1024 * 1024),
    )(x, sel, *flat)
    return out[:, :B]


# ----------------------------------------------------------------------------
# Head (plain JAX/XLA): lens/embedding-gated average pooling + 3 MLP branches.
# A separate pallas_call here costs more in launch overhead than it saves.
# ----------------------------------------------------------------------------
def head_forward(e_acc, e_mic, hp):
    def pool(e):
        # e: (5, Nb, H); row 0 = subject (always included); neighbors gated on
        # "embedding not all-zero" — exactly the reference's torch.nonzero test.
        sbj, neigh = e[0], e[1:]
        gate = jnp.any(neigh != 0.0, axis=-1, keepdims=True).astype(jnp.float32)
        total = sbj + jnp.sum(gate * neigh, axis=0)
        count = 1.0 + jnp.sum(gate, axis=0)
        return total / count

    all_out = jnp.concatenate([pool(e_acc), pool(e_mic)], axis=-1)   # (Nb, 2H)

    def branch(w, b, wo, bo):
        h = jnp.dot(all_out, w) + b
        h = jnp.where(h >= 0.0, h, 0.01 * h)         # F.leaky_relu (slope 0.01)
        # TODO(synk): drp_eff / drp_fst / drp_sts treated as identity (inference).
        return jnp.dot(h, wo) + bo

    return (branch(hp["w_eff"], hp["b_eff"], hp["wo_eff"], hp["bo_eff"]),
            branch(hp["w_fst"], hp["b_fst"], hp["wo_fst"], hp["bo_fst"]),
            branch(hp["w_sts"], hp["b_sts"], hp["wo_sts"], hp["bo_sts"]))


# ----------------------------------------------------------------------------
# Glue: batching of the 4 model streams, last-step masks, output split.
# ----------------------------------------------------------------------------
def make_sel(lens, T):
    """(M, B) int lengths -> (M, B, T) f32 one-hot of the last valid timestep
    (all-zero row when length == 0; lengths clamped to [0, T])."""
    l = jnp.clip(lens.astype(jnp.int32), 0, T)
    t = jnp.arange(T, dtype=jnp.int32)
    one = (t[None, None, :] == (l[:, :, None] - 1)) & (l[:, :, None] > 0)
    return one.astype(jnp.float32)


def forward(x_acc, x_mic, acc_lens, mic_lens,
            params_subj, params_neig, head_params, K, H, O, max_tb=128):
    N, T, _ = x_acc.shape
    Nb = N // 5

    subj_acc, subj_mic = x_acc[0::5], x_mic[0::5]
    neig_acc = jnp.concatenate([x_acc[i::5] for i in range(1, 5)], axis=0)
    neig_mic = jnp.concatenate([x_mic[i::5] for i in range(1, 5)], axis=0)

    l_subj = jnp.stack([acc_lens[0::5], mic_lens[0::5]], axis=0)          # (2, Nb)
    l_neig = jnp.stack(
        [jnp.concatenate([acc_lens[i::5] for i in range(1, 5)]),
         jnp.concatenate([mic_lens[i::5] for i in range(1, 5)])], axis=0)  # (2, 4Nb)

    x_subj = jnp.stack([subj_acc, subj_mic], axis=0)                      # (2, Nb, T, Cin)
    x_neig = jnp.stack([neig_acc, neig_mic], axis=0)                      # (2, 4Nb, T, Cin)

    emb_s = run_tcn(x_subj, make_sel(l_subj, T), params_subj, K, H, max_tb)  # (2, Nb, H)
    emb_n = run_tcn(x_neig, make_sel(l_neig, T), params_neig, K, H, max_tb)  # (2, 4Nb, H)

    e_acc = jnp.concatenate([emb_s[0][None], emb_n[0].reshape(4, Nb, H)], 0)  # (5, Nb, H)
    e_mic = jnp.concatenate([emb_s[1][None], emb_n[1].reshape(4, Nb, H)], 0)

    return head_forward(e_acc, e_mic, head_params)


# ----------------------------------------------------------------------------
# Deterministic synthetic parameters.
# ----------------------------------------------------------------------------
def init_tcn_params(key, input_dim, H, levels, K):
    params = []
    for lvl in range(levels):
        cin = input_dim if lvl == 0 else H
        key, k1, k2, k3, k4, k5 = jax.random.split(key, 6)
        p = {
            "w1": 0.05 * jax.random.normal(k1, (K, cin, H), jnp.float32),
            "b1": 0.05 * jax.random.normal(k4, (1, H), jnp.float32),
            "w2": 0.05 * jax.random.normal(k2, (K, H, H), jnp.float32),
            "b2": 0.05 * jax.random.normal(k5, (1, H), jnp.float32),
        }
        if cin != H:  # downsample 1x1 conv only when channel counts differ
            key, k6 = jax.random.split(key)
            p["wd"] = 0.05 * jax.random.normal(k3, (cin, H), jnp.float32)
            p["bd"] = 0.05 * jax.random.normal(k6, (1, H), jnp.float32)
        params.append(p)
    return key, params


def stack_tcn_params(models):
    """models: list of per-model param lists -> one list with leading model axis."""
    levels = len(models[0])
    stacked = []
    for lvl in range(levels):
        stacked.append({k: jnp.stack([m[lvl][k] for m in models], axis=0)
                        for k in models[0][lvl]})
    return stacked


def init_head_params(key, H, O):
    ks = jax.random.split(key, 12)
    return {
        "w_eff": 0.05 * jax.random.normal(ks[0], (2 * H, H), jnp.float32),
        "b_eff": 0.05 * jax.random.normal(ks[1], (1, H), jnp.float32),
        "w_fst": 0.05 * jax.random.normal(ks[2], (2 * H, H), jnp.float32),
        "b_fst": 0.05 * jax.random.normal(ks[3], (1, H), jnp.float32),
        "w_sts": 0.05 * jax.random.normal(ks[4], (2 * H, H), jnp.float32),
        "b_sts": 0.05 * jax.random.normal(ks[5], (1, H), jnp.float32),
        "wo_eff": 0.05 * jax.random.normal(ks[6], (H, O), jnp.float32),
        "bo_eff": 0.05 * jax.random.normal(ks[7], (1, O), jnp.float32),
        "wo_fst": 0.05 * jax.random.normal(ks[8], (H, O), jnp.float32),
        "bo_fst": 0.05 * jax.random.normal(ks[9], (1, O), jnp.float32),
        "wo_sts": 0.05 * jax.random.normal(ks[10], (H, O), jnp.float32),
        "bo_sts": 0.05 * jax.random.normal(ks[11], (1, O), jnp.float32),
    }


if __name__ == "__main__":
    # Small shapes consistent with the module: batch = Nb*5 sequences of length T
    # with input_dim channels; hidden_dim = 32; 2 TCN levels; kernel_size = 3.
    input_dim, H, levels, O, K, T = 6, 32, 2, 3, 3, 16
    Nb = 8
    N = Nb * 5

    key = jax.random.PRNGKey(0)
    key, kx1, kx2, kl1, kl2 = jax.random.split(key, 5)
    x_acc = jax.random.normal(kx1, (N, T, input_dim), jnp.float32)
    x_mic = jax.random.normal(kx2, (N, T, input_dim), jnp.float32)
    acc_lens = jax.random.randint(kl1, (N,), 0, T + 1).astype(jnp.int32)
    mic_lens = jax.random.randint(kl2, (N,), 0, T + 1).astype(jnp.int32)
    # ensure both "empty stream" and "full length" cases are exercised
    acc_lens = acc_lens.at[1].set(0).at[0].set(T)
    mic_lens = mic_lens.at[7].set(0).at[5].set(T)

    key, p_subj_acc = init_tcn_params(key, input_dim, H, levels, K)
    key, p_neig_acc = init_tcn_params(key, input_dim, H, levels, K)
    key, p_subj_mic = init_tcn_params(key, input_dim, H, levels, K)
    key, p_neig_mic = init_tcn_params(key, input_dim, H, levels, K)
    params_subj = stack_tcn_params([p_subj_acc, p_subj_mic])   # subject models
    params_neig = stack_tcn_params([p_neig_acc, p_neig_mic])   # neighbor models
    key, khead = jax.random.split(key)
    head_params = init_head_params(khead, H, O)

    # max_tb=16 so the neighbor call (B=32) exercises the batch-tile grid axis.
    out_eff, out_fst, out_sts = forward(
        x_acc, x_mic, acc_lens, mic_lens,
        params_subj, params_neig, head_params, K, H, O, max_tb=16)
    jax.block_until_ready((out_eff, out_fst, out_sts))
    assert out_eff.shape == (Nb, O) and out_fst.shape == (Nb, O) and out_sts.shape == (Nb, O)
    print("KERNEL_OK")
</pallas_src>

<mosaic_0001>
module attributes {stable_mosaic.version = 11 : i64} {
  func.func @tcn_kernel(%arg0: i32, %arg1: i32, %arg2: memref<1x8x16x6xbf16, #tpu.memory_space<vmem>>, %arg3: memref<1x8x16xf32, #tpu.memory_space<vmem>>, %arg4: memref<1x3x6x32xbf16, #tpu.memory_space<vmem>>, %arg5: memref<1x1x32xf32, #tpu.memory_space<vmem>>, %arg6: memref<1x3x32x32xbf16, #tpu.memory_space<vmem>>, %arg7: memref<1x1x32xf32, #tpu.memory_space<vmem>>, %arg8: memref<1x6x32xbf16, #tpu.memory_space<vmem>>, %arg9: memref<1x1x32xf32, #tpu.memory_space<vmem>>, %arg10: memref<1x3x32x32xbf16, #tpu.memory_space<vmem>>, %arg11: memref<1x1x32xf32, #tpu.memory_space<vmem>>, %arg12: memref<1x3x32x32xbf16, #tpu.memory_space<vmem>>, %arg13: memref<1x1x32xf32, #tpu.memory_space<vmem>>, %arg14: memref<1x8x32xf32, #tpu.memory_space<vmem>>, %arg15: memref<8x24x32xbf16, #tpu.memory_space<vmem>>) attributes {dimension_semantics = [#tpu.dimension_semantics<parallel>, #tpu.dimension_semantics<parallel>], iteration_bounds = array<i64: 2, 1>, scalar_prefetch = 0 : i64, scratch_operands = 1 : i64, tpu.core_type = #tpu.core_type<tc>, window_params = [{transform_indices = @transform_0, window_bounds = array<i64: 1, 8, 16, 6>}, {transform_indices = @transform_1, window_bounds = array<i64: 1, 8, 16>}, {transform_indices = @transform_2, window_bounds = array<i64: 1, 3, 6, 32>}, {transform_indices = @transform_3, window_bounds = array<i64: 1, 1, 32>}, {transform_indices = @transform_4, window_bounds = array<i64: 1, 3, 32, 32>}, {transform_indices = @transform_5, window_bounds = array<i64: 1, 1, 32>}, {transform_indices = @transform_6, window_bounds = array<i64: 1, 6, 32>}, {transform_indices = @transform_7, window_bounds = array<i64: 1, 1, 32>}, {transform_indices = @transform_8, window_bounds = array<i64: 1, 3, 32, 32>}, {transform_indices = @transform_9, window_bounds = array<i64: 1, 1, 32>}, {transform_indices = @transform_10, window_bounds = array<i64: 1, 3, 32, 32>}, {transform_indices = @transform_11, window_bounds = array<i64: 1, 1, 32>}, {transform_indices = @transform_12, window_bounds = array<i64: 1, 8, 32>}]} {
    %cst = arith.constant 0.000000e+00 : bf16
    %0 = vector.broadcast %cst : bf16 to vector<8x8x32xbf16>
    %c0 = arith.constant 0 : index
    %c0_0 = arith.constant 0 : index
    %c0_1 = arith.constant 0 : index
    %1 = vector.load %arg15[%c0, %c0_0, %c0_1] : memref<8x24x32xbf16, #tpu.memory_space<vmem>>, vector<8x8x32xbf16>
    tpu.vector_store %arg15[%c0, %c0_0, %c0_1], %0 {strides = array<i32>} : memref<8x24x32xbf16, #tpu.memory_space<vmem>>, vector<8x8x32xbf16>,
    %c0_2 = arith.constant 0 : index
    %c0_3 = arith.constant 0 : index
    %c0_4 = arith.constant 0 : index
    %c0_5 = arith.constant 0 : index
    %2 = vector.load %arg2[%c0_2, %c0_3, %c0_4, %c0_5] : memref<1x8x16x6xbf16, #tpu.memory_space<vmem>>, vector<1x8x16x6xbf16>
    %3 = vector.shape_cast %2 : vector<1x8x16x6xbf16> to vector<8x16x6xbf16>
    %c0_6 = arith.constant 0 : index
    %c8 = arith.constant 8 : index
    %c0_7 = arith.constant 0 : index
    %4 = vector.load %arg15[%c0_6, %c8, %c0_7] : memref<8x24x32xbf16, #tpu.memory_space<vmem>>, vector<8x16x6xbf16>
    tpu.vector_store %arg15[%c0_6, %c8, %c0_7], %3 {strides = array<i32>} : memref<8x24x32xbf16, #tpu.memory_space<vmem>>, vector<8x16x6xbf16>,
    %c0_8 = arith.constant 0 : index
    %c0_9 = arith.constant 0 : index
    %c0_10 = arith.constant 0 : index
    %c0_11 = arith.constant 0 : index
    %5 = vector.load %arg4[%c0_8, %c0_9, %c0_10, %c0_11] : memref<1x3x6x32xbf16, #tpu.memory_space<vmem>>, vector<1x3x6x32xbf16>
    %6 = vector.shape_cast %5 : vector<1x3x6x32xbf16> to vector<3x6x32xbf16>
    %c0_12 = arith.constant 0 : index
    %c0_13 = arith.constant 0 : index
    %c0_14 = arith.constant 0 : index
    %7 = vector.load %arg5[%c0_12, %c0_13, %c0_14] : memref<1x1x32xf32, #tpu.memory_space<vmem>>, vector<1x1x32xf32>
    %8 = vector.shape_cast %7 : vector<1x1x32xf32> to vector<1x32xf32>
    %c0_15 = arith.constant 0 : index
    %c0_16 = arith.constant 0 : index
    %c0_17 = arith.constant 0 : index
    %c0_18 = arith.constant 0 : index
    %9 = vector.load %arg6[%c0_15, %c0_16, %c0_17, %c0_18] : memref<1x3x32x32xbf16, #tpu.memory_space<vmem>>, vector<1x3x32x32xbf16>
    %10 = vector.shape_cast %9 : vector<1x3x32x32xbf16> to vector<3x32x32xbf16>
    %c0_19 = arith.constant 0 : index
    %c0_20 = arith.constant 0 : index
    %c0_21 = arith.constant 0 : index
    %11 = vector.load %arg7[%c0_19, %c0_20, %c0_21] : memref<1x1x32xf32, #tpu.memory_space<vmem>>, vector<1x1x32xf32>
    %12 = vector.shape_cast %11 : vector<1x1x32xf32> to vector<1x32xf32>
    %c0_22 = arith.constant 0 : index
    %c0_23 = arith.constant 0 : index
    %c0_24 = arith.constant 0 : index
    %13 = vector.load %arg8[%c0_22, %c0_23, %c0_24] : memref<1x6x32xbf16, #tpu.memory_space<vmem>>, vector<1x6x32xbf16>
    %14 = vector.shape_cast %13 : vector<1x6x32xbf16> to vector<6x32xbf16>
    %c0_25 = arith.constant 0 : index
    %c0_26 = arith.constant 0 : index
    %c0_27 = arith.constant 0 : index
    %15 = vector.load %arg9[%c0_25, %c0_26, %c0_27] : memref<1x1x32xf32, #tpu.memory_space<vmem>>, vector<1x1x32xf32>
    %16 = vector.shape_cast %15 : vector<1x1x32xf32> to vector<1x32xf32>
    %c0_28 = arith.constant 0 : index
    %c8_29 = arith.constant 8 : index
    %c0_30 = arith.constant 0 : index
    %17 = vector.load %arg15[%c0_28, %c8_29, %c0_30] : memref<8x24x32xbf16, #tpu.memory_space<vmem>>, vector<8x16x6xbf16>
    %18 = vector.shape_cast %17 : vector<8x16x6xbf16> to vector<128x6xbf16>
    %cst_31 = arith.constant dense<0.000000e+00> : vector<128x32xf32>
    %19 = tpu.matmul %18, %14, %cst_31 {dimension_numbers = #tpu.dot_dimension_numbers<[1], [0], [0], [1], [0, 0, 1, 1], [], []>} : vector<128x6xbf16>, vector<6x32xbf16>, vector<128x32xf32> -> vector<128x32xf32>
    %20 = vector.broadcast %16 : vector<1x32xf32> to vector<128x32xf32>
    %21 = arith.addf %19, %20 : vector<128x32xf32>
    %c0_32 = arith.constant 0 : index
    %c6 = arith.constant 6 : index
    %c0_33 = arith.constant 0 : index
    %22 = vector.load %arg15[%c0_32, %c6, %c0_33] : memref<8x24x32xbf16, #tpu.memory_space<vmem>>, vector<8x16x6xbf16>
    %23 = vector.shape_cast %22 : vector<8x16x6xbf16> to vector<128x6xbf16>
    %24 = vector.extract_strided_slice %6 {offsets = [0, 0, 0], sizes = [1, 6, 32], strides = [1, 1, 1]} : vector<3x6x32xbf16> to vector<1x6x32xbf16>
    %25 = vector.shape_cast %24 : vector<1x6x32xbf16> to vector<6x32xbf16>
    %cst_34 = arith.constant dense<0.000000e+00> : vector<128x32xf32>
    %26 = tpu.matmul %23, %25, %cst_34 {dimension_numbers = #tpu.dot_dimension_numbers<[1], [0], [0], [1], [0, 0, 1, 1], [], []>} : vector<128x6xbf16>, vector<6x32xbf16>, vector<128x32xf32> -> vector<128x32xf32>
    %c0_35 = arith.constant 0 : index
    %c7 = arith.constant 7 : index
    %c0_36 = arith.constant 0 : index
    %27 = vector.load %arg15[%c0_35, %c7, %c0_36] : memref<8x24x32xbf16, #tpu.memory_space<vmem>>, vector<8x16x6xbf16>
    %28 = vector.shape_cast %27 : vector<8x16x6xbf16> to vector<128x6xbf16>
    %29 = vector.extract_strided_slice %6 {offsets = [1, 0, 0], sizes = [1, 6, 32], strides = [1, 1, 1]} : vector<3x6x32xbf16> to vector<1x6x32xbf16>
    %30 = vector.shape_cast %29 : vector<1x6x32xbf16> to vector<6x32xbf16>
    %cst_37 = arith.constant dense<0.000000e+00> : vector<128x32xf32>
    %31 = tpu.matmul %28, %30, %cst_37 {dimension_numbers = #tpu.dot_dimension_numbers<[1], [0], [0], [1], [0, 0, 1, 1], [], []>} : vector<128x6xbf16>, vector<6x32xbf16>, vector<128x32xf32> -> vector<128x32xf32>
    %32 = arith.addf %26, %31 : vector<128x32xf32>
    %c0_38 = arith.constant 0 : index
    %c8_39 = arith.constant 8 : index
    %c0_40 = arith.constant 0 : index
    %33 = vector.load %arg15[%c0_38, %c8_39, %c0_40] : memref<8x24x32xbf16, #tpu.memory_space<vmem>>, vector<8x16x6xbf16>
    %34 = vector.shape_cast %33 : vector<8x16x6xbf16> to vector<128x6xbf16>
    %35 = vector.extract_strided_slice %6 {offsets = [2, 0, 0], sizes = [1, 6, 32], strides = [1, 1, 1]} : vector<3x6x32xbf16> to vector<1x6x32xbf16>
    %36 = vector.shape_cast %35 : vector<1x6x32xbf16> to vector<6x32xbf16>
    %cst_41 = arith.constant dense<0.000000e+00> : vector<128x32xf32>
    %37 = tpu.matmul %34, %36, %cst_41 {dimension_numbers = #tpu.dot_dimension_numbers<[1], [0], [0], [1], [0, 0, 1, 1], [], []>} : vector<128x6xbf16>, vector<6x32xbf16>, vector<128x32xf32> -> vector<128x32xf32>
    %38 = arith.addf %32, %37 : vector<128x32xf32>
    %39 = vector.broadcast %8 : vector<1x32xf32> to vector<128x32xf32>
    %40 = arith.addf %38, %39 : vector<128x32xf32>
    %cst_42 = arith.constant 0.000000e+00 : f32
    %41 = vector.broadcast %cst_42 : f32 to vector<128x32xf32>
    %42 = arith.maximumf %40, %41 : vector<128x32xf32>
    %43 = vector.shape_cast %42 : vector<128x32xf32> to vector<8x16x32xf32>
    %44 = arith.truncf %43 : vector<8x16x32xf32> to vector<8x16x32xbf16>
    %c0_43 = arith.constant 0 : index
    %c8_44 = arith.constant 8 : index
    %c0_45 = arith.constant 0 : index
    %45 = vector.load %arg15[%c0_43, %c8_44, %c0_45] : memref<8x24x32xbf16, #tpu.memory_space<vmem>>, vector<8x16x32xbf16>
    tpu.vector_store %arg15[%c0_43, %c8_44, %c0_45], %44 {strides = array<i32>} : memref<8x24x32xbf16, #tpu.memory_space<vmem>>, vector<8x16x32xbf16>,
    %c0_46 = arith.constant 0 : index
    %c6_47 = arith.constant 6 : index
    %c0_48 = arith.constant 0 : index
    %46 = vector.load %arg15[%c0_46, %c6_47, %c0_48] : memref<8x24x32xbf16, #tpu.memory_space<vmem>>, vector<8x16x32xbf16>
    %47 = vector.shape_cast %46 : vector<8x16x32xbf16> to vector<128x32xbf16>
    %48 = vector.extract_strided_slice %10 {offsets = [0, 0, 0], sizes = [1, 32, 32], strides = [1, 1, 1]} : vector<3x32x32xbf16> to vector<1x32x32xbf16>
    %49 = vector.shape_cast %48 : vector<1x32x32xbf16> to vector<32x32xbf16>
    %cst_49 = arith.constant dense<0.000000e+00> : vector<128x32xf32>
    %50 = tpu.matmul %47, %49, %cst_49 {dimension_numbers = #tpu.dot_dimension_numbers<[1], [0], [0], [1], [0, 0, 1, 1], [], []>} : vector<128x32xbf16>, vector<32x32xbf16>, vector<128x32xf32> -> vector<128x32xf32>
    %c0_50 = arith.constant 0 : index
    %c7_51 = arith.constant 7 : index
    %c0_52 = arith.constant 0 : index
    %51 = vector.load %arg15[%c0_50, %c7_51, %c0_52] : memref<8x24x32xbf16, #tpu.memory_space<vmem>>, vector<8x16x32xbf16>
    %52 = vector.shape_cast %51 : vector<8x16x32xbf16> to vector<128x32xbf16>
    %53 = vector.extract_strided_slice %10 {offsets = [1, 0, 0], sizes = [1, 32, 32], strides = [1, 1, 1]} : vector<3x32x32xbf16> to vector<1x32x32xbf16>
    %54 = vector.shape_cast %53 : vector<1x32x32xbf16> to vector<32x32xbf16>
    %cst_53 = arith.constant dense<0.000000e+00> : vector<128x32xf32>
    %55 = tpu.matmul %52, %54, %cst_53 {dimension_numbers = #tpu.dot_dimension_numbers<[1], [0], [0], [1], [0, 0, 1, 1], [], []>} : vector<128x32xbf16>, vector<32x32xbf16>, vector<128x32xf32> -> vector<128x32xf32>
    %56 = arith.addf %50, %55 : vector<128x32xf32>
    %c0_54 = arith.constant 0 : index
    %c8_55 = arith.constant 8 : index
    %c0_56 = arith.constant 0 : index
    %57 = vector.load %arg15[%c0_54, %c8_55, %c0_56] : memref<8x24x32xbf16, #tpu.memory_space<vmem>>, vector<8x16x32xbf16>
    %58 = vector.shape_cast %57 : vector<8x16x32xbf16> to vector<128x32xbf16>
    %59 = vector.extract_strided_slice %10 {offsets = [2, 0, 0], sizes = [1, 32, 32], strides = [1, 1, 1]} : vector<3x32x32xbf16> to vector<1x32x32xbf16>
    %60 = vector.shape_cast %59 : vector<1x32x32xbf16> to vector<32x32xbf16>
    %cst_57 = arith.constant dense<0.000000e+00> : vector<128x32xf32>
    %61 = tpu.matmul %58, %60, %cst_57 {dimension_numbers = #tpu.dot_dimension_numbers<[1], [0], [0], [1], [0, 0, 1, 1], [], []>} : vector<128x32xbf16>, vector<32x32xbf16>, vector<128x32xf32> -> vector<128x32xf32>
    %62 = arith.addf %56, %61 : vector<128x32xf32>
    %63 = vector.broadcast %12 : vector<1x32xf32> to vector<128x32xf32>
    %64 = arith.addf %62, %63 : vector<128x32xf32>
    %cst_58 = arith.constant 0.000000e+00 : f32
    %65 = vector.broadcast %cst_58 : f32 to vector<128x32xf32>
    %66 = arith.maximumf %64, %65 : vector<128x32xf32>
    %67 = arith.addf %66, %21 : vector<128x32xf32>
    %cst_59 = arith.constant 0.000000e+00 : f32
    %68 = vector.broadcast %cst_59 : f32 to vector<128x32xf32>
    %69 = arith.maximumf %67, %68 : vector<128x32xf32>
    %70 = vector.shape_cast %69 : vector<128x32xf32> to vector<8x16x32xf32>
    %71 = arith.truncf %70 : vector<8x16x32xf32> to vector<8x16x32xbf16>
    %c0_60 = arith.constant 0 : index
    %c8_61 = arith.constant 8 : index
    %c0_62 = arith.constant 0 : index
    %72 = vector.load %arg15[%c0_60, %c8_61, %c0_62] : memref<8x24x32xbf16, #tpu.memory_space<vmem>>, vector<8x16x32xbf16>
    tpu.vector_store %arg15[%c0_60, %c8_61, %c0_62], %71 {strides = array<i32>} : memref<8x24x32xbf16, #tpu.memory_space<vmem>>, vector<8x16x32xbf16>,
    %c0_63 = arith.constant 0 : index
    %c0_64 = arith.constant 0 : index
    %c0_65 = arith.constant 0 : index
    %c0_66 = arith.constant 0 : index
    %73 = vector.load %arg10[%c0_63, %c0_64, %c0_65, %c0_66] : memref<1x3x32x32xbf16, #tpu.memory_space<vmem>>, vector<1x3x32x32xbf16>
    %74 = vector.shape_cast %73 : vector<1x3x32x32xbf16> to vector<3x32x32xbf16>
    %c0_67 = arith.constant 0 : index
    %c0_68 = arith.constant 0 : index
    %c0_69 = arith.constant 0 : index
    %75 = vector.load %arg11[%c0_67, %c0_68, %c0_69] : memref<1x1x32xf32, #tpu.memory_space<vmem>>, vector<1x1x32xf32>
    %76 = vector.shape_cast %75 : vector<1x1x32xf32> to vector<1x32xf32>
    %c0_70 = arith.constant 0 : index
    %c0_71 = arith.constant 0 : index
    %c0_72 = arith.constant 0 : index
    %c0_73 = arith.constant 0 : index
    %77 = vector.load %arg12[%c0_70, %c0_71, %c0_72, %c0_73] : memref<1x3x32x32xbf16, #tpu.memory_space<vmem>>, vector<1x3x32x32xbf16>
    %78 = vector.shape_cast %77 : vector<1x3x32x32xbf16> to vector<3x32x32xbf16>
    %c0_74 = arith.constant 0 : index
    %c0_75 = arith.constant 0 : index
    %c0_76 = arith.constant 0 : index
    %79 = vector.load %arg13[%c0_74, %c0_75, %c0_76] : memref<1x1x32xf32, #tpu.memory_space<vmem>>, vector<1x1x32xf32>
    %80 = vector.shape_cast %79 : vector<1x1x32xf32> to vector<1x32xf32>
    %c0_77 = arith.constant 0 : index
    %c4 = arith.constant 4 : index
    %c0_78 = arith.constant 0 : index
    %81 = vector.load %arg15[%c0_77, %c4, %c0_78] : memref<8x24x32xbf16, #tpu.memory_space<vmem>>, vector<8x16x32xbf16>
    %82 = vector.shape_cast %81 : vector<8x16x32xbf16> to vector<128x32xbf16>
    %83 = vector.extract_strided_slice %74 {offsets = [0, 0, 0], sizes = [1, 32, 32], strides = [1, 1, 1]} : vector<3x32x32xbf16> to vector<1x32x32xbf16>
    %84 = vector.shape_cast %83 : vector<1x32x32xbf16> to vector<32x32xbf16>
    %cst_79 = arith.constant dense<0.000000e+00> : vector<128x32xf32>
    %85 = tpu.matmul %82, %84, %cst_79 {dimension_numbers = #tpu.dot_dimension_numbers<[1], [0], [0], [1], [0, 0, 1, 1], [], []>} : vector<128x32xbf16>, vector<32x32xbf16>, vector<128x32xf32> -> vector<128x32xf32>
    %c0_80 = arith.constant 0 : index
    %c6_81 = arith.constant 6 : index
    %c0_82 = arith.constant 0 : index
    %86 = vector.load %arg15[%c0_80, %c6_81, %c0_82] : memref<8x24x32xbf16, #tpu.memory_space<vmem>>, vector<8x16x32xbf16>
    %87 = vector.shape_cast %86 : vector<8x16x32xbf16> to vector<128x32xbf16>
    %88 = vector.extract_strided_slice %74 {offsets = [1, 0, 0], sizes = [1, 32, 32], strides = [1, 1, 1]} : vector<3x32x32xbf16> to vector<1x32x32xbf16>
    %89 = vector.shape_cast %88 : vector<1x32x32xbf16> to vector<32x32xbf16>
    %cst_83 = arith.constant dense<0.000000e+00> : vector<128x32xf32>
    %90 = tpu.matmul %87, %89, %cst_83 {dimension_numbers = #tpu.dot_dimension_numbers<[1], [0], [0], [1], [0, 0, 1, 1], [], []>} : vector<128x32xbf16>, vector<32x32xbf16>, vector<128x32xf32> -> vector<128x32xf32>
    %91 = arith.addf %85, %90 : vector<128x32xf32>
    %c0_84 = arith.constant 0 : index
    %c8_85 = arith.constant 8 : index
    %c0_86 = arith.constant 0 : index
    %92 = vector.load %arg15[%c0_84, %c8_85, %c0_86] : memref<8x24x32xbf16, #tpu.memory_space<vmem>>, vector<8x16x32xbf16>
    %93 = vector.shape_cast %92 : vector<8x16x32xbf16> to vector<128x32xbf16>
    %94 = vector.extract_strided_slice %74 {offsets = [2, 0, 0], sizes = [1, 32, 32], strides = [1, 1, 1]} : vector<3x32x32xbf16> to vector<1x32x32xbf16>
    %95 = vector.shape_cast %94 : vector<1x32x32xbf16> to vector<32x32xbf16>
    %cst_87 = arith.constant dense<0.000000e+00> : vector<128x32xf32>
    %96 = tpu.matmul %93, %95, %cst_87 {dimension_numbers = #tpu.dot_dimension_numbers<[1], [0], [0], [1], [0, 0, 1, 1], [], []>} : vector<128x32xbf16>, vector<32x32xbf16>, vector<128x32xf32> -> vector<128x32xf32>
    %97 = arith.addf %91, %96 : vector<128x32xf32>
    %98 = vector.broadcast %76 : vector<1x32xf32> to vector<128x32xf32>
    %99 = arith.addf %97, %98 : vector<128x32xf32>
    %cst_88 = arith.constant 0.000000e+00 : f32
    %100 = vector.broadcast %cst_88 : f32 to vector<128x32xf32>
    %101 = arith.maximumf %99, %100 : vector<128x32xf32>
    %102 = vector.shape_cast %101 : vector<128x32xf32> to vector<8x16x32xf32>
    %103 = arith.truncf %102 : vector<8x16x32xf32> to vector<8x16x32xbf16>
    %c0_89 = arith.constant 0 : index
    %c8_90 = arith.constant 8 : index
    %c0_91 = arith.constant 0 : index
    %104 = vector.load %arg15[%c0_89, %c8_90, %c0_91] : memref<8x24x32xbf16, #tpu.memory_space<vmem>>, vector<8x16x32xbf16>
    tpu.vector_store %arg15[%c0_89, %c8_90, %c0_91], %103 {strides = array<i32>} : memref<8x24x32xbf16, #tpu.memory_space<vmem>>, vector<8x16x32xbf16>,
    %c0_92 = arith.constant 0 : index
    %c4_93 = arith.constant 4 : index
    %c0_94 = arith.constant 0 : index
    %105 = vector.load %arg15[%c0_92, %c4_93, %c0_94] : memref<8x24x32xbf16, #tpu.memory_space<vmem>>, vector<8x16x32xbf16>
    %106 = vector.shape_cast %105 : vector<8x16x32xbf16> to vector<128x32xbf16>
    %107 = vector.extract_strided_slice %78 {offsets = [0, 0, 0], sizes = [1, 32, 32], strides = [1, 1, 1]} : vector<3x32x32xbf16> to vector<1x32x32xbf16>
    %108 = vector.shape_cast %107 : vector<1x32x32xbf16> to vector<32x32xbf16>
    %cst_95 = arith.constant dense<0.000000e+00> : vector<128x32xf32>
    %109 = tpu.matmul %106, %108, %cst_95 {dimension_numbers = #tpu.dot_dimension_numbers<[1], [0], [0], [1], [0, 0, 1, 1], [], []>} : vector<128x32xbf16>, vector<32x32xbf16>, vector<128x32xf32> -> vector<128x32xf32>
    %c0_96 = arith.constant 0 : index
    %c6_97 = arith.constant 6 : index
    %c0_98 = arith.constant 0 : index
    %110 = vector.load %arg15[%c0_96, %c6_97, %c0_98] : memref<8x24x32xbf16, #tpu.memory_space<vmem>>, vector<8x16x32xbf16>
    %111 = vector.shape_cast %110 : vector<8x16x32xbf16> to vector<128x32xbf16>
    %112 = vector.extract_strided_slice %78 {offsets = [1, 0, 0], sizes = [1, 32, 32], strides = [1, 1, 1]} : vector<3x32x32xbf16> to vector<1x32x32xbf16>
    %113 = vector.shape_cast %112 : vector<1x32x32xbf16> to vector<32x32xbf16>
    %cst_99 = arith.constant dense<0.000000e+00> : vector<128x32xf32>
    %114 = tpu.matmul %111, %113, %cst_99 {dimension_numbers = #tpu.dot_dimension_numbers<[1], [0], [0], [1], [0, 0, 1, 1], [], []>} : vector<128x32xbf16>, vector<32x32xbf16>, vector<128x32xf32> -> vector<128x32xf32>
    %115 = arith.addf %109, %114 : vector<128x32xf32>
    %c0_100 = arith.constant 0 : index
    %c8_101 = arith.constant 8 : index
    %c0_102 = arith.constant 0 : index
    %116 = vector.load %arg15[%c0_100, %c8_101, %c0_102] : memref<8x24x32xbf16, #tpu.memory_space<vmem>>, vector<8x16x32xbf16>
    %117 = vector.shape_cast %116 : vector<8x16x32xbf16> to vector<128x32xbf16>
    %118 = vector.extract_strided_slice %78 {offsets = [2, 0, 0], sizes = [1, 32, 32], strides = [1, 1, 1]} : vector<3x32x32xbf16> to vector<1x32x32xbf16>
    %119 = vector.shape_cast %118 : vector<1x32x32xbf16> to vector<32x32xbf16>
    %cst_103 = arith.constant dense<0.000000e+00> : vector<128x32xf32>
    %120 = tpu.matmul %117, %119, %cst_103 {dimension_numbers = #tpu.dot_dimension_numbers<[1], [0], [0], [1], [0, 0, 1, 1], [], []>} : vector<128x32xbf16>, vector<32x32xbf16>, vector<128x32xf32> -> vector<128x32xf32>
    %121 = arith.addf %115, %120 : vector<128x32xf32>
    %122 = vector.broadcast %80 : vector<1x32xf32> to vector<128x32xf32>
    %123 = arith.addf %121, %122 : vector<128x32xf32>
    %cst_104 = arith.constant 0.000000e+00 : f32
    %124 = vector.broadcast %cst_104 : f32 to vector<128x32xf32>
    %125 = arith.maximumf %123, %124 : vector<128x32xf32>
    %126 = arith.addf %125, %69 : vector<128x32xf32>
    %cst_105 = arith.constant 0.000000e+00 : f32
    %127 = vector.broadcast %cst_105 : f32 to vector<128x32xf32>
    %128 = arith.maximumf %126, %127 : vector<128x32xf32>
    %129 = vector.shape_cast %128 : vector<128x32xf32> to vector<8x16x32xf32>
    %130 = arith.truncf %129 : vector<8x16x32xf32> to vector<8x16x32xbf16>
    %c0_106 = arith.constant 0 : index
    %c8_107 = arith.constant 8 : index
    %c0_108 = arith.constant 0 : index
    %131 = vector.load %arg15[%c0_106, %c8_107, %c0_108] : memref<8x24x32xbf16, #tpu.memory_space<vmem>>, vector<8x16x32xbf16>
    tpu.vector_store %arg15[%c0_106, %c8_107, %c0_108], %130 {strides = array<i32>} : memref<8x24x32xbf16, #tpu.memory_space<vmem>>, vector<8x16x32xbf16>,
    %c0_109 = arith.constant 0 : index
    %c0_110 = arith.constant 0 : index
    %c0_111 = arith.constant 0 : index
    %132 = vector.load %arg3[%c0_109, %c0_110, %c0_111] : memref<1x8x16xf32, #tpu.memory_space<vmem>>, vector<1x8x16xf32>
    %133 = vector.shape_cast %132 : vector<1x8x16xf32> to vector<8x16xf32>
    %134 = vector.shape_cast %128 : vector<128x32xf32> to vector<8x16x32xf32>
    %135 = vector.shape_cast %133 : vector<8x16xf32> to vector<8x16x1xf32>
    %136 = vector.broadcast %135 : vector<8x16x1xf32> to vector<8x16x32xf32>
    %137 = arith.mulf %134, %136 : vector<8x16x32xf32>
    %cst_112 = arith.constant dense<0.000000e+00> : vector<8x32xf32>
    %138 = vector.multi_reduction <add>, %137, %cst_112 [1] : vector<8x16x32xf32> to vector<8x32xf32>
    %c0_113 = arith.constant 0 : index
    %c0_114 = arith.constant 0 : index
    %c0_115 = arith.constant 0 : index
    %139 = vector.load %arg14[%c0_113, %c0_114, %c0_115] : memref<1x8x32xf32, #tpu.memory_space<vmem>>, vector<1x8x32xf32>
    %140 = vector.shape_cast %139 : vector<1x8x32xf32> to vector<8x32xf32>
    %141 = vector.shape_cast %138 : vector<8x32xf32> to vector<1x8x32xf32>
    tpu.vector_store %arg14[%c0_113, %c0_114, %c0_115], %141 {strides = array<i32>} : memref<1x8x32xf32, #tpu.memory_space<vmem>>, vector<1x8x32xf32>,
    return
  }
  func.func @transform_0(%arg0: i32, %arg1: i32) -> (i32, i32, i32, i32) {
    %c0_i32 = arith.constant 0 : i32
    %c0_i32_0 = arith.constant 0 : i32
    %c0_i32_1 = arith.constant 0 : i32
    return %arg0, %arg1, %c0_i32, %c0_i32_0 : i32, i32, i32, i32
  }
  func.func @transform_1(%arg0: i32, %arg1: i32) -> (i32, i32, i32) {
    %c0_i32 = arith.constant 0 : i32
    %c0_i32_0 = arith.constant 0 : i32
    return %arg0, %arg1, %c0_i32 : i32, i32, i32
  }
  func.func @transform_2(%arg0: i32, %arg1: i32) -> (i32, i32, i32, i32) {
    %c0_i32 = arith.constant 0 : i32
    %c0_i32_0 = arith.constant 0 : i32
    %c0_i32_1 = arith.constant 0 : i32
    %c0_i32_2 = arith.constant 0 : i32
    return %arg0, %c0_i32, %c0_i32_0, %c0_i32_1 : i32, i32, i32, i32
  }
  func.func @transform_3(%arg0: i32, %arg1: i32) -> (i32, i32, i32) {
    %c0_i32 = arith.constant 0 : i32
    %c0_i32_0 = arith.constant 0 : i32
    %c0_i32_1 = arith.constant 0 : i32
    return %arg0, %c0_i32, %c0_i32_0 : i32, i32, i32
  }
  func.func @transform_4(%arg0: i32, %arg1: i32) -> (i32, i32, i32, i32) {
    %c0_i32 = arith.constant 0 : i32
    %c0_i32_0 = arith.constant 0 : i32
    %c0_i32_1 = arith.constant 0 : i32
    %c0_i32_2 = arith.constant 0 : i32
    return %arg0, %c0_i32, %c0_i32_0, %c0_i32_1 : i32, i32, i32, i32
  }
  func.func @transform_5(%arg0: i32, %arg1: i32) -> (i32, i32, i32) {
    %c0_i32 = arith.constant 0 : i32
    %c0_i32_0 = arith.constant 0 : i32
    %c0_i32_1 = arith.constant 0 : i32
    return %arg0, %c0_i32, %c0_i32_0 : i32, i32, i32
  }
  func.func @transform_6(%arg0: i32, %arg1: i32) -> (i32, i32, i32) {
    %c0_i32 = arith.constant 0 : i32
    %c0_i32_0 = arith.constant 0 : i32
    %c0_i32_1 = arith.constant 0 : i32
    return %arg0, %c0_i32, %c0_i32_0 : i32, i32, i32
  }
  func.func @transform_7(%arg0: i32, %arg1: i32) -> (i32, i32, i32) {
    %c0_i32 = arith.constant 0 : i32
    %c0_i32_0 = arith.constant 0 : i32
    %c0_i32_1 = arith.constant 0 : i32
    return %arg0, %c0_i32, %c0_i32_0 : i32, i32, i32
  }
  func.func @transform_8(%arg0: i32, %arg1: i32) -> (i32, i32, i32, i32) {
    %c0_i32 = arith.constant 0 : i32
    %c0_i32_0 = arith.constant 0 : i32
    %c0_i32_1 = arith.constant 0 : i32
    %c0_i32_2 = arith.constant 0 : i32
    return %arg0, %c0_i32, %c0_i32_0, %c0_i32_1 : i32, i32, i32, i32
  }
  func.func @transform_9(%arg0: i32, %arg1: i32) -> (i32, i32, i32) {
    %c0_i32 = arith.constant 0 : i32
    %c0_i32_0 = arith.constant 0 : i32
    %c0_i32_1 = arith.constant 0 : i32
    return %arg0, %c0_i32, %c0_i32_0 : i32, i32, i32
  }
  func.func @transform_10(%arg0: i32, %arg1: i32) -> (i32, i32, i32, i32) {
    %c0_i32 = arith.constant 0 : i32
    %c0_i32_0 = arith.constant 0 : i32
    %c0_i32_1 = arith.constant 0 : i32
    %c0_i32_2 = arith.constant 0 : i32
    return %arg0, %c0_i32, %c0_i32_0, %c0_i32_1 : i32, i32, i32, i32
  }
  func.func @transform_11(%arg0: i32, %arg1: i32) -> (i32, i32, i32) {
    %c0_i32 = arith.constant 0 : i32
    %c0_i32_0 = arith.constant 0 : i32
    %c0_i32_1 = arith.constant 0 : i32
    return %arg0, %c0_i32, %c0_i32_0 : i32, i32, i32
  }
  func.func @transform_12(%arg0: i32, %arg1: i32) -> (i32, i32, i32) {
    %c0_i32 = arith.constant 0 : i32
    %c0_i32_0 = arith.constant 0 : i32
    return %arg0, %arg1, %c0_i32 : i32, i32, i32
  }
}

</mosaic_0001>

<llo_original>
// kernel: tpu_custom_call.1
$region0: #{tpu_custom_call.1}
  #allocation0 [shape = 'u32[]', space=smem, size = 0x4, offset = 0x4, fixed_abs, tag = 'smem constant byte address 0x4 - core index']
  #allocation1 [shape = 'u32[144,128]{1,0:T(1,128)}', space=vmem, size = 0x12000, scoped, tag = 'internal scratch']
  #allocation2 [shape = 'bf16[8,24,32]{2,1,0:T(8,128)(2,1)}', space=vmem, size = 0xc000, scoped, tag = 'scratch operand']
  %s0 = inlined_call_operand.vmem [shape: bf16[2,8,16,6], index: 0, kind: input, shape index: {}]
  %s1 = inlined_call_operand.vmem [shape: f32[2,8,16], index: 1, kind: input, shape index: {}]
  %s2 = inlined_call_operand.vmem [shape: bf16[2,3,6,32], index: 2, kind: input, shape index: {}]
  %s3 = inlined_call_operand.vmem [shape: f32[2,1,32], index: 3, kind: input, shape index: {}]
  %s4 = inlined_call_operand.vmem [shape: bf16[2,3,32,32], index: 4, kind: input, shape index: {}]
  %s5 = inlined_call_operand.vmem [shape: f32[2,1,32], index: 5, kind: input, shape index: {}]
  %s6 = inlined_call_operand.vmem [shape: bf16[2,6,32], index: 6, kind: input, shape index: {}]
  %s7 = inlined_call_operand.vmem [shape: f32[2,1,32], index: 7, kind: input, shape index: {}]
  %s8 = inlined_call_operand.vmem [shape: bf16[2,3,32,32], index: 8, kind: input, shape index: {}]
  %s9 = inlined_call_operand.vmem [shape: f32[2,1,32], index: 9, kind: input, shape index: {}]
  %s10 = inlined_call_operand.hbm [shape: bf16[2,3,32,32], index: 10, kind: input, shape index: {}]
  %s11 = inlined_call_operand.vmem [shape: f32[2,1,32], index: 11, kind: input, shape index: {}]
  %s12 = inlined_call_operand.hbm [shape: f32[2,8,32], index: 12, kind: output, shape index: {}]
  %s13 = sld [smem:[#allocation0]]
  $region85: #{tpu_custom_call.1} parent=0
    _
  %s15 = ssub.s32 1, %s13
  %s16 = scalar_select 0, %s15, %s13
  $region1: #{tpu_custom_call.1} parent=0
    #allocation3 [shape = 'u8[49152]{0}', space=vmem, size = 0xc000, scoped, tag = 'input window, operand 10']
    #allocation4 [shape = 's32[2]{0}', space=sflag, size = 0x8, scoped, tag = 'scoped memory for tpu_custom_call.1']
    #allocation5 [shape = 's32[2]{0}', space=sflag, size = 0x8, scoped, tag = 'scoped memory for tpu_custom_call.1']
    #allocation6 [shape = 'u8[8192]{0}', space=vmem, size = 0x2000, scoped, tag = 'output window, operand 0']
    %17 = vsyncpa [#allocation4], 0
    %s18 = scalar_lea.sflag [#allocation4], 1
    %19 = vsyncpa %s18, 0
    %20 = vsyncpa [#allocation5], 0
    %s21 = scalar_lea.sflag [#allocation5], 1
    %22 = vsyncpa %s21, 0
    loop: start=0, step=1, limit=4
    $region2: #{tpu_custom_call.1} parent=1 // loop_pre_header
      _
    $region3: #{tpu_custom_call.1} parent=1 // loop_header
      %s24 = sphi 0, %s28
      %p25 = scmp.ge.s32.totalorder %s24, 4
      %s31 = sphi 0, %s43
      %s32 = sphi 0, %s39
      %s33 = sphi 0, %s31
      %s34 = sphi 0, %s32
      %s35 = sphi 0, %s33
      %s36 = sphi 0, %s34
      %s48 = sphi 0, %s50
      %s51 = sphi 0, %s48
      %s52 = sphi 0, %s51
      %s68 = sphi 0, %s52
      %s76 = sphi 0, %s78
      %s79 = sphi 0, %s76
      %s80 = sphi 0, %s79
      %s96 = sphi 0, %s80
      %s102 = sphi 0, %s104
      %s105 = sphi 0, %s102
      %s106 = sphi 0, %s105
      %s122 = sphi 0, %s106
      %s128 = sphi 0, %s130
      %s131 = sphi 0, %s128
      %s132 = sphi 0, %s131
      %s148 = sphi 0, %s132
      %s154 = sphi 0, %s156
      %s157 = sphi 0, %s154
      %s158 = sphi 0, %s157
      %s174 = sphi 0, %s158
      %s180 = sphi 0, %s182
      %s183 = sphi 0, %s180
      %s184 = sphi 0, %s183
      %s200 = sphi 0, %s184
      %s206 = sphi 0, %s208
      %s209 = sphi 0, %s206
      %s210 = sphi 0, %s209
      %s226 = sphi 0, %s210
      %s232 = sphi 0, %s234
      %s235 = sphi 0, %s232
      %s236 = sphi 0, %s235
      %s252 = sphi 0, %s236
      %s258 = sphi 0, %s260
      %s261 = sphi 0, %s258
      %s262 = sphi 0, %s261
      %s278 = sphi 0, %s262
      %s284 = sphi 0, %s286
      %s287 = sphi 0, %s284
      %s288 = sphi 0, %s287
      %s304 = sphi 0, %s288
      %s310 = sphi 0, %s312
      %s313 = sphi 0, %s310
      %s314 = sphi 0, %s313
      %s330 = sphi 0, %s314
      %s336 = sphi 0, %s338
      %s339 = sphi 0, %s336
      %s340 = sphi 0, %s339
      %s356 = sphi 0, %s340
      %s364 = sphi 0, %s366
      %s367 = sphi 0, %s364
      %s368 = sphi 0, %s367
      %s384 = sphi 0, %s368
    $region4: #{tpu_custom_call.1} parent=1 // loop_header_branch
      %27 = sbr.rel (%p25) target = $region8
    $region5: #{tpu_custom_call.1} parent=1 // loop_body
      %s29 = ssub.s32 %s24, 1
      %s30 = ssub.s32 %s24, 2
      %s37 = sadd.s32 1, %s32
      %p38 = scmp.ge.s32.totalorder %s37, 1
      %s39 = scalar_select %p38, 0, %s37
      %s40 = sadd.s32 1, %s31
      %s41 = scalar_select %p38, %s40, %s31
      %p42 = scmp.ge.s32.totalorder %s41, 2
      %s43 = scalar_select %p42, 0, %s41
      %s44 = ssub.s32 %s31, %s43
      %s45 = ssub.s32 %s32, %s39
      %s46 = sor.u32 %s44, %s45
      %p47 = scmp.eq.s32.totalorder %s46, 0
      %s49 = sadd.s32 %s48, 1
      %s50 = scalar_select %p47, %s48, %s49
      %p53 = pneg %p47
      %p54 = scmp.eq.s32.totalorder %s24, 1
      %p55 = por %p53, %p54
      %p56 = scmp.ne.s32.totalorder %s48, %s51
      %p57 = scmp.eq.s32.totalorder %s24, 0
      %p58 = por %p56, %p57
      %p59 = scmp.ne.s32.totalorder %s48, %s51
      %p60 = scmp.eq.s32.totalorder %s29, 1
      %p61 = por %p59, %p60
      %p62 = scmp.ne.s32.totalorder %s51, %s52
      %p63 = scmp.eq.s32.totalorder %s29, 0
      %p64 = por %p62, %p63
      %p65 = scmp.ne.s32.totalorder %s51, %s52
      %p66 = scmp.eq.s32.totalorder %s30, 1
      %p67 = por %p65, %p66
      %p69 = scmp.ne.s32.totalorder %s52, %s68
      %p70 = scmp.eq.s32.totalorder %s30, 0
      %p71 = por %p69, %p70
      %s72 = ssub.s32 %s31, %s43
      %s73 = ssub.s32 %s32, %s39
      %s74 = sor.u32 %s72, %s73
      %p75 = scmp.eq.s32.totalorder %s74, 0
      %s77 = sadd.s32 %s76, 1
      %s78 = scalar_select %p75, %s76, %s77
      %p81 = pneg %p75
      %p82 = scmp.eq.s32.totalorder %s24, 1
      %p83 = por %p81, %p82
      %p84 = scmp.ne.s32.totalorder %s76, %s79
      %p85 = scmp.eq.s32.totalorder %s24, 0
      %p86 = por %p84, %p85
      %p87 = scmp.ne.s32.totalorder %s76, %s79
      %p88 = scmp.eq.s32.totalorder %s29, 1
      %p89 = por %p87, %p88
      %p90 = scmp.ne.s32.totalorder %s79, %s80
      %p91 = scmp.eq.s32.totalorder %s29, 0
      %p92 = por %p90, %p91
      %p93 = scmp.ne.s32.totalorder %s79, %s80
      %p94 = scmp.eq.s32.totalorder %s30, 1
      %p95 = por %p93, %p94
      %p97 = scmp.ne.s32.totalorder %s80, %s96
      %p98 = scmp.eq.s32.totalorder %s30, 0
      %p99 = por %p97, %p98
      %s100 = ssub.s32 %s31, %s43
      %p101 = scmp.eq.s32.totalorder %s100, 0
      %s103 = sadd.s32 %s102, 1
      %s104 = scalar_select %p101, %s102, %s103
      %p107 = pneg %p101
      %p108 = scmp.eq.s32.totalorder %s24, 1
      %p109 = por %p107, %p108
      %p110 = scmp.ne.s32.totalorder %s102, %s105
      %p111 = scmp.eq.s32.totalorder %s24, 0
      %p112 = por %p110, %p111
      %p113 = scmp.ne.s32.totalorder %s102, %s105
      %p114 = scmp.eq.s32.totalorder %s29, 1
      %p115 = por %p113, %p114
      %p116 = scmp.ne.s32.totalorder %s105, %s106
      %p117 = scmp.eq.s32.totalorder %s29, 0
      %p118 = por %p116, %p117
      %p119 = scmp.ne.s32.totalorder %s105, %s106
      %p120 = scmp.eq.s32.totalorder %s30, 1
      %p121 = por %p119, %p120
      %p123 = scmp.ne.s32.totalorder %s106, %s122
      %p124 = scmp.eq.s32.totalorder %s30, 0
      %p125 = por %p123, %p124
      %s126 = ssub.s32 %s31, %s43
      %p127 = scmp.eq.s32.totalorder %s126, 0
      %s129 = sadd.s32 %s128, 1
      %s130 = scalar_select %p127, %s128, %s129
      %p133 = pneg %p127
      %p134 = scmp.eq.s32.totalorder %s24, 1
      %p135 = por %p133, %p134
      %p136 = scmp.ne.s32.totalorder %s128, %s131
      %p137 = scmp.eq.s32.totalorder %s24, 0
      %p138 = por %p136, %p137
      %p139 = scmp.ne.s32.totalorder %s128, %s131
      %p140 = scmp.eq.s32.totalorder %s29, 1
      %p141 = por %p139, %p140
      %p142 = scmp.ne.s32.totalorder %s131, %s132
      %p143 = scmp.eq.s32.totalorder %s29, 0
      %p144 = por %p142, %p143
      %p145 = scmp.ne.s32.totalorder %s131, %s132
      %p146 = scmp.eq.s32.totalorder %s30, 1
      %p147 = por %p145, %p146
      %p149 = scmp.ne.s32.totalorder %s132, %s148
      %p150 = scmp.eq.s32.totalorder %s30, 0
      %p151 = por %p149, %p150
      %s152 = ssub.s32 %s31, %s43
      %p153 = scmp.eq.s32.totalorder %s152, 0
      %s155 = sadd.s32 %s154, 1
      %s156 = scalar_select %p153, %s154, %s155
      %p159 = pneg %p153
      %p160 = scmp.eq.s32.totalorder %s24, 1
      %p161 = por %p159, %p160
      %p162 = scmp.ne.s32.totalorder %s154, %s157
      %p163 = scmp.eq.s32.totalorder %s24, 0
      %p164 = por %p162, %p163
      %p165 = scmp.ne.s32.totalorder %s154, %s157
      %p166 = scmp.eq.s32.totalorder %s29, 1
      %p167 = por %p165, %p166
      %p168 = scmp.ne.s32.totalorder %s157, %s158
      %p169 = scmp.eq.s32.totalorder %s29, 0
      %p170 = por %p168, %p169
      %p171 = scmp.ne.s32.totalorder %s157, %s158
      %p172 = scmp.eq.s32.totalorder %s30, 1
      %p173 = por %p171, %p172
      %p175 = scmp.ne.s32.totalorder %s158, %s174
      %p176 = scmp.eq.s32.totalorder %s30, 0
      %p177 = por %p175, %p176
      %s178 = ssub.s32 %s31, %s43
      %p179 = scmp.eq.s32.totalorder %s178, 0
      %s181 = sadd.s32 %s180, 1
      %s182 = scalar_select %p179, %s180, %s181
      %p185 = pneg %p179
      %p186 = scmp.eq.s32.totalorder %s24, 1
      %p187 = por %p185, %p186
      %p188 = scmp.ne.s32.totalorder %s180, %s183
      %p189 = scmp.eq.s32.totalorder %s24, 0
      %p190 = por %p188, %p189
      %p191 = scmp.ne.s32.totalorder %s180, %s183
      %p192 = scmp.eq.s32.totalorder %s29, 1
      %p193 = por %p191, %p192
      %p194 = scmp.ne.s32.totalorder %s183, %s184
      %p195 = scmp.eq.s32.totalorder %s29, 0
      %p196 = por %p194, %p195
      %p197 = scmp.ne.s32.totalorder %s183, %s184
      %p198 = scmp.eq.s32.totalorder %s30, 1
      %p199 = por %p197, %p198
      %p201 = scmp.ne.s32.totalorder %s184, %s200
      %p202 = scmp.eq.s32.totalorder %s30, 0
      %p203 = por %p201, %p202
      %s204 = ssub.s32 %s31, %s43
      %p205 = scmp.eq.s32.totalorder %s204, 0
      %s207 = sadd.s32 %s206, 1
      %s208 = scalar_select %p205, %s206, %s207
      %p211 = pneg %p205
      %p212 = scmp.eq.s32.totalorder %s24, 1
      %p213 = por %p211, %p212
      %p214 = scmp.ne.s32.totalorder %s206, %s209
      %p215 = scmp.eq.s32.totalorder %s24, 0
      %p216 = por %p214, %p215
      %p217 = scmp.ne.s32.totalorder %s206, %s209
      %p218 = scmp.eq.s32.totalorder %s29, 1
      %p219 = por %p217, %p218
      %p220 = scmp.ne.s32.totalorder %s209, %s210
      %p221 = scmp.eq.s32.totalorder %s29, 0
      %p222 = por %p220, %p221
      %p223 = scmp.ne.s32.totalorder %s209, %s210
      %p224 = scmp.eq.s32.totalorder %s30, 1
      %p225 = por %p223, %p224
      %p227 = scmp.ne.s32.totalorder %s210, %s226
      %p228 = scmp.eq.s32.totalorder %s30, 0
      %p229 = por %p227, %p228
      %s230 = ssub.s32 %s31, %s43
      %p231 = scmp.eq.s32.totalorder %s230, 0
      %s233 = sadd.s32 %s232, 1
      %s234 = scalar_select %p231, %s232, %s233
      %p237 = pneg %p231
      %p238 = scmp.eq.s32.totalorder %s24, 1
      %p239 = por %p237, %p238
      %p240 = scmp.ne.s32.totalorder %s232, %s235
      %p241 = scmp.eq.s32.totalorder %s24, 0
      %p242 = por %p240, %p241
      %p243 = scmp.ne.s32.totalorder %s232, %s235
      %p244 = scmp.eq.s32.totalorder %s29, 1
      %p245 = por %p243, %p244
      %p246 = scmp.ne.s32.totalorder %s235, %s236
      %p247 = scmp.eq.s32.totalorder %s29, 0
      %p248 = por %p246, %p247
      %p249 = scmp.ne.s32.totalorder %s235, %s236
      %p250 = scmp.eq.s32.totalorder %s30, 1
      %p251 = por %p249, %p250
      %p253 = scmp.ne.s32.totalorder %s236, %s252
      %p254 = scmp.eq.s32.totalorder %s30, 0
      %p255 = por %p253, %p254
      %s256 = ssub.s32 %s31, %s43
      %p257 = scmp.eq.s32.totalorder %s256, 0
      %s259 = sadd.s32 %s258, 1
      %s260 = scalar_select %p257, %s258, %s259
      %p263 = pneg %p257
      %p264 = scmp.eq.s32.totalorder %s24, 1
      %p265 = por %p263, %p264
      %p266 = scmp.ne.s32.totalorder %s258, %s261
      %p267 = scmp.eq.s32.totalorder %s24, 0
      %p268 = por %p266, %p267
      %p269 = scmp.ne.s32.totalorder %s258, %s261
      %p270 = scmp.eq.s32.totalorder %s29, 1
      %p271 = por %p269, %p270
      %p272 = scmp.ne.s32.totalorder %s261, %s262
      %p273 = scmp.eq.s32.totalorder %s29, 0
      %p274 = por %p272, %p273
      %p275 = scmp.ne.s32.totalorder %s261, %s262
      %p276 = scmp.eq.s32.totalorder %s30, 1
      %p277 = por %p275, %p276
      %p279 = scmp.ne.s32.totalorder %s262, %s278
      %p280 = scmp.eq.s32.totalorder %s30, 0
      %p281 = por %p279, %p280
      %s282 = ssub.s32 %s31, %s43
      %p283 = scmp.eq.s32.totalorder %s282, 0
      %s285 = sadd.s32 %s284, 1
      %s286 = scalar_select %p283, %s284, %s285
      %p289 = pneg %p283
      %p290 = scmp.eq.s32.totalorder %s24, 1
      %p291 = por %p289, %p290
      %p292 = scmp.ne.s32.totalorder %s284, %s287
      %p293 = scmp.eq.s32.totalorder %s24, 0
      %p294 = por %p292, %p293
      %p295 = scmp.ne.s32.totalorder %s284, %s287
      %p296 = scmp.eq.s32.totalorder %s29, 1
      %p297 = por %p295, %p296
      %p298 = scmp.ne.s32.totalorder %s287, %s288
      %p299 = scmp.eq.s32.totalorder %s29, 0
      %p300 = por %p298, %p299
      %p301 = scmp.ne.s32.totalorder %s287, %s288
      %p302 = scmp.eq.s32.totalorder %s30, 1
      %p303 = por %p301, %p302
      %p305 = scmp.ne.s32.totalorder %s288, %s304
      %p306 = scmp.eq.s32.totalorder %s30, 0
      %p307 = por %p305, %p306
      %s308 = ssub.s32 %s31, %s43
      %p309 = scmp.eq.s32.totalorder %s308, 0
      %s311 = sadd.s32 %s310, 1
      %s312 = scalar_select %p309, %s310, %s311
      %p315 = pneg %p309
      %p316 = scmp.eq.s32.totalorder %s24, 1
      %p317 = por %p315, %p316
      %p318 = scmp.ne.s32.totalorder %s310, %s313
      %p319 = scmp.eq.s32.totalorder %s24, 0
      %p320 = por %p318, %p319
      %p321 = scmp.ne.s32.totalorder %s310, %s313
      %p322 = scmp.eq.s32.totalorder %s29, 1
      %p323 = por %p321, %p322
      %p324 = scmp.ne.s32.totalorder %s313, %s314
      %p325 = scmp.eq.s32.totalorder %s29, 0
      %p326 = por %p324, %p325
      %p327 = scmp.ne.s32.totalorder %s313, %s314
      %p328 = scmp.eq.s32.totalorder %s30, 1
      %p329 = por %p327, %p328
      %p331 = scmp.ne.s32.totalorder %s314, %s330
      %p332 = scmp.eq.s32.totalorder %s30, 0
      %p333 = por %p331, %p332
      %s334 = ssub.s32 %s31, %s43
      %p335 = scmp.eq.s32.totalorder %s334, 0
      %s337 = sadd.s32 %s336, 1
      %s338 = scalar_select %p335, %s336, %s337
      %p341 = pneg %p335
      %p342 = scmp.eq.s32.totalorder %s24, 1
      %p343 = por %p341, %p342
      %p344 = scmp.ne.s32.totalorder %s336, %s339
      %p345 = scmp.eq.s32.totalorder %s24, 0
      %p346 = por %p344, %p345
      %p347 = scmp.ne.s32.totalorder %s336, %s339
      %p348 = scmp.eq.s32.totalorder %s29, 1
      %p349 = por %p347, %p348
      %p350 = scmp.ne.s32.totalorder %s339, %s340
      %p351 = scmp.eq.s32.totalorder %s29, 0
      %p352 = por %p350, %p351
      %p353 = scmp.ne.s32.totalorder %s339, %s340
      %p354 = scmp.eq.s32.totalorder %s30, 1
      %p355 = por %p353, %p354
      %p357 = scmp.ne.s32.totalorder %s340, %s356
      %p358 = scmp.eq.s32.totalorder %s30, 0
      %p359 = por %p357, %p358
      %s360 = ssub.s32 %s31, %s43
      %s361 = ssub.s32 %s32, %s39
      %s362 = sor.u32 %s360, %s361
      %p363 = scmp.eq.s32.totalorder %s362, 0
      %s365 = sadd.s32 %s364, 1
      %s366 = scalar_select %p363, %s364, %s365
      %p369 = pneg %p363
      %p370 = scmp.eq.s32.totalorder %s24, 1
      %p371 = por %p369, %p370
      %p372 = scmp.ne.s32.totalorder %s364, %s367
      %p373 = scmp.eq.s32.totalorder %s24, 0
      %p374 = por %p372, %p373
      %p375 = scmp.ne.s32.totalorder %s364, %s367
      %p376 = scmp.eq.s32.totalorder %s29, 1
      %p377 = por %p375, %p376
      %p378 = scmp.ne.s32.totalorder %s367, %s368
      %p379 = scmp.eq.s32.totalorder %s29, 0
      %p380 = por %p378, %p379
      %p381 = scmp.ne.s32.totalorder %s367, %s368
      %p382 = scmp.eq.s32.totalorder %s30, 1
      %p383 = por %p381, %p382
      %p385 = scmp.ne.s32.totalorder %s368, %s384
      %p386 = scmp.eq.s32.totalorder %s30, 0
      %p387 = por %p385, %p386
      %p388 = scmp.le.s32.totalorder 1, %s24
      %p389 = scmp.lt.s32.totalorder %s24, 3
      %p390 = pnand %p388, %p389
      %p391 = pneg %p390
      // Predicated region
      $region9: #{tpu_custom_call.1} parent=5 // pred_check
        _
      $region10: #{tpu_custom_call.1} parent=5 // pred_check_branch
        %393 = sbr.rel (%p390) target = $region12
      $region11: #{tpu_custom_call.1} parent=5 // pred_region
        %s394 = ssub.s32 %s24, 1
      $region12: #{tpu_custom_call.1} parent=5 // pred_fallthru
        _
      %p395 = scmp.lt.s32.totalorder %s24, 2
      // Predicated region
      $region13: #{tpu_custom_call.1} parent=5 // pred_check
        %p396 = pneg %p395
      $region14: #{tpu_custom_call.1} parent=5 // pred_check_branch
        %398 = sbr.rel (%p396) target = $region16
      $region15: #{tpu_custom_call.1} parent=5 // pred_region
        // Predicated region
        $region17: #{tpu_custom_call.1} parent=15 // pred_check
          %p399 = pneg %p58
        $region18: #{tpu_custom_call.1} parent=15 // pred_check_branch
          %401 = sbr.rel (%p399) target = $region20
        $region19: #{tpu_custom_call.1} parent=15 // pred_region
          %s402 = smul.u32 8, %s32
          %p403 = scmp.lt.s32.totalorder %s31, 1
          %s404 = scalar_select %p403, %s31, 1
          %p405 = scmp.lt.s32.totalorder %s402, 7
          %s406 = scalar_select %p405, %s402, 7
          %s407 = smul.addr %s406, 2
          %s408 = smul.addr %s404, 16
          %s409 = sadd.s32 %s407, %s408
          %s410 = smul.addr %s409, 4
          %s411 = scalar_lea.vmem %s0, %s410
          %s412 = smul.u32 8, %s32
        $region20: #{tpu_custom_call.1} parent=15 // pred_fallthru
          _
        // Predicated region
        $region21: #{tpu_custom_call.1} parent=15 // pred_check
          %p413 = pneg %p86
        $region22: #{tpu_custom_call.1} parent=15 // pred_check_branch
          %415 = sbr.rel (%p413) target = $region24
        $region23: #{tpu_custom_call.1} parent=15 // pred_region
          %p416 = scmp.lt.s32.totalorder %s31, 1
          %s417 = scalar_select %p416, %s31, 1
          %p418 = scmp.lt.s32.totalorder %s32, 0
          %s419 = scalar_select %p418, %s32, 0
          %s420 = sadd.s32 %s419, %s417
          %s421 = smul.addr %s420, 8
          %s422 = scalar_lea.vmem %s1, %s421
        $region24: #{tpu_custom_call.1} parent=15 // pred_fallthru
          _
        // Predicated region
        $region25: #{tpu_custom_call.1} parent=15 // pred_check
          %p423 = pneg %p112
        $region26: #{tpu_custom_call.1} parent=15 // pred_check_branch
          %425 = sbr.rel (%p423) target = $region28
        $region27: #{tpu_custom_call.1} parent=15 // pred_region
          %p426 = scmp.lt.s32.totalorder %s31, 1
          %s427 = scalar_select %p426, %s31, 1
          %s428 = smul.addr %s427, 3
          %s429 = smul.addr %s428, 4
          %s430 = scalar_lea.vmem %s2, %s429
        $region28: #{tpu_custom_call.1} parent=15 // pred_fallthru
          _
        // Predicated region
        $region29: #{tpu_custom_call.1} parent=15 // pred_check
          %p431 = pneg %p138
        $region30: #{tpu_custom_call.1} parent=15 // pred_check_branch
          %433 = sbr.rel (%p431) target = $region32
        $region31: #{tpu_custom_call.1} parent=15 // pred_region
          %p434 = scmp.lt.s32.totalorder %s31, 1
          %s435 = scalar_select %p434, %s31, 1
          %s436 = scalar_lea.vmem %s3, %s435
        $region32: #{tpu_custom_call.1} parent=15 // pred_fallthru
          _
        // Predicated region
        $region33: #{tpu_custom_call.1} parent=15 // pred_check
          %p437 = pneg %p164
        $region34: #{tpu_custom_call.1} parent=15 // pred_check_branch
          %439 = sbr.rel (%p437) target = $region36
        $region35: #{tpu_custom_call.1} parent=15 // pred_region
          %p440 = scmp.lt.s32.totalorder %s31, 1
          %s441 = scalar_select %p440, %s31, 1
          %s442 = smul.addr %s441, 12
          %s443 = smul.addr %s442, 4
          %s444 = scalar_lea.vmem %s4, %s443
        $region36: #{tpu_custom_call.1} parent=15 // pred_fallthru
          _
        // Predicated region
        $region37: #{tpu_custom_call.1} parent=15 // pred_check
          %p445 = pneg %p190
        $region38: #{tpu_custom_call.1} parent=15 // pred_check_branch
          %447 = sbr.rel (%p445) target = $region40
        $region39: #{tpu_custom_call.1} parent=15 // pred_region
          %p448 = scmp.lt.s32.totalorder %s31, 1
          %s449 = scalar_select %p448, %s31, 1
          %s450 = scalar_lea.vmem %s5, %s449
        $region40: #{tpu_custom_call.1} parent=15 // pred_fallthru
          _
        // Predicated region
        $region41: #{tpu_custom_call.1} parent=15 // pred_check
          %p451 = pneg %p216
        $region42: #{tpu_custom_call.1} parent=15 // pred_check_branch
          %453 = sbr.rel (%p451) target = $region44
        $region43: #{tpu_custom_call.1} parent=15 // pred_region
          %p454 = scmp.lt.s32.totalorder %s31, 1
          %s455 = scalar_select %p454, %s31, 1
          %s456 = smul.addr %s455, 4
          %s457 = scalar_lea.vmem %s6, %s456
        $region44: #{tpu_custom_call.1} parent=15 // pred_fallthru
          _
        // Predicated region
        $region45: #{tpu_custom_call.1} parent=15 // pred_check
          %p458 = pneg %p242
        $region46: #{tpu_custom_call.1} parent=15 // pred_check_branch
          %460 = sbr.rel (%p458) target = $region48
        $region47: #{tpu_custom_call.1} parent=15 // pred_region
          %p461 = scmp.lt.s32.totalorder %s31, 1
          %s462 = scalar_select %p461, %s31, 1
          %s463 = scalar_lea.vmem %s7, %s462
        $region48: #{tpu_custom_call.1} parent=15 // pred_fallthru
          _
        // Predicated region
        $region49: #{tpu_custom_call.1} parent=15 // pred_check
          %p464 = pneg %p268
        $region50: #{tpu_custom_call.1} parent=15 // pred_check_branch
          %466 = sbr.rel (%p464) target = $region52
        $region51: #{tpu_custom_call.1} parent=15 // pred_region
          %p467 = scmp.lt.s32.totalorder %s31, 1
          %s468 = scalar_select %p467, %s31, 1
          %s469 = smul.addr %s468, 12
          %s470 = smul.addr %s469, 4
          %s471 = scalar_lea.vmem %s8, %s470
        $region52: #{tpu_custom_call.1} parent=15 // pred_fallthru
          _
        // Predicated region
        $region53: #{tpu_custom_call.1} parent=15 // pred_check
          %p472 = pneg %p294
        $region54: #{tpu_custom_call.1} parent=15 // pred_check_branch
          %474 = sbr.rel (%p472) target = $region56
        $region55: #{tpu_custom_call.1} parent=15 // pred_region
          %p475 = scmp.lt.s32.totalorder %s31, 1
          %s476 = scalar_select %p475, %s31, 1
          %s477 = scalar_lea.vmem %s9, %s476
        $region56: #{tpu_custom_call.1} parent=15 // pred_fallthru
          _
        // Predicated region
        $region57: #{tpu_custom_call.1} parent=15 // pred_check
          %p478 = pneg %p320
        $region58: #{tpu_custom_call.1} parent=15 // pred_check_branch
          %480 = sbr.rel (%p478) target = $region60
        $region59: #{tpu_custom_call.1} parent=15 // pred_region
          %s481 = sand.u32 %s310, 1
          %s482 = scalar_lea.sflag [#allocation4], %s481
          %s483 = sand.u32 %s310, 1
          %s484 = smul.addr %s483, 48
          %s485 = scalar_lea.vmem [#allocation3], %s484
          %s487 = ssub.s32 768, 768
          %488 = vsyncadd %s482, %s487
          %s489 = smul.addr %s31, 12
          %s490 = smul.addr %s489, 64
          %s491 = scalar_lea.hbm %s10, %s490
          %s492 = sshll.u32 %s485, 4
          %s493 = int_to_ptr.vmem [resolvable:$true] %s492
          %498 = dma.hbm_to_vmem [thread:$0]  %s491, 768, %s493, %s482, 64, 64, 4
        $region60: #{tpu_custom_call.1} parent=15 // pred_fallthru
          _
        // Predicated region
        $region61: #{tpu_custom_call.1} parent=15 // pred_check
          %p499 = pneg %p346
        $region62: #{tpu_custom_call.1} parent=15 // pred_check_branch
          %501 = sbr.rel (%p499) target = $region64
        $region63: #{tpu_custom_call.1} parent=15 // pred_region
          %p502 = scmp.lt.s32.totalorder %s31, 1
          %s503 = scalar_select %p502, %s31, 1
          %s504 = scalar_lea.vmem %s11, %s503
        $region64: #{tpu_custom_call.1} parent=15 // pred_fallthru
          _
      $region16: #{tpu_custom_call.1} parent=5 // pred_fallthru
        _
      %p505 = scmp.le.s32.totalorder 1, %s24
      %p506 = scmp.lt.s32.totalorder %s24, 3
      %p507 = pnand %p505, %p506
      %p508 = pneg %p507
      // Predicated region
      $region65: #{tpu_custom_call.1} parent=5 // pred_check
        _
      $region66: #{tpu_custom_call.1} parent=5 // pred_check_branch
        %510 = sbr.rel (%p507) target = $region68
      $region67: #{tpu_custom_call.1} parent=5 // pred_region
        %s511 = ssub.s32 %s24, 1
        %s512 = sand.u32 %s313, 1
        %s513 = scalar_lea.sflag [#allocation4], %s512
        %s514 = sand.u32 %s313, 1
        %s515 = smul.addr %s514, 48
        %s516 = scalar_lea.vmem [#allocation3], %s515
        // Predicated region
        $region69: #{tpu_custom_call.1} parent=67 // pred_check
          %p517 = pneg %p326
        $region70: #{tpu_custom_call.1} parent=67 // pred_check_branch
          %519 = sbr.rel (%p517) target = $region72
        $region71: #{tpu_custom_call.1} parent=67 // pred_region
          %520 = dma.done %s513, 768
        $region72: #{tpu_custom_call.1} parent=67 // pred_fallthru
          _
        %s521 = smul.u32 8, %s34
        %p522 = scmp.lt.s32.totalorder %s33, 1
        %s523 = scalar_select %p522, %s33, 1
        %p524 = scmp.lt.s32.totalorder %s521, 7
        %s525 = scalar_select %p524, %s521, 7
        %s526 = smul.addr %s525, 2
        %s527 = smul.addr %s523, 16
        %s528 = sadd.s32 %s526, %s527
        %s529 = smul.addr %s528, 4
        %s530 = scalar_lea.vmem %s0, %s529
        %p531 = pneg %p64
        %p532 = pneg %p61
        %p533 = scmp.lt.s32.totalorder %s33, 1
        %s534 = scalar_select %p533, %s33, 1
        %p535 = scmp.lt.s32.totalorder %s34, 0
        %s536 = scalar_select %p535, %s34, 0
        %s537 = sadd.s32 %s536, %s534
        %s538 = smul.addr %s537, 8
        %s539 = scalar_lea.vmem %s1, %s538
        %p540 = pneg %p92
        %p541 = pneg %p89
        %p542 = scmp.lt.s32.totalorder %s33, 1
        %s543 = scalar_select %p542, %s33, 1
        %s544 = smul.addr %s543, 3
        %s545 = smul.addr %s544, 4
        %s546 = scalar_lea.vmem %s2, %s545
        %p547 = pneg %p118
        %p548 = pneg %p115
        %p549 = scmp.lt.s32.totalorder %s33, 1
        %s550 = scalar_select %p549, %s33, 1
        %s551 = scalar_lea.vmem %s3, %s550
        %p552 = pneg %p144
        %p553 = pneg %p141
        %p554 = scmp.lt.s32.totalorder %s33, 1
        %s555 = scalar_select %p554, %s33, 1
        %s556 = smul.addr %s555, 12
        %s557 = smul.addr %s556, 4
        %s558 = scalar_lea.vmem %s4, %s557
        %p559 = pneg %p170
        %p560 = pneg %p167
        %p561 = scmp.lt.s32.totalorder %s33, 1
        %s562 = scalar_select %p561, %s33, 1
        %s563 = scalar_lea.vmem %s5, %s562
        %p564 = pneg %p196
        %p565 = pneg %p193
        %p566 = scmp.lt.s32.totalorder %s33, 1
        %s567 = scalar_select %p566, %s33, 1
        %s568 = smul.addr %s567, 4
        %s569 = scalar_lea.vmem %s6, %s568
        %p570 = pneg %p222
        %p571 = pneg %p219
        %p572 = scmp.lt.s32.totalorder %s33, 1
        %s573 = scalar_select %p572, %s33, 1
        %s574 = scalar_lea.vmem %s7, %s573
        %p575 = pneg %p248
        %p576 = pneg %p245
        %p577 = scmp.lt.s32.totalorder %s33, 1
        %s578 = scalar_select %p577, %s33, 1
        %s579 = smul.addr %s578, 12
        %s580 = smul.addr %s579, 4
        %s581 = scalar_lea.vmem %s8, %s580
        %p582 = pneg %p274
        %p583 = pneg %p271
        %p584 = scmp.lt.s32.totalorder %s33, 1
        %s585 = scalar_select %p584, %s33, 1
        %s586 = scalar_lea.vmem %s9, %s585
        %p587 = pneg %p300
        %p588 = pneg %p297
        %s589 = sand.u32 %s313, 1
        %s590 = scalar_lea.sflag [#allocation4], %s589
        %s591 = sand.u32 %s313, 1
        %s592 = smul.addr %s591, 48
        %s593 = scalar_lea.vmem [#allocation3], %s592
        %p594 = pneg %p326
        %p595 = pneg %p323
        %p596 = scmp.lt.s32.totalorder %s33, 1
        %s597 = scalar_select %p596, %s33, 1
        %s598 = scalar_lea.vmem %s11, %s597
        %p599 = pneg %p352
        %p600 = pneg %p349
        %p601 = pneg %p380
        %p602 = pneg %p377
        %s603 = sand.u32 %s367, 1
        %s604 = scalar_lea.sflag [#allocation5], %s603
        %s605 = sand.u32 %s367, 1
        %s606 = smul.addr %s605, 8
        %s607 = scalar_lea.vmem [#allocation6], %s606
        %s608 = smul.u32 8, %s34
        %p609 = scmp.lt.s32.totalorder %s33, 1
        %s610 = scalar_select %p609, %s33, 1
        %p611 = scmp.lt.s32.totalorder %s608, 7
        %s612 = scalar_select %p611, %s608, 7
        %s613 = smul.addr %s612, 2
        %s614 = smul.addr %s610, 16
        %s615 = sadd.s32 %s613, %s614
        %s616 = smul.addr %s615, 4
        %s617 = scalar_lea.vmem %s0, %s616
        %s618 = smul.u32 8, %s34
        %p619 = scmp.lt.s32.totalorder %s33, 1
        %s620 = scalar_select %p619, %s33, 1
        %p621 = scmp.lt.s32.totalorder %s34, 0
        %s622 = scalar_select %p621, %s34, 0
        %s623 = sadd.s32 %s622, %s620
        %s624 = smul.addr %s623, 8
        %s625 = scalar_lea.vmem %s1, %s624
        %p626 = scmp.lt.s32.totalorder %s33, 1
        %s627 = scalar_select %p626, %s33, 1
        %s628 = smul.addr %s627, 3
        %s629 = smul.addr %s628, 4
        %s630 = scalar_lea.vmem %s2, %s629
        %p631 = scmp.lt.s32.totalorder %s33, 1
        %s632 = scalar_select %p631, %s33, 1
        %s633 = scalar_lea.vmem %s3, %s632
        %p634 = scmp.lt.s32.totalorder %s33, 1
        %s635 = scalar_select %p634, %s33, 1
        %s636 = smul.addr %s635, 12
        %s637 = smul.addr %s636, 4
        %s638 = scalar_lea.vmem %s4, %s637
        %p639 = scmp.lt.s32.totalorder %s33, 1
        %s640 = scalar_select %p639, %s33, 1
        %s641 = scalar_lea.vmem %s5, %s640
        %p642 = scmp.lt.s32.totalorder %s33, 1
        %s643 = scalar_select %p642, %s33, 1
        %s644 = smul.addr %s643, 4
        %s645 = scalar_lea.vmem %s6, %s644
        %p646 = scmp.lt.s32.totalorder %s33, 1
        %s647 = scalar_select %p646, %s33, 1
        %s648 = scalar_lea.vmem %s7, %s647
        %p649 = scmp.lt.s32.totalorder %s33, 1
        %s650 = scalar_select %p649, %s33, 1
        %s651 = smul.addr %s650, 12
        %s652 = smul.addr %s651, 4
        %s653 = scalar_lea.vmem %s8, %s652
        %p654 = scmp.lt.s32.totalorder %s33, 1
        %s655 = scalar_select %p654, %s33, 1
        %s656 = scalar_lea.vmem %s9, %s655
        %p657 = scmp.lt.s32.totalorder %s33, 1
        %s658 = scalar_select %p657, %s33, 1
        %s659 = scalar_lea.vmem %s11, %s658
        %vm661 = vcmask 257024
        %662 = vst.msk [vmem:[#allocation2] sm:$0xf] %vm661, 0
        %663 = vst.msk [vmem:[#allocation2 + $0xc] sm:$0xf] %vm661, 0
        %664 = vst.msk [vmem:[#allocation2 + $0x18] sm:$0xf] %vm661, 0
        %665 = vst.msk [vmem:[#allocation2 + $0x24] sm:$0xf] %vm661, 0
        %666 = vst.msk [vmem:[#allocation2 + $0x30] sm:$0xf] %vm661, 0
        %667 = vst.msk [vmem:[#allocation2 + $0x3c] sm:$0xf] %vm661, 0
        %668 = vst.msk [vmem:[#allocation2 + $0x48] sm:$0xf] %vm661, 0
        %669 = vst.msk [vmem:[#allocation2 + $0x54] sm:$0xf] %vm661, 0
        %v670 = vld [vmem:[%s617] sm:$0xf]
        %v671 = vld [vmem:[%s617 + $0x4] sm:$0xf]
        %v672 = vld [vmem:[%s617 + $0x8] sm:$0xf]
        %v673 = vld [vmem:[%s617 + $0xc] sm:$0xf]
        %v674 = vld [vmem:[%s617 + $0x10] sm:$0xf]
        %v675 = vld [vmem:[%s617 + $0x14] sm:$0xf]
        %v676 = vld [vmem:[%s617 + $0x18] sm:$0xf]
        %v677 = vld [vmem:[%s617 + $0x1c] sm:$0xf]
        %v678 = vld [vmem:[%s617 + $0x20] sm:$0xf]
        %v679 = vld [vmem:[%s617 + $0x24] sm:$0xf]
        %v680 = vld [vmem:[%s617 + $0x28] sm:$0xf]
        %v681 = vld [vmem:[%s617 + $0x2c] sm:$0xf]
        %v682 = vld [vmem:[%s617 + $0x30] sm:$0xf]
        %v683 = vld [vmem:[%s617 + $0x34] sm:$0xf]
        %v684 = vld [vmem:[%s617 + $0x38] sm:$0xf]
        %v685 = vld [vmem:[%s617 + $0x3c] sm:$0xf]
        %vm686 = vcmask 44032
        %687 = vst.msk [vmem:[#allocation2 + $0x4] sm:$0xf] %vm686, %v670
        %688 = vst.msk [vmem:[#allocation2 + $0x8] sm:$0xf] %vm686, %v671
        %689 = vst.msk [vmem:[#allocation2 + $0x10] sm:$0xf] %vm686, %v672
        %690 = vst.msk [vmem:[#allocation2 + $0x14] sm:$0xf] %vm686, %v673
        %691 = vst.msk [vmem:[#allocation2 + $0x1c] sm:$0xf] %vm686, %v674
        %692 = vst.msk [vmem:[#allocation2 + $0x20] sm:$0xf] %vm686, %v675
        %693 = vst.msk [vmem:[#allocation2 + $0x28] sm:$0xf] %vm686, %v676
        %694 = vst.msk [vmem:[#allocation2 + $0x2c] sm:$0xf] %vm686, %v677
        %695 = vst.msk [vmem:[#allocation2 + $0x34] sm:$0xf] %vm686, %v678
        %696 = vst.msk [vmem:[#allocation2 + $0x38] sm:$0xf] %vm686, %v679
        %697 = vst.msk [vmem:[#allocation2 + $0x40] sm:$0xf] %vm686, %v680
        %698 = vst.msk [vmem:[#allocation2 + $0x44] sm:$0xf] %vm686, %v681
        %699 = vst.msk [vmem:[#allocation2 + $0x4c] sm:$0xf] %vm686, %v682
        %700 = vst.msk [vmem:[#allocation2 + $0x50] sm:$0xf] %vm686, %v683
        %701 = vst.msk [vmem:[#allocation2 + $0x58] sm:$0xf] %vm686, %v684
        %702 = vst.msk [vmem:[#allocation2 + $0x5c] sm:$0xf] %vm686, %v685
        %v703 = vld [vmem:[%s630] sm:$0x7]
        %v704 = vld [vmem:[%s630 + $0x4] sm:$0x7]
        %v705 = vld [vmem:[%s630 + $0x8] sm:$0x7]
        %v706 = vld [vmem:[%s633] sm:$0x1]
        %v707 = vld [vmem:[%s638] sm:$0xf]
        %v708 = vld [vmem:[%s638 + $0x4] sm:$0xf]
        %v709 = vld [vmem:[%s638 + $0x8] sm:$0xf]
        %v710 = vld [vmem:[%s638 + $0xc] sm:$0xf]
        %v711 = vld [vmem:[%s638 + $0x10] sm:$0xf]
        %v712 = vld [vmem:[%s638 + $0x14] sm:$0xf]
        %v713 = vld [vmem:[%s638 + $0x18] sm:$0xf]
        %v714 = vld [vmem:[%s638 + $0x1c] sm:$0xf]
        %v715 = vld [vmem:[%s638 + $0x20] sm:$0xf]
        %v716 = vld [vmem:[%s638 + $0x24] sm:$0xf]
        %v717 = vld [vmem:[%s638 + $0x28] sm:$0xf]
        %v718 = vld [vmem:[%s638 + $0x2c] sm:$0xf]
        %v719 = vld [vmem:[%s641] sm:$0x1]
        %v720 = vld [vmem:[%s645] sm:$0x7]
        %v721 = vld [vmem:[%s648] sm:$0x1]
        %v722 = vld [vmem:[#allocation2 + $0x4] sm:$0xf]
        %v723 = vld [vmem:[#allocation2 + $0x8] sm:$0xf]
        %v724 = vld [vmem:[#allocation2 + $0x10] sm:$0xf]
        %v725 = vld [vmem:[#allocation2 + $0x14] sm:$0xf]
        %v726 = vld [vmem:[#allocation2 + $0x1c] sm:$0xf]
        %v727 = vld [vmem:[#allocation2 + $0x20] sm:$0xf]
        %v728 = vld [vmem:[#allocation2 + $0x28] sm:$0xf]
        %v729 = vld [vmem:[#allocation2 + $0x2c] sm:$0xf]
        %v730 = vld [vmem:[#allocation2 + $0x34] sm:$0xf]
        %v731 = vld [vmem:[#allocation2 + $0x38] sm:$0xf]
        %v732 = vld [vmem:[#allocation2 + $0x40] sm:$0xf]
        %v733 = vld [vmem:[#allocation2 + $0x44] sm:$0xf]
        %v734 = vld [vmem:[#allocation2 + $0x4c] sm:$0xf]
        %v735 = vld [vmem:[#allocation2 + $0x50] sm:$0xf]
        %v736 = vld [vmem:[#allocation2 + $0x58] sm:$0xf]
        %v737 = vld [vmem:[#allocation2 + $0x5c] sm:$0xf]
        %v739 = vlaneseq
        %v740 = vshrl.u32 %v739, 7
        %v741 = vsub.s32 0, %v740
        %v742 = vrot.slane %v721, %v741
        %v760 = vunpack.c.l.b16 %v722
        %v761 = vunpack.c.l.b16 %v723
        %v762 = vunpack.c.l.b16 %v724
        %v763 = vunpack.c.l.b16 %v725
        %v764 = vunpack.c.l.b16 %v726
        %v765 = vunpack.c.l.b16 %v727
        %v766 = vunpack.c.l.b16 %v728
        %v767 = vunpack.c.l.b16 %v729
        %v768 = vunpack.c.l.b16 %v730
        %v769 = vunpack.c.l.b16 %v731
        %v770 = vunpack.c.l.b16 %v732
        %v771 = vunpack.c.l.b16 %v733
        %v772 = vunpack.c.l.b16 %v734
        %v773 = vunpack.c.l.b16 %v735
        %v774 = vunpack.c.l.b16 %v736
        %v775 = vunpack.c.l.b16 %v737
        %v776 = vpack.c.b16 %v761, %v760
        %v777 = vpack.c.b16 %v763, %v762
        %v778 = vpack.c.b16 %v765, %v764
        %v779 = vpack.c.b16 %v767, %v766
        %v780 = vpack.c.b16 %v769, %v768
        %v781 = vpack.c.b16 %v771, %v770
        %v782 = vpack.c.b16 %v773, %v772
        %v783 = vpack.c.b16 %v775, %v774
        %vm784 = vcmask 48128
        %v786 = vsel %vm784, %v776, 0
        %v789 = vsel %vm784, %v777, 0
        %v792 = vsel %vm784, %v778, 0
        %v795 = vsel %vm784, %v779, 0
        %v798 = vsel %vm784, %v780, 0
        %v801 = vsel %vm784, %v781, 0
        %v804 = vsel %vm784, %v782, 0
        %v807 = vsel %vm784, %v783, 0
        %vm809 = vcmask 1042432
        %v811 = vsel %vm809, %v720, 0
        %813 = vmatprep.subr.bf16.mxu0 0
        %814 = vmatpush1.bf16.msra.mxu0 0
        %815 = vmatprep.subr.bf16.mxu0 0
        %816 = vmatpush1.bf16.msra.mxu0 0
        %817 = vmatprep.subr.bf16.mxu0 0
        %818 = vmatpush1.bf16.msra.mxu0 0
        %819 = vmatprep.subr.bf16.mxu0 0
        %820 = vmatpush1.bf16.msra.mxu0 0
        %821 = vmatprep.subr.bf16.mxu0 0
        %822 = vmatpush1.bf16.msra.mxu0 0
        %823 = vmatprep.subr.bf16.mxu0 0
        %824 = vmatpush1.bf16.msra.mxu0 0
        %825 = vmatprep.subr.bf16.mxu0 0
        %826 = vmatpush1.bf16.msra.mxu0 0
        %827 = vmatprep.subr.bf16.mxu0 0
        %828 = vmatpush1.bf16.msra.mxu0 %v811
        %829 = vmatprep.subr.bf16.mxu0 0
        %830 = vmatpush2.bf16.msra.mxu0 0
        %831 = vmatprep.subr.bf16.mxu0 0
        %832 = vmatpush2.bf16.msra.mxu0 0
        %833 = vmatprep.subr.bf16.mxu0 0
        %834 = vmatpush2.bf16.msra.mxu0 0
        %835 = vmatprep.subr.bf16.mxu0 0
        %836 = vmatpush2.bf16.msra.mxu0 0
        %837 = vmatprep.subr.bf16.mxu0 0
        %838 = vmatpush2.bf16.msra.mxu0 0
        %839 = vmatprep.subr.bf16.mxu0 0
        %840 = vmatpush2.bf16.msra.mxu0 0
        %841 = vmatprep.subr.bf16.mxu0 0
        %842 = vmatpush2.bf16.msra.mxu0 0
        %843 = vmatprep.subr.bf16.mxu0 0
        %844 = vmatpush2.bf16.msra.mxu0 0
        %845 = vmatprep.mubr.bf16.mxu0 0
        %846 = vmatmul.mubr.bf16.gmra.mxu0 %v786
        %v847 = vpop.f32.mrf.mxu0
        %v848 = vadd.f32 %v742, %v847
        %v849 = vpop.f32.mrf.mxu0
        %v850 = vpop.f32.mrf.mxu0
        %v851 = vadd.f32 %v742, %v850
        %v852 = vpop.f32.mrf.mxu0
        %853 = vmatprep.mubr.bf16.mxu0 0
        %854 = vmatmul.mubr.bf16.gmra.mxu0 %v789
        %v855 = vpop.f32.mrf.mxu0
        %v856 = vadd.f32 %v742, %v855
        %v857 = vpop.f32.mrf.mxu0
        %v858 = vpop.f32.mrf.mxu0
        %v859 = vadd.f32 %v742, %v858
        %v860 = vpop.f32.mrf.mxu0
        %861 = vmatprep.mubr.bf16.mxu0 0
        %862 = vmatmul.mubr.bf16.gmra.mxu0 %v792
        %v863 = vpop.f32.mrf.mxu0
        %v864 = vadd.f32 %v742, %v863
        %v865 = vpop.f32.mrf.mxu0
        %v866 = vpop.f32.mrf.mxu0
        %v867 = vadd.f32 %v742, %v866
        %v868 = vpop.f32.mrf.mxu0
        %869 = vmatprep.mubr.bf16.mxu0 0
        %870 = vmatmul.mubr.bf16.gmra.mxu0 %v795
        %v871 = vpop.f32.mrf.mxu0
        %v872 = vadd.f32 %v742, %v871
        %v873 = vpop.f32.mrf.mxu0
        %v874 = vpop.f32.mrf.mxu0
        %v875 = vadd.f32 %v742, %v874
        %v876 = vpop.f32.mrf.mxu0
        %877 = vmatprep.mubr.bf16.mxu0 0
        %878 = vmatmul.mubr.bf16.gmra.mxu0 %v798
        %v879 = vpop.f32.mrf.mxu0
        %v880 = vadd.f32 %v742, %v879
        %v881 = vpop.f32.mrf.mxu0
        %v882 = vpop.f32.mrf.mxu0
        %v883 = vadd.f32 %v742, %v882
        %v884 = vpop.f32.mrf.mxu0
        %885 = vmatprep.mubr.bf16.mxu0 0
        %886 = vmatmul.mubr.bf16.gmra.mxu0 %v801
        %v887 = vpop.f32.mrf.mxu0
        %v888 = vadd.f32 %v742, %v887
        %v889 = vpop.f32.mrf.mxu0
        %v890 = vpop.f32.mrf.mxu0
        %v891 = vadd.f32 %v742, %v890
        %v892 = vpop.f32.mrf.mxu0
        %893 = vmatprep.mubr.bf16.mxu0 0
        %894 = vmatmul.mubr.bf16.gmra.mxu0 %v804
        %v895 = vpop.f32.mrf.mxu0
        %v896 = vadd.f32 %v742, %v895
        %v897 = vpop.f32.mrf.mxu0
        %v898 = vpop.f32.mrf.mxu0
        %v899 = vadd.f32 %v742, %v898
        %v900 = vpop.f32.mrf.mxu0
        %901 = vmatprep.mubr.bf16.mxu0 0
        %902 = vmatmul.mubr.bf16.gmra.mxu0 %v807
        %v903 = vpop.f32.mrf.mxu0
        %v904 = vadd.f32 %v742, %v903
        %v905 = vpop.f32.mrf.mxu0
        %v906 = vpop.f32.mrf.mxu0
        %v907 = vadd.f32 %v742, %v906
        %v908 = vpop.f32.mrf.mxu0
        %909 = vdwg.mxu0
        %v910 = vld [vmem:[#allocation2] sm:$0x8]
        %v911 = vld [vmem:[#allocation2 + $0x8] sm:$0x7]
        %v912 = vld [vmem:[#allocation2 + $0xc] sm:$0x8]
        %v913 = vld [vmem:[#allocation2 + $0x14] sm:$0x7]
        %v914 = vld [vmem:[#allocation2 + $0x18] sm:$0x8]
        %v915 = vld [vmem:[#allocation2 + $0x20] sm:$0x7]
        %v916 = vld [vmem:[#allocation2 + $0x24] sm:$0x8]
        %v917 = vld [vmem:[#allocation2 + $0x2c] sm:$0x7]
        %v918 = vld [vmem:[#allocation2 + $0x30] sm:$0x8]
        %v919 = vld [vmem:[#allocation2 + $0x38] sm:$0x7]
        %v920 = vld [vmem:[#allocation2 + $0x3c] sm:$0x8]
        %v921 = vld [vmem:[#allocation2 + $0x44] sm:$0x7]
        %v922 = vld [vmem:[#allocation2 + $0x48] sm:$0x8]
        %v923 = vld [vmem:[#allocation2 + $0x50] sm:$0x7]
        %v924 = vld [vmem:[#allocation2 + $0x54] sm:$0x8]
        %v925 = vld [vmem:[#allocation2 + $0x5c] sm:$0x7]
        %vm942 = vcmask 1040384
        %vm943 = vcmask 1044484
        %vm944 = vmor %vm942, %vm943
        %v945 = vrot.slane %v910, 7
        %v946 = vrot.slane %v945, 4
        %v947 = vrot.slane %v722, 7
        %v948 = vsel %vm944, %v946, %v947
        %v949 = vrot.slane %v947, 4
        %v950 = vrot.slane %v911, 7
        %v951 = vsel %vm944, %v949, %v950
        %v952 = vrot.slane %v912, 7
        %v953 = vrot.slane %v952, 4
        %v954 = vrot.slane %v724, 7
        %v955 = vsel %vm944, %v953, %v954
        %v956 = vrot.slane %v954, 4
        %v957 = vrot.slane %v913, 7
        %v958 = vsel %vm944, %v956, %v957
        %v959 = vrot.slane %v914, 7
        %v960 = vrot.slane %v959, 4
        %v961 = vrot.slane %v726, 7
        %v962 = vsel %vm944, %v960, %v961
        %v963 = vrot.slane %v961, 4
        %v964 = vrot.slane %v915, 7
        %v965 = vsel %vm944, %v963, %v964
        %v966 = vrot.slane %v916, 7
        %v967 = vrot.slane %v966, 4
        %v968 = vrot.slane %v728, 7
        %v969 = vsel %vm944, %v967, %v968
        %v970 = vrot.slane %v968, 4
        %v971 = vrot.slane %v917, 7
        %v972 = vsel %vm944, %v970, %v971
        %v973 = vrot.slane %v918, 7
        %v974 = vrot.slane %v973, 4
        %v975 = vrot.slane %v730, 7
        %v976 = vsel %vm944, %v974, %v975
        %v977 = vrot.slane %v975, 4
        %v978 = vrot.slane %v919, 7
        %v979 = vsel %vm944, %v977, %v978
        %v980 = vrot.slane %v920, 7
        %v981 = vrot.slane %v980, 4
        %v982 = vrot.slane %v732, 7
        %v983 = vsel %vm944, %v981, %v982
        %v984 = vrot.slane %v982, 4
        %v985 = vrot.slane %v921, 7
        %v986 = vsel %vm944, %v984, %v985
        %v987 = vrot.slane %v922, 7
        %v988 = vrot.slane %v987, 4
        %v989 = vrot.slane %v734, 7
        %v990 = vsel %vm944, %v988, %v989
        %v991 = vrot.slane %v989, 4
        %v992 = vrot.slane %v923, 7
        %v993 = vsel %vm944, %v991, %v992
        %v994 = vrot.slane %v924, 7
        %v995 = vrot.slane %v994, 4
        %v996 = vrot.slane %v736, 7
        %v997 = vsel %vm944, %v995, %v996
        %v998 = vrot.slane %v996, 4
        %v999 = vrot.slane %v925, 7
        %v1000 = vsel %vm944, %v998, %v999
        %vm1001 = vsmask.f32 256
        %vm1002 = vsmask.f32 4368
        %vm1003 = vmor %vm1001, %vm1002
        %v1005 = vshrl.u32 %v910, 16
        %v1007 = vrot.slane %v1005, 7
        %v1008 = vrot.slane %v1007, 4
        %v1010 = vshrl.u32 %v722, 16
        %v1012 = vrot.slane %v1010, 7
        %v1013 = vshll.u32 %v722, 16
        %v1015 = vor.u32 %v1012, %v1013
        %v1016 = vsel %vm1003, %v1008, %v1015
        %v1017 = vrot.slane %v1012, 4
        %v1019 = vshrl.u32 %v723, 16
        %v1021 = vrot.slane %v1019, 7
        %v1022 = vshll.u32 %v723, 16
        %v1024 = vor.u32 %v1021, %v1022
        %v1025 = vsel %vm1003, %v1017, %v1024
        %v1027 = vshrl.u32 %v912, 16
        %v1029 = vrot.slane %v1027, 7
        %v1030 = vrot.slane %v1029, 4
        %v1032 = vshrl.u32 %v724, 16
        %v1034 = vrot.slane %v1032, 7
        %v1035 = vshll.u32 %v724, 16
        %v1037 = vor.u32 %v1034, %v1035
        %v1038 = vsel %vm1003, %v1030, %v1037
        %v1039 = vrot.slane %v1034, 4
        %v1041 = vshrl.u32 %v725, 16
        %v1043 = vrot.slane %v1041, 7
        %v1044 = vshll.u32 %v725, 16
        %v1046 = vor.u32 %v1043, %v1044
        %v1047 = vsel %vm1003, %v1039, %v1046
        %v1049 = vshrl.u32 %v914, 16
        %v1051 = vrot.slane %v1049, 7
        %v1052 = vrot.slane %v1051, 4
        %v1054 = vshrl.u32 %v726, 16
        %v1056 = vrot.slane %v1054, 7
        %v1057 = vshll.u32 %v726, 16
        %v1059 = vor.u32 %v1056, %v1057
        %v1060 = vsel %vm1003, %v1052, %v1059
        %v1061 = vrot.slane %v1056, 4
        %v1063 = vshrl.u32 %v727, 16
        %v1065 = vrot.slane %v1063, 7
        %v1066 = vshll.u32 %v727, 16
        %v1068 = vor.u32 %v1065, %v1066
        %v1069 = vsel %vm1003, %v1061, %v1068
        %v1071 = vshrl.u32 %v916, 16
        %v1073 = vrot.slane %v1071, 7
        %v1074 = vrot.slane %v1073, 4
        %v1076 = vshrl.u32 %v728, 16
        %v1078 = vrot.slane %v1076, 7
        %v1079 = vshll.u32 %v728, 16
        %v1081 = vor.u32 %v1078, %v1079
        %v1082 = vsel %vm1003, %v1074, %v1081
        %v1083 = vrot.slane %v1078, 4
        %v1085 = vshrl.u32 %v729, 16
        %v1087 = vrot.slane %v1085, 7
        %v1088 = vshll.u32 %v729, 16
        %v1090 = vor.u32 %v1087, %v1088
        %v1091 = vsel %vm1003, %v1083, %v1090
        %v1093 = vshrl.u32 %v918, 16
        %v1095 = vrot.slane %v1093, 7
        %v1096 = vrot.slane %v1095, 4
        %v1098 = vshrl.u32 %v730, 16
        %v1100 = vrot.slane %v1098, 7
        %v1101 = vshll.u32 %v730, 16
        %v1103 = vor.u32 %v1100, %v1101
        %v1104 = vsel %vm1003, %v1096, %v1103
        %v1105 = vrot.slane %v1100, 4
        %v1107 = vshrl.u32 %v731, 16
        %v1109 = vrot.slane %v1107, 7
        %v1110 = vshll.u32 %v731, 16
        %v1112 = vor.u32 %v1109, %v1110
        %v1113 = vsel %vm1003, %v1105, %v1112
        %v1115 = vshrl.u32 %v920, 16
        %v1117 = vrot.slane %v1115, 7
        %v1118 = vrot.slane %v1117, 4
        %v1120 = vshrl.u32 %v732, 16
        %v1122 = vrot.slane %v1120, 7
        %v1123 = vshll.u32 %v732, 16
        %v1125 = vor.u32 %v1122, %v1123
        %v1126 = vsel %vm1003, %v1118, %v1125
        %v1127 = vrot.slane %v1122, 4
        %v1129 = vshrl.u32 %v733, 16
        %v1131 = vrot.slane %v1129, 7
        %v1132 = vshll.u32 %v733, 16
        %v1134 = vor.u32 %v1131, %v1132
        %v1135 = vsel %vm1003, %v1127, %v1134
        %v1137 = vshrl.u32 %v922, 16
        %v1139 = vrot.slane %v1137, 7
        %v1140 = vrot.slane %v1139, 4
        %v1142 = vshrl.u32 %v734, 16
        %v1144 = vrot.slane %v1142, 7
        %v1145 = vshll.u32 %v734, 16
        %v1147 = vor.u32 %v1144, %v1145
        %v1148 = vsel %vm1003, %v1140, %v1147
        %v1149 = vrot.slane %v1144, 4
        %v1151 = vshrl.u32 %v735, 16
        %v1153 = vrot.slane %v1151, 7
        %v1154 = vshll.u32 %v735, 16
        %v1156 = vor.u32 %v1153, %v1154
        %v1157 = vsel %vm1003, %v1149, %v1156
        %v1159 = vshrl.u32 %v924, 16
        %v1161 = vrot.slane %v1159, 7
        %v1162 = vrot.slane %v1161, 4
        %v1164 = vshrl.u32 %v736, 16
        %v1166 = vrot.slane %v1164, 7
        %v1167 = vshll.u32 %v736, 16
        %v1169 = vor.u32 %v1166, %v1167
        %v1170 = vsel %vm1003, %v1162, %v1169
        %v1171 = vrot.slane %v1166, 4
        %v1173 = vshrl.u32 %v737, 16
        %v1175 = vrot.slane %v1173, 7
        %v1176 = vshll.u32 %v737, 16
        %v1178 = vor.u32 %v1175, %v1176
        %v1179 = vsel %vm1003, %v1171, %v1178
        %v1180 = vunpack.c.l.b16 %v1016
        %v1181 = vunpack.c.l.b16 %v1025
        %v1182 = vunpack.c.l.b16 %v1038
        %v1183 = vunpack.c.l.b16 %v1047
        %v1184 = vunpack.c.l.b16 %v1060
        %v1185 = vunpack.c.l.b16 %v1069
        %v1186 = vunpack.c.l.b16 %v1082
        %v1187 = vunpack.c.l.b16 %v1091
        %v1188 = vunpack.c.l.b16 %v1104
        %v1189 = vunpack.c.l.b16 %v1113
        %v1190 = vunpack.c.l.b16 %v1126
        %v1191 = vunpack.c.l.b16 %v1135
        %v1192 = vunpack.c.l.b16 %v1148
        %v1193 = vunpack.c.l.b16 %v1157
        %v1194 = vunpack.c.l.b16 %v1170
        %v1195 = vunpack.c.l.b16 %v1179
        %v1196 = vpack.c.b16 %v1181, %v1180
        %v1197 = vpack.c.b16 %v1183, %v1182
        %v1198 = vpack.c.b16 %v1185, %v1184
        %v1199 = vpack.c.b16 %v1187, %v1186
        %v1200 = vpack.c.b16 %v1189, %v1188
        %v1201 = vpack.c.b16 %v1191, %v1190
        %v1202 = vpack.c.b16 %v1193, %v1192
        %v1203 = vpack.c.b16 %v1195, %v1194
        %v1205 = vsel %vm784, %v1196, 0
        %v1208 = vsel %vm784, %v1197, 0
        %v1211 = vsel %vm784, %v1198, 0
        %v1214 = vsel %vm784, %v1199, 0
        %v1217 = vsel %vm784, %v1200, 0
        %v1220 = vsel %vm784, %v1201, 0
        %v1223 = vsel %vm784, %v1202, 0
        %v1226 = vsel %vm784, %v1203, 0
        %v1229 = vsel %vm809, %v704, 0
        %1231 = vmatprep.subr.bf16.mxu0 0
        %1232 = vmatpush1.bf16.msra.mxu0 0
        %1233 = vmatprep.subr.bf16.mxu0 0
        %1234 = vmatpush1.bf16.msra.mxu0 0
        %1235 = vmatprep.subr.bf16.mxu0 0
        %1236 = vmatpush1.bf16.msra.mxu0 0
        %1237 = vmatprep.subr.bf16.mxu0 0
        %1238 = vmatpush1.bf16.msra.mxu0 0
        %1239 = vmatprep.subr.bf16.mxu0 0
        %1240 = vmatpush1.bf16.msra.mxu0 0
        %1241 = vmatprep.subr.bf16.mxu0 0
        %1242 = vmatpush1.bf16.msra.mxu0 0
        %1243 = vmatprep.subr.bf16.mxu0 0
        %1244 = vmatpush1.bf16.msra.mxu0 0
        %1245 = vmatprep.subr.bf16.mxu0 0
        %1246 = vmatpush1.bf16.msra.mxu0 %v1229
        %1247 = vmatprep.subr.bf16.mxu0 0
        %1248 = vmatpush2.bf16.msra.mxu0 0
        %1249 = vmatprep.subr.bf16.mxu0 0
        %1250 = vmatpush2.bf16.msra.mxu0 0
        %1251 = vmatprep.subr.bf16.mxu0 0
        %1252 = vmatpush2.bf16.msra.mxu0 0
        %1253 = vmatprep.subr.bf16.mxu0 0
        %1254 = vmatpush2.bf16.msra.mxu0 0
        %1255 = vmatprep.subr.bf16.mxu0 0
        %1256 = vmatpush2.bf16.msra.mxu0 0
        %1257 = vmatprep.subr.bf16.mxu0 0
        %1258 = vmatpush2.bf16.msra.mxu0 0
        %1259 = vmatprep.subr.bf16.mxu0 0
        %1260 = vmatpush2.bf16.msra.mxu0 0
        %1261 = vmatprep.subr.bf16.mxu0 0
        %1262 = vmatpush2.bf16.msra.mxu0 0
        %1263 = vmatprep.mubr.bf16.mxu0 0
        %1264 = vmatmul.mubr.bf16.gmra.mxu0 %v1205
        %v1265 = vpop.f32.mrf.mxu0
        %v1266 = vadd.f32 0.0, %v1265
        %v1267 = vpop.f32.mrf.mxu0
        %v1268 = vpop.f32.mrf.mxu0
        %v1269 = vadd.f32 0.0, %v1268
        %v1270 = vpop.f32.mrf.mxu0
        %1271 = vmatprep.mubr.bf16.mxu0 0
        %1272 = vmatmul.mubr.bf16.gmra.mxu0 %v1208
        %v1273 = vpop.f32.mrf.mxu0
        %v1274 = vadd.f32 0.0, %v1273
        %v1275 = vpop.f32.mrf.mxu0
        %v1276 = vpop.f32.mrf.mxu0
        %v1277 = vadd.f32 0.0, %v1276
        %v1278 = vpop.f32.mrf.mxu0
        %1279 = vmatprep.mubr.bf16.mxu0 0
        %1280 = vmatmul.mubr.bf16.gmra.mxu0 %v1211
        %v1281 = vpop.f32.mrf.mxu0
        %v1282 = vadd.f32 0.0, %v1281
        %v1283 = vpop.f32.mrf.mxu0
        %v1284 = vpop.f32.mrf.mxu0
        %v1285 = vadd.f32 0.0, %v1284
        %v1286 = vpop.f32.mrf.mxu0
        %1287 = vmatprep.mubr.bf16.mxu0 0
        %1288 = vmatmul.mubr.bf16.gmra.mxu0 %v1214
        %v1289 = vpop.f32.mrf.mxu0
        %v1290 = vadd.f32 0.0, %v1289
        %v1291 = vpop.f32.mrf.mxu0
        %v1292 = vpop.f32.mrf.mxu0
        %v1293 = vadd.f32 0.0, %v1292
        %v1294 = vpop.f32.mrf.mxu0
        %1295 = vmatprep.mubr.bf16.mxu0 0
        %1296 = vmatmul.mubr.bf16.gmra.mxu0 %v1217
        %v1297 = vpop.f32.mrf.mxu0
        %v1298 = vadd.f32 0.0, %v1297
        %v1299 = vpop.f32.mrf.mxu0
        %v1300 = vpop.f32.mrf.mxu0
        %v1301 = vadd.f32 0.0, %v1300
        %v1302 = vpop.f32.mrf.mxu0
        %1303 = vmatprep.mubr.bf16.mxu0 0
        %1304 = vmatmul.mubr.bf16.gmra.mxu0 %v1220
        %v1305 = vpop.f32.mrf.mxu0
        %v1306 = vadd.f32 0.0, %v1305
        %v1307 = vpop.f32.mrf.mxu0
        %v1308 = vpop.f32.mrf.mxu0
        %v1309 = vadd.f32 0.0, %v1308
        %v1310 = vpop.f32.mrf.mxu0
        %1311 = vmatprep.mubr.bf16.mxu0 0
        %1312 = vmatmul.mubr.bf16.gmra.mxu0 %v1223
        %v1313 = vpop.f32.mrf.mxu0
        %v1314 = vadd.f32 0.0, %v1313
        %v1315 = vpop.f32.mrf.mxu0
        %v1316 = vpop.f32.mrf.mxu0
        %v1317 = vadd.f32 0.0, %v1316
        %v1318 = vpop.f32.mrf.mxu0
        %1319 = vmatprep.mubr.bf16.mxu0 0
        %1320 = vmatmul.mubr.bf16.gmra.mxu0 %v1226
        %v1321 = vpop.f32.mrf.mxu0
        %v1322 = vadd.f32 0.0, %v1321
        %v1323 = vpop.f32.mrf.mxu0
        %v1324 = vpop.f32.mrf.mxu0
        %v1325 = vadd.f32 0.0, %v1324
        %v1326 = vpop.f32.mrf.mxu0
        %1327 = vdwg.mxu0
        %v1328 = vunpack.c.l.b16 %v948
        %v1329 = vunpack.c.l.b16 %v951
        %v1330 = vunpack.c.l.b16 %v955
        %v1331 = vunpack.c.l.b16 %v958
        %v1332 = vunpack.c.l.b16 %v962
        %v1333 = vunpack.c.l.b16 %v965
        %v1334 = vunpack.c.l.b16 %v969
        %v1335 = vunpack.c.l.b16 %v972
        %v1336 = vunpack.c.l.b16 %v976
        %v1337 = vunpack.c.l.b16 %v979
        %v1338 = vunpack.c.l.b16 %v983
        %v1339 = vunpack.c.l.b16 %v986
        %v1340 = vunpack.c.l.b16 %v990
        %v1341 = vunpack.c.l.b16 %v993
        %v1342 = vunpack.c.l.b16 %v997
        %v1343 = vunpack.c.l.b16 %v1000
        %v1344 = vpack.c.b16 %v1329, %v1328
        %v1345 = vpack.c.b16 %v1331, %v1330
        %v1346 = vpack.c.b16 %v1333, %v1332
        %v1347 = vpack.c.b16 %v1335, %v1334
        %v1348 = vpack.c.b16 %v1337, %v1336
        %v1349 = vpack.c.b16 %v1339, %v1338
        %v1350 = vpack.c.b16 %v1341, %v1340
        %v1351 = vpack.c.b16 %v1343, %v1342
        %v1353 = vsel %vm784, %v1344, 0
        %v1356 = vsel %vm784, %v1345, 0
        %v1359 = vsel %vm784, %v1346, 0
        %v1362 = vsel %vm784, %v1347, 0
        %v1365 = vsel %vm784, %v1348, 0
        %v1368 = vsel %vm784, %v1349, 0
        %v1371 = vsel %vm784, %v1350, 0
        %v1374 = vsel %vm784, %v1351, 0
        %v1377 = vsel %vm809, %v703, 0
        %1379 = vmatprep.subr.bf16.mxu0 0
        %1380 = vmatpush1.bf16.msra.mxu0 0
        %1381 = vmatprep.subr.bf16.mxu0 0
        %1382 = vmatpush1.bf16.msra.mxu0 0
        %1383 = vmatprep.subr.bf16.mxu0 0
        %1384 = vmatpush1.bf16.msra.mxu0 0
        %1385 = vmatprep.subr.bf16.mxu0 0
        %1386 = vmatpush1.bf16.msra.mxu0 0
        %1387 = vmatprep.subr.bf16.mxu0 0
        %1388 = vmatpush1.bf16.msra.mxu0 0
        %1389 = vmatprep.subr.bf16.mxu0 0
        %1390 = vmatpush1.bf16.msra.mxu0 0
        %1391 = vmatprep.subr.bf16.mxu0 0
        %1392 = vmatpush1.bf16.msra.mxu0 0
        %1393 = vmatprep.subr.bf16.mxu0 0
        %1394 = vmatpush1.bf16.msra.mxu0 %v1377
        %1395 = vmatprep.subr.bf16.mxu0 0
        %1396 = vmatpush2.bf16.msra.mxu0 0
        %1397 = vmatprep.subr.bf16.mxu0 0
        %1398 = vmatpush2.bf16.msra.mxu0 0
        %1399 = vmatprep.subr.bf16.mxu0 0
        %1400 = vmatpush2.bf16.msra.mxu0 0
        %1401 = vmatprep.subr.bf16.mxu0 0
        %1402 = vmatpush2.bf16.msra.mxu0 0
        %1403 = vmatprep.subr.bf16.mxu0 0
        %1404 = vmatpush2.bf16.msra.mxu0 0
        %1405 = vmatprep.subr.bf16.mxu0 0
        %1406 = vmatpush2.bf16.msra.mxu0 0
        %1407 = vmatprep.subr.bf16.mxu0 0
        %1408 = vmatpush2.bf16.msra.mxu0 0
        %1409 = vmatprep.subr.bf16.mxu0 0
        %1410 = vmatpush2.bf16.msra.mxu0 0
        %1411 = vmatprep.mubr.bf16.mxu0 0
        %1412 = vmatmul.mubr.bf16.gmra.mxu0 %v1353
        %v1413 = vpop.f32.mrf.mxu0
        %v1414 = vadd.f32 %v1266, %v1413
        %v1415 = vpop.f32.mrf.mxu0
        %v1416 = vpop.f32.mrf.mxu0
        %v1417 = vadd.f32 %v1269, %v1416
        %v1418 = vpop.f32.mrf.mxu0
        %1419 = vmatprep.mubr.bf16.mxu0 0
        %1420 = vmatmul.mubr.bf16.gmra.mxu0 %v1356
        %v1421 = vpop.f32.mrf.mxu0
        %v1422 = vadd.f32 %v1274, %v1421
        %v1423 = vpop.f32.mrf.mxu0
        %v1424 = vpop.f32.mrf.mxu0
        %v1425 = vadd.f32 %v1277, %v1424
        %v1426 = vpop.f32.mrf.mxu0
        %1427 = vmatprep.mubr.bf16.mxu0 0
        %1428 = vmatmul.mubr.bf16.gmra.mxu0 %v1359
        %v1429 = vpop.f32.mrf.mxu0
        %v1430 = vadd.f32 %v1282, %v1429
        %v1431 = vpop.f32.mrf.mxu0
        %v1432 = vpop.f32.mrf.mxu0
        %v1433 = vadd.f32 %v1285, %v1432
        %v1434 = vpop.f32.mrf.mxu0
        %1435 = vmatprep.mubr.bf16.mxu0 0
        %1436 = vmatmul.mubr.bf16.gmra.mxu0 %v1362
        %v1437 = vpop.f32.mrf.mxu0
        %v1438 = vadd.f32 %v1290, %v1437
        %v1439 = vpop.f32.mrf.mxu0
        %v1440 = vpop.f32.mrf.mxu0
        %v1441 = vadd.f32 %v1293, %v1440
        %v1442 = vpop.f32.mrf.mxu0
        %1443 = vmatprep.mubr.bf16.mxu0 0
        %1444 = vmatmul.mubr.bf16.gmra.mxu0 %v1365
        %v1445 = vpop.f32.mrf.mxu0
        %v1446 = vadd.f32 %v1298, %v1445
        %v1447 = vpop.f32.mrf.mxu0
        %v1448 = vpop.f32.mrf.mxu0
        %v1449 = vadd.f32 %v1301, %v1448
        %v1450 = vpop.f32.mrf.mxu0
        %1451 = vmatprep.mubr.bf16.mxu0 0
        %1452 = vmatmul.mubr.bf16.gmra.mxu0 %v1368
        %v1453 = vpop.f32.mrf.mxu0
        %v1454 = vadd.f32 %v1306, %v1453
        %v1455 = vpop.f32.mrf.mxu0
        %v1456 = vpop.f32.mrf.mxu0
        %v1457 = vadd.f32 %v1309, %v1456
        %v1458 = vpop.f32.mrf.mxu0
        %1459 = vmatprep.mubr.bf16.mxu0 0
        %1460 = vmatmul.mubr.bf16.gmra.mxu0 %v1371
        %v1461 = vpop.f32.mrf.mxu0
        %v1462 = vadd.f32 %v1314, %v1461
        %v1463 = vpop.f32.mrf.mxu0
        %v1464 = vpop.f32.mrf.mxu0
        %v1465 = vadd.f32 %v1317, %v1464
        %v1466 = vpop.f32.mrf.mxu0
        %1467 = vmatprep.mubr.bf16.mxu0 0
        %1468 = vmatmul.mubr.bf16.gmra.mxu0 %v1374
        %v1469 = vpop.f32.mrf.mxu0
        %v1470 = vadd.f32 %v1322, %v1469
        %v1471 = vpop.f32.mrf.mxu0
        %v1472 = vpop.f32.mrf.mxu0
        %v1473 = vadd.f32 %v1325, %v1472
        %v1474 = vpop.f32.mrf.mxu0
        %1475 = vdwg.mxu0
        %v1477 = vsel %vm809, %v705, 0
        %1479 = vmatprep.subr.bf16.mxu0 0
        %1480 = vmatpush1.bf16.msra.mxu0 0
        %1481 = vmatprep.subr.bf16.mxu0 0
        %1482 = vmatpush1.bf16.msra.mxu0 0
        %1483 = vmatprep.subr.bf16.mxu0 0
        %1484 = vmatpush1.bf16.msra.mxu0 0
        %1485 = vmatprep.subr.bf16.mxu0 0
        %1486 = vmatpush1.bf16.msra.mxu0 0
        %1487 = vmatprep.subr.bf16.mxu0 0
        %1488 = vmatpush1.bf16.msra.mxu0 0
        %1489 = vmatprep.subr.bf16.mxu0 0
        %1490 = vmatpush1.bf16.msra.mxu0 0
        %1491 = vmatprep.subr.bf16.mxu0 0
        %1492 = vmatpush1.bf16.msra.mxu0 0
        %1493 = vmatprep.subr.bf16.mxu0 0
        %1494 = vmatpush1.bf16.msra.mxu0 %v1477
        %1495 = vmatprep.subr.bf16.mxu0 0
        %1496 = vmatpush2.bf16.msra.mxu0 0
        %1497 = vmatprep.subr.bf16.mxu0 0
        %1498 = vmatpush2.bf16.msra.mxu0 0
        %1499 = vmatprep.subr.bf16.mxu0 0
        %1500 = vmatpush2.bf16.msra.mxu0 0
        %1501 = vmatprep.subr.bf16.mxu0 0
        %1502 = vmatpush2.bf16.msra.mxu0 0
        %1503 = vmatprep.subr.bf16.mxu0 0
        %1504 = vmatpush2.bf16.msra.mxu0 0
        %1505 = vmatprep.subr.bf16.mxu0 0
        %1506 = vmatpush2.bf16.msra.mxu0 0
        %1507 = vmatprep.subr.bf16.mxu0 0
        %1508 = vmatpush2.bf16.msra.mxu0 0
        %1509 = vmatprep.subr.bf16.mxu0 0
        %1510 = vmatpush2.bf16.msra.mxu0 0
        %1511 = vmatprep.mubr.bf16.mxu0 0
        %1512 = vmatmul.mubr.bf16.gmra.mxu0 %v786
        %v1513 = vpop.f32.mrf.mxu0
        %v1514 = vadd.f32 0.0, %v1513
        %v1515 = vpop.f32.mrf.mxu0
        %v1516 = vpop.f32.mrf.mxu0
        %v1517 = vadd.f32 0.0, %v1516
        %v1518 = vpop.f32.mrf.mxu0
        %1519 = vmatprep.mubr.bf16.mxu0 0
        %1520 = vmatmul.mubr.bf16.gmra.mxu0 %v789
        %v1521 = vpop.f32.mrf.mxu0
        %v1522 = vadd.f32 0.0, %v1521
        %v1523 = vpop.f32.mrf.mxu0
        %v1524 = vpop.f32.mrf.mxu0
        %v1525 = vadd.f32 0.0, %v1524
        %v1526 = vpop.f32.mrf.mxu0
        %1527 = vmatprep.mubr.bf16.mxu0 0
        %1528 = vmatmul.mubr.bf16.gmra.mxu0 %v792
        %v1529 = vpop.f32.mrf.mxu0
        %v1530 = vadd.f32 0.0, %v1529
        %v1531 = vpop.f32.mrf.mxu0
        %v1532 = vpop.f32.mrf.mxu0
        %v1533 = vadd.f32 0.0, %v1532
        %v1534 = vpop.f32.mrf.mxu0
        %1535 = vmatprep.mubr.bf16.mxu0 0
        %1536 = vmatmul.mubr.bf16.gmra.mxu0 %v795
        %v1537 = vpop.f32.mrf.mxu0
        %v1538 = vadd.f32 0.0, %v1537
        %v1539 = vpop.f32.mrf.mxu0
        %v1540 = vpop.f32.mrf.mxu0
        %v1541 = vadd.f32 0.0, %v1540
        %v1542 = vpop.f32.mrf.mxu0
        %1543 = vmatprep.mubr.bf16.mxu0 0
        %1544 = vmatmul.mubr.bf16.gmra.mxu0 %v798
        %v1545 = vpop.f32.mrf.mxu0
        %v1546 = vadd.f32 0.0, %v1545
        %v1547 = vpop.f32.mrf.mxu0
        %v1548 = vpop.f32.mrf.mxu0
        %v1549 = vadd.f32 0.0, %v1548
        %v1550 = vpop.f32.mrf.mxu0
        %1551 = vmatprep.mubr.bf16.mxu0 0
        %1552 = vmatmul.mubr.bf16.gmra.mxu0 %v801
        %v1553 = vpop.f32.mrf.mxu0
        %v1554 = vadd.f32 0.0, %v1553
        %v1555 = vpop.f32.mrf.mxu0
        %v1556 = vpop.f32.mrf.mxu0
        %v1557 = vadd.f32 0.0, %v1556
        %v1558 = vpop.f32.mrf.mxu0
        %1559 = vmatprep.mubr.bf16.mxu0 0
        %1560 = vmatmul.mubr.bf16.gmra.mxu0 %v804
        %v1561 = vpop.f32.mrf.mxu0
        %v1562 = vadd.f32 0.0, %v1561
        %v1563 = vpop.f32.mrf.mxu0
        %v1564 = vpop.f32.mrf.mxu0
        %v1565 = vadd.f32 0.0, %v1564
        %v1566 = vpop.f32.mrf.mxu0
        %1567 = vmatprep.mubr.bf16.mxu0 0
        %1568 = vmatmul.mubr.bf16.gmra.mxu0 %v807
        %v1569 = vpop.f32.mrf.mxu0
        %v1570 = vadd.f32 0.0, %v1569
        %v1571 = vpop.f32.mrf.mxu0
        %v1572 = vpop.f32.mrf.mxu0
        %v1573 = vadd.f32 0.0, %v1572
        %v1574 = vpop.f32.mrf.mxu0
        %1575 = vdwg.mxu0
        %v1576 = vadd.f32 %v1414, %v1514
        %v1577 = vadd.f32 %v1417, %v1517
        %v1578 = vadd.f32 %v1422, %v1522
        %v1579 = vadd.f32 %v1425, %v1525
        %v1580 = vadd.f32 %v1430, %v1530
        %v1581 = vadd.f32 %v1433, %v1533
        %v1582 = vadd.f32 %v1438, %v1538
        %v1583 = vadd.f32 %v1441, %v1541
        %v1584 = vadd.f32 %v1446, %v1546
        %v1585 = vadd.f32 %v1449, %v1549
        %v1586 = vadd.f32 %v1454, %v1554
        %v1587 = vadd.f32 %v1457, %v1557
        %v1588 = vadd.f32 %v1462, %v1562
        %v1589 = vadd.f32 %v1465, %v1565
        %v1590 = vadd.f32 %v1470, %v1570
        %v1591 = vadd.f32 %v1473, %v1573
        %v1593 = vlaneseq
        %v1594 = vshrl.u32 %v1593, 7
        %v1595 = vsub.s32 0, %v1594
        %v1596 = vrot.slane %v706, %v1595
        %v1598 = vadd.f32 %v1576, %v1596
        %v1599 = vadd.f32 %v1577, %v1596
        %v1600 = vadd.f32 %v1578, %v1596
        %v1601 = vadd.f32 %v1579, %v1596
        %v1602 = vadd.f32 %v1580, %v1596
        %v1603 = vadd.f32 %v1581, %v1596
        %v1604 = vadd.f32 %v1582, %v1596
        %v1605 = vadd.f32 %v1583, %v1596
        %v1606 = vadd.f32 %v1584, %v1596
        %v1607 = vadd.f32 %v1585, %v1596
        %v1608 = vadd.f32 %v1586, %v1596
        %v1609 = vadd.f32 %v1587, %v1596
        %v1610 = vadd.f32 %v1588, %v1596
        %v1611 = vadd.f32 %v1589, %v1596
        %v1612 = vadd.f32 %v1590, %v1596
        %v1613 = vadd.f32 %v1591, %v1596
        %v1614 = vmax.f32 %v1598, 0.0
        %v1615 = vmax.f32 %v1599, 0.0
        %v1616 = vmax.f32 %v1600, 0.0
        %v1617 = vmax.f32 %v1601, 0.0
        %v1618 = vmax.f32 %v1602, 0.0
        %v1619 = vmax.f32 %v1603, 0.0
        %v1620 = vmax.f32 %v1604, 0.0
        %v1621 = vmax.f32 %v1605, 0.0
        %v1622 = vmax.f32 %v1606, 0.0
        %v1623 = vmax.f32 %v1607, 0.0
        %v1624 = vmax.f32 %v1608, 0.0
        %v1625 = vmax.f32 %v1609, 0.0
        %v1626 = vmax.f32 %v1610, 0.0
        %v1627 = vmax.f32 %v1611, 0.0
        %v1628 = vmax.f32 %v1612, 0.0
        %v1629 = vmax.f32 %v1613, 0.0
        %v1630 = vpack.c.bf16 %v1615, %v1614
        %v1631 = vpack.c.bf16 %v1617, %v1616
        %v1632 = vpack.c.bf16 %v1619, %v1618
        %v1633 = vpack.c.bf16 %v1621, %v1620
        %v1634 = vpack.c.bf16 %v1623, %v1622
        %v1635 = vpack.c.bf16 %v1625, %v1624
        %v1636 = vpack.c.bf16 %v1627, %v1626
        %v1637 = vpack.c.bf16 %v1629, %v1628
        %v1646 = vunpack.c.l.b16 %v1630
        %v1647 = vunpack.c.h.b16 %v1630
        %v1648 = vunpack.c.l.b16 %v1631
        %v1649 = vunpack.c.h.b16 %v1631
        %v1650 = vunpack.c.l.b16 %v1632
        %v1651 = vunpack.c.h.b16 %v1632
        %v1652 = vunpack.c.l.b16 %v1633
        %v1653 = vunpack.c.h.b16 %v1633
        %v1654 = vunpack.c.l.b16 %v1634
        %v1655 = vunpack.c.h.b16 %v1634
        %v1656 = vunpack.c.l.b16 %v1635
        %v1657 = vunpack.c.h.b16 %v1635
        %v1658 = vunpack.c.l.b16 %v1636
        %v1659 = vunpack.c.h.b16 %v1636
        %v1660 = vunpack.c.l.b16 %v1637
        %v1661 = vunpack.c.h.b16 %v1637
        %v1662 = vpack.c.b16 %v1646, %v1646
        %v1663 = vpack.c.b16 %v1647, %v1647
        %v1664 = vpack.c.b16 %v1648, %v1648
        %v1665 = vpack.c.b16 %v1649, %v1649
        %v1666 = vpack.c.b16 %v1650, %v1650
        %v1667 = vpack.c.b16 %v1651, %v1651
        %v1668 = vpack.c.b16 %v1652, %v1652
        %v1669 = vpack.c.b16 %v1653, %v1653
        %v1670 = vpack.c.b16 %v1654, %v1654
        %v1671 = vpack.c.b16 %v1655, %v1655
        %v1672 = vpack.c.b16 %v1656, %v1656
        %v1673 = vpack.c.b16 %v1657, %v1657
        %v1674 = vpack.c.b16 %v1658, %v1658
        %v1675 = vpack.c.b16 %v1659, %v1659
        %v1676 = vpack.c.b16 %v1660, %v1660
        %v1677 = vpack.c.b16 %v1661, %v1661
        %1694 = vst.msk [vmem:[#allocation2 + $0x4] sm:$0xf] %vm661, %v1662
        %1695 = vst.msk [vmem:[#allocation2 + $0x8] sm:$0xf] %vm661, %v1663
        %1696 = vst.msk [vmem:[#allocation2 + $0x10] sm:$0xf] %vm661, %v1664
        %1697 = vst.msk [vmem:[#allocation2 + $0x14] sm:$0xf] %vm661, %v1665
        %1698 = vst.msk [vmem:[#allocation2 + $0x1c] sm:$0xf] %vm661, %v1666
        %1699 = vst.msk [vmem:[#allocation2 + $0x20] sm:$0xf] %vm661, %v1667
        %1700 = vst.msk [vmem:[#allocation2 + $0x28] sm:$0xf] %vm661, %v1668
        %1701 = vst.msk [vmem:[#allocation2 + $0x2c] sm:$0xf] %vm661, %v1669
        %1702 = vst.msk [vmem:[#allocation2 + $0x34] sm:$0xf] %vm661, %v1670
        %1703 = vst.msk [vmem:[#allocation2 + $0x38] sm:$0xf] %vm661, %v1671
        %1704 = vst.msk [vmem:[#allocation2 + $0x40] sm:$0xf] %vm661, %v1672
        %1705 = vst.msk [vmem:[#allocation2 + $0x44] sm:$0xf] %vm661, %v1673
        %1706 = vst.msk [vmem:[#allocation2 + $0x4c] sm:$0xf] %vm661, %v1674
        %1707 = vst.msk [vmem:[#allocation2 + $0x50] sm:$0xf] %vm661, %v1675
        %1708 = vst.msk [vmem:[#allocation2 + $0x58] sm:$0xf] %vm661, %v1676
        %1709 = vst.msk [vmem:[#allocation2 + $0x5c] sm:$0xf] %vm661, %v1677
        %v1710 = vld [vmem:[#allocation2] sm:$0x8]
        %v1711 = vld [vmem:[#allocation2 + $0x4] sm:$0xf]
        %v1712 = vld [vmem:[#allocation2 + $0x8] sm:$0x7]
        %v1713 = vld [vmem:[#allocation2 + $0xc] sm:$0x8]
        %v1714 = vld [vmem:[#allocation2 + $0x10] sm:$0xf]
        %v1715 = vld [vmem:[#allocation2 + $0x14] sm:$0x7]
        %v1716 = vld [vmem:[#allocation2 + $0x18] sm:$0x8]
        %v1717 = vld [vmem:[#allocation2 + $0x1c] sm:$0xf]
        %v1718 = vld [vmem:[#allocation2 + $0x20] sm:$0x7]
        %v1719 = vld [vmem:[#allocation2 + $0x24] sm:$0x8]
        %v1720 = vld [vmem:[#allocation2 + $0x28] sm:$0xf]
        %v1721 = vld [vmem:[#allocation2 + $0x2c] sm:$0x7]
        %v1722 = vld [vmem:[#allocation2 + $0x30] sm:$0x8]
        %v1723 = vld [vmem:[#allocation2 + $0x34] sm:$0xf]
        %v1724 = vld [vmem:[#allocation2 + $0x38] sm:$0x7]
        %v1725 = vld [vmem:[#allocation2 + $0x3c] sm:$0x8]
        %v1726 = vld [vmem:[#allocation2 + $0x40] sm:$0xf]
        %v1727 = vld [vmem:[#allocation2 + $0x44] sm:$0x7]
        %v1728 = vld [vmem:[#allocation2 + $0x48] sm:$0x8]
        %v1729 = vld [vmem:[#allocation2 + $0x4c] sm:$0xf]
        %v1730 = vld [vmem:[#allocation2 + $0x50] sm:$0x7]
        %v1731 = vld [vmem:[#allocation2 + $0x54] sm:$0x8]
        %v1732 = vld [vmem:[#allocation2 + $0x58] sm:$0xf]
        %v1733 = vld [vmem:[#allocation2 + $0x5c] sm:$0x7]
        %v1758 = vrot.slane %v1710, 7
        %v1759 = vrot.slane %v1758, 4
        %v1760 = vrot.slane %v1711, 7
        %v1761 = vsel %vm944, %v1759, %v1760
        %v1762 = vrot.slane %v1760, 4
        %v1763 = vrot.slane %v1712, 7
        %v1764 = vsel %vm944, %v1762, %v1763
        %v1765 = vrot.slane %v1713, 7
        %v1766 = vrot.slane %v1765, 4
        %v1767 = vrot.slane %v1714, 7
        %v1768 = vsel %vm944, %v1766, %v1767
        %v1769 = vrot.slane %v1767, 4
        %v1770 = vrot.slane %v1715, 7
        %v1771 = vsel %vm944, %v1769, %v1770
        %v1772 = vrot.slane %v1716, 7
        %v1773 = vrot.slane %v1772, 4
        %v1774 = vrot.slane %v1717, 7
        %v1775 = vsel %vm944, %v1773, %v1774
        %v1776 = vrot.slane %v1774, 4
        %v1777 = vrot.slane %v1718, 7
        %v1778 = vsel %vm944, %v1776, %v1777
        %v1779 = vrot.slane %v1719, 7
        %v1780 = vrot.slane %v1779, 4
        %v1781 = vrot.slane %v1720, 7
        %v1782 = vsel %vm944, %v1780, %v1781
        %v1783 = vrot.slane %v1781, 4
        %v1784 = vrot.slane %v1721, 7
        %v1785 = vsel %vm944, %v1783, %v1784
        %v1786 = vrot.slane %v1722, 7
        %v1787 = vrot.slane %v1786, 4
        %v1788 = vrot.slane %v1723, 7
        %v1789 = vsel %vm944, %v1787, %v1788
        %v1790 = vrot.slane %v1788, 4
        %v1791 = vrot.slane %v1724, 7
        %v1792 = vsel %vm944, %v1790, %v1791
        %v1793 = vrot.slane %v1725, 7
        %v1794 = vrot.slane %v1793, 4
        %v1795 = vrot.slane %v1726, 7
        %v1796 = vsel %vm944, %v1794, %v1795
        %v1797 = vrot.slane %v1795, 4
        %v1798 = vrot.slane %v1727, 7
        %v1799 = vsel %vm944, %v1797, %v1798
        %v1800 = vrot.slane %v1728, 7
        %v1801 = vrot.slane %v1800, 4
        %v1802 = vrot.slane %v1729, 7
        %v1803 = vsel %vm944, %v1801, %v1802
        %v1804 = vrot.slane %v1802, 4
        %v1805 = vrot.slane %v1730, 7
        %v1806 = vsel %vm944, %v1804, %v1805
        %v1807 = vrot.slane %v1731, 7
        %v1808 = vrot.slane %v1807, 4
        %v1809 = vrot.slane %v1732, 7
        %v1810 = vsel %vm944, %v1808, %v1809
        %v1811 = vrot.slane %v1809, 4
        %v1812 = vrot.slane %v1733, 7
        %v1813 = vsel %vm944, %v1811, %v1812
        %v1814 = vld [vmem:[#allocation2 + $0x8] sm:$0xf]
        %v1815 = vld [vmem:[#allocation2 + $0x14] sm:$0xf]
        %v1816 = vld [vmem:[#allocation2 + $0x20] sm:$0xf]
        %v1817 = vld [vmem:[#allocation2 + $0x2c] sm:$0xf]
        %v1818 = vld [vmem:[#allocation2 + $0x38] sm:$0xf]
        %v1819 = vld [vmem:[#allocation2 + $0x44] sm:$0xf]
        %v1820 = vld [vmem:[#allocation2 + $0x50] sm:$0xf]
        %v1821 = vld [vmem:[#allocation2 + $0x5c] sm:$0xf]
        %v1823 = vshrl.u32 %v1710, 16
        %v1825 = vrot.slane %v1823, 7
        %v1826 = vrot.slane %v1825, 4
        %v1828 = vshrl.u32 %v1711, 16
        %v1830 = vrot.slane %v1828, 7
        %v1831 = vshll.u32 %v1711, 16
        %v1833 = vor.u32 %v1830, %v1831
        %v1834 = vsel %vm1003, %v1826, %v1833
        %v1835 = vrot.slane %v1830, 4
        %v1837 = vshrl.u32 %v1814, 16
        %v1839 = vrot.slane %v1837, 7
        %v1840 = vshll.u32 %v1814, 16
        %v1842 = vor.u32 %v1839, %v1840
        %v1843 = vsel %vm1003, %v1835, %v1842
        %v1845 = vshrl.u32 %v1713, 16
        %v1847 = vrot.slane %v1845, 7
        %v1848 = vrot.slane %v1847, 4
        %v1850 = vshrl.u32 %v1714, 16
        %v1852 = vrot.slane %v1850, 7
        %v1853 = vshll.u32 %v1714, 16
        %v1855 = vor.u32 %v1852, %v1853
        %v1856 = vsel %vm1003, %v1848, %v1855
        %v1857 = vrot.slane %v1852, 4
        %v1859 = vshrl.u32 %v1815, 16
        %v1861 = vrot.slane %v1859, 7
        %v1862 = vshll.u32 %v1815, 16
        %v1864 = vor.u32 %v1861, %v1862
        %v1865 = vsel %vm1003, %v1857, %v1864
        %v1867 = vshrl.u32 %v1716, 16
        %v1869 = vrot.slane %v1867, 7
        %v1870 = vrot.slane %v1869, 4
        %v1872 = vshrl.u32 %v1717, 16
        %v1874 = vrot.slane %v1872, 7
        %v1875 = vshll.u32 %v1717, 16
        %v1877 = vor.u32 %v1874, %v1875
        %v1878 = vsel %vm1003, %v1870, %v1877
        %v1879 = vrot.slane %v1874, 4
        %v1881 = vshrl.u32 %v1816, 16
        %v1883 = vrot.slane %v1881, 7
        %v1884 = vshll.u32 %v1816, 16
        %v1886 = vor.u32 %v1883, %v1884
        %v1887 = vsel %vm1003, %v1879, %v1886
        %v1889 = vshrl.u32 %v1719, 16
        %v1891 = vrot.slane %v1889, 7
        %v1892 = vrot.slane %v1891, 4
        %v1894 = vshrl.u32 %v1720, 16
        %v1896 = vrot.slane %v1894, 7
        %v1897 = vshll.u32 %v1720, 16
        %v1899 = vor.u32 %v1896, %v1897
        %v1900 = vsel %vm1003, %v1892, %v1899
        %v1901 = vrot.slane %v1896, 4
        %v1903 = vshrl.u32 %v1817, 16
        %v1905 = vrot.slane %v1903, 7
        %v1906 = vshll.u32 %v1817, 16
        %v1908 = vor.u32 %v1905, %v1906
        %v1909 = vsel %vm1003, %v1901, %v1908
        %v1911 = vshrl.u32 %v1722, 16
        %v1913 = vrot.slane %v1911, 7
        %v1914 = vrot.slane %v1913, 4
        %v1916 = vshrl.u32 %v1723, 16
        %v1918 = vrot.slane %v1916, 7
        %v1919 = vshll.u32 %v1723, 16
        %v1921 = vor.u32 %v1918, %v1919
        %v1922 = vsel %vm1003, %v1914, %v1921
        %v1923 = vrot.slane %v1918, 4
        %v1925 = vshrl.u32 %v1818, 16
        %v1927 = vrot.slane %v1925, 7
        %v1928 = vshll.u32 %v1818, 16
        %v1930 = vor.u32 %v1927, %v1928
        %v1931 = vsel %vm1003, %v1923, %v1930
        %v1933 = vshrl.u32 %v1725, 16
        %v1935 = vrot.slane %v1933, 7
        %v1936 = vrot.slane %v1935, 4
        %v1938 = vshrl.u32 %v1726, 16
        %v1940 = vrot.slane %v1938, 7
        %v1941 = vshll.u32 %v1726, 16
        %v1943 = vor.u32 %v1940, %v1941
        %v1944 = vsel %vm1003, %v1936, %v1943
        %v1945 = vrot.slane %v1940, 4
        %v1947 = vshrl.u32 %v1819, 16
        %v1949 = vrot.slane %v1947, 7
        %v1950 = vshll.u32 %v1819, 16
        %v1952 = vor.u32 %v1949, %v1950
        %v1953 = vsel %vm1003, %v1945, %v1952
        %v1955 = vshrl.u32 %v1728, 16
        %v1957 = vrot.slane %v1955, 7
        %v1958 = vrot.slane %v1957, 4
        %v1960 = vshrl.u32 %v1729, 16
        %v1962 = vrot.slane %v1960, 7
        %v1963 = vshll.u32 %v1729, 16
        %v1965 = vor.u32 %v1962, %v1963
        %v1966 = vsel %vm1003, %v1958, %v1965
        %v1967 = vrot.slane %v1962, 4
        %v1969 = vshrl.u32 %v1820, 16
        %v1971 = vrot.slane %v1969, 7
        %v1972 = vshll.u32 %v1820, 16
        %v1974 = vor.u32 %v1971, %v1972
        %v1975 = vsel %vm1003, %v1967, %v1974
        %v1977 = vshrl.u32 %v1731, 16
        %v1979 = vrot.slane %v1977, 7
        %v1980 = vrot.slane %v1979, 4
        %v1982 = vshrl.u32 %v1732, 16
        %v1984 = vrot.slane %v1982, 7
        %v1985 = vshll.u32 %v1732, 16
        %v1987 = vor.u32 %v1984, %v1985
        %v1988 = vsel %vm1003, %v1980, %v1987
        %v1989 = vrot.slane %v1984, 4
        %v1991 = vshrl.u32 %v1821, 16
        %v1993 = vrot.slane %v1991, 7
        %v1994 = vshll.u32 %v1821, 16
        %v1996 = vor.u32 %v1993, %v1994
        %v1997 = vsel %vm1003, %v1989, %v1996
        %v1998 = vunpack.c.l.b16 %v1834
        %v1999 = vunpack.c.l.b16 %v1843
        %v2000 = vunpack.c.l.b16 %v1856
        %v2001 = vunpack.c.l.b16 %v1865
        %v2002 = vunpack.c.l.b16 %v1878
        %v2003 = vunpack.c.l.b16 %v1887
        %v2004 = vunpack.c.l.b16 %v1900
        %v2005 = vunpack.c.l.b16 %v1909
        %v2006 = vunpack.c.l.b16 %v1922
        %v2007 = vunpack.c.l.b16 %v1931
        %v2008 = vunpack.c.l.b16 %v1944
        %v2009 = vunpack.c.l.b16 %v1953
        %v2010 = vunpack.c.l.b16 %v1966
        %v2011 = vunpack.c.l.b16 %v1975
        %v2012 = vunpack.c.l.b16 %v1988
        %v2013 = vunpack.c.l.b16 %v1997
        %v2014 = vpack.c.b16 %v1999, %v1998
        %v2015 = vpack.c.b16 %v2001, %v2000
        %v2016 = vpack.c.b16 %v2003, %v2002
        %v2017 = vpack.c.b16 %v2005, %v2004
        %v2018 = vpack.c.b16 %v2007, %v2006
        %v2019 = vpack.c.b16 %v2009, %v2008
        %v2020 = vpack.c.b16 %v2011, %v2010
        %v2021 = vpack.c.b16 %v2013, %v2012
        %v2026 = vunpack.c.l.b16 %v711
        %v2027 = vunpack.c.l.b16 %v712
        %v2028 = vunpack.c.l.b16 %v713
        %v2029 = vunpack.c.l.b16 %v714
        %v2030 = vpack.c.b16 %v2027, %v2026
        %v2031 = vpack.c.b16 %v2029, %v2028
        %vm2034 = vcmask 261120
        %v2036 = vsel %vm2034, %v2014, 0
        %v2039 = vsel %vm2034, %v2015, 0
        %v2042 = vsel %vm2034, %v2016, 0
        %v2045 = vsel %vm2034, %v2017, 0
        %v2048 = vsel %vm2034, %v2018, 0
        %v2051 = vsel %vm2034, %v2019, 0
        %v2054 = vsel %vm2034, %v2020, 0
        %v2057 = vsel %vm2034, %v2021, 0
        %2059 = vmatprep.subr.bf16.mxu0 0
        %2060 = vmatpush1.bf16.msra.mxu0 0
        %2061 = vmatprep.subr.bf16.mxu0 0
        %2062 = vmatpush1.bf16.msra.mxu0 0
        %2063 = vmatprep.subr.bf16.mxu0 0
        %2064 = vmatpush1.bf16.msra.mxu0 0
        %2065 = vmatprep.subr.bf16.mxu0 0
        %2066 = vmatpush1.bf16.msra.mxu0 0
        %2067 = vmatprep.subr.bf16.mxu0 0
        %2068 = vmatpush1.bf16.msra.mxu0 0
        %2069 = vmatprep.subr.bf16.mxu0 0
        %2070 = vmatpush1.bf16.msra.mxu0 0
        %2071 = vmatprep.subr.bf16.mxu0 0
        %2072 = vmatpush1.bf16.msra.mxu0 %v2031
        %2073 = vmatprep.subr.bf16.mxu0 0
        %2074 = vmatpush1.bf16.msra.mxu0 %v2030
        %2075 = vmatprep.subr.bf16.mxu0 0
        %2076 = vmatpush2.bf16.msra.mxu0 0
        %2077 = vmatprep.subr.bf16.mxu0 0
        %2078 = vmatpush2.bf16.msra.mxu0 0
        %2079 = vmatprep.subr.bf16.mxu0 0
        %2080 = vmatpush2.bf16.msra.mxu0 0
        %2081 = vmatprep.subr.bf16.mxu0 0
        %2082 = vmatpush2.bf16.msra.mxu0 0
        %2083 = vmatprep.subr.bf16.mxu0 0
        %2084 = vmatpush2.bf16.msra.mxu0 0
        %2085 = vmatprep.subr.bf16.mxu0 0
        %2086 = vmatpush2.bf16.msra.mxu0 0
        %2087 = vmatprep.subr.bf16.mxu0 0
        %2088 = vmatpush2.bf16.msra.mxu0 0
        %2089 = vmatprep.subr.bf16.mxu0 0
        %2090 = vmatpush2.bf16.msra.mxu0 0
        %2091 = vmatprep.mubr.bf16.mxu0 0
        %2092 = vmatmul.mubr.bf16.gmra.mxu0 %v2036
        %v2093 = vpop.f32.mrf.mxu0
        %v2094 = vadd.f32 0.0, %v2093
        %v2095 = vpop.f32.mrf.mxu0
        %v2096 = vpop.f32.mrf.mxu0
        %v2097 = vadd.f32 0.0, %v2096
        %v2098 = vpop.f32.mrf.mxu0
        %2099 = vmatprep.mubr.bf16.mxu0 0
        %2100 = vmatmul.mubr.bf16.gmra.mxu0 %v2039
        %v2101 = vpop.f32.mrf.mxu0
        %v2102 = vadd.f32 0.0, %v2101
        %v2103 = vpop.f32.mrf.mxu0
        %v2104 = vpop.f32.mrf.mxu0
        %v2105 = vadd.f32 0.0, %v2104
        %v2106 = vpop.f32.mrf.mxu0
        %2107 = vmatprep.mubr.bf16.mxu0 0
        %2108 = vmatmul.mubr.bf16.gmra.mxu0 %v2042
        %v2109 = vpop.f32.mrf.mxu0
        %v2110 = vadd.f32 0.0, %v2109
        %v2111 = vpop.f32.mrf.mxu0
        %v2112 = vpop.f32.mrf.mxu0
        %v2113 = vadd.f32 0.0, %v2112
        %v2114 = vpop.f32.mrf.mxu0
        %2115 = vmatprep.mubr.bf16.mxu0 0
        %2116 = vmatmul.mubr.bf16.gmra.mxu0 %v2045
        %v2117 = vpop.f32.mrf.mxu0
        %v2118 = vadd.f32 0.0, %v2117
        %v2119 = vpop.f32.mrf.mxu0
        %v2120 = vpop.f32.mrf.mxu0
        %v2121 = vadd.f32 0.0, %v2120
        %v2122 = vpop.f32.mrf.mxu0
        %2123 = vmatprep.mubr.bf16.mxu0 0
        %2124 = vmatmul.mubr.bf16.gmra.mxu0 %v2048
        %v2125 = vpop.f32.mrf.mxu0
        %v2126 = vadd.f32 0.0, %v2125
        %v2127 = vpop.f32.mrf.mxu0
        %v2128 = vpop.f32.mrf.mxu0
        %v2129 = vadd.f32 0.0, %v2128
        %v2130 = vpop.f32.mrf.mxu0
        %2131 = vmatprep.mubr.bf16.mxu0 0
        %2132 = vmatmul.mubr.bf16.gmra.mxu0 %v2051
        %v2133 = vpop.f32.mrf.mxu0
        %v2134 = vadd.f32 0.0, %v2133
        %v2135 = vpop.f32.mrf.mxu0
        %v2136 = vpop.f32.mrf.mxu0
        %v2137 = vadd.f32 0.0, %v2136
        %v2138 = vpop.f32.mrf.mxu0
        %2139 = vmatprep.mubr.bf16.mxu0 0
        %2140 = vmatmul.mubr.bf16.gmra.mxu0 %v2054
        %v2141 = vpop.f32.mrf.mxu0
        %v2142 = vadd.f32 0.0, %v2141
        %v2143 = vpop.f32.mrf.mxu0
        %v2144 = vpop.f32.mrf.mxu0
        %v2145 = vadd.f32 0.0, %v2144
        %v2146 = vpop.f32.mrf.mxu0
        %2147 = vmatprep.mubr.bf16.mxu0 0
        %2148 = vmatmul.mubr.bf16.gmra.mxu0 %v2057
        %v2149 = vpop.f32.mrf.mxu0
        %v2150 = vadd.f32 0.0, %v2149
        %v2151 = vpop.f32.mrf.mxu0
        %v2152 = vpop.f32.mrf.mxu0
        %v2153 = vadd.f32 0.0, %v2152
        %v2154 = vpop.f32.mrf.mxu0
        %2155 = vdwg.mxu0
        %v2156 = vunpack.c.l.b16 %v1761
        %v2157 = vunpack.c.l.b16 %v1764
        %v2158 = vunpack.c.l.b16 %v1768
        %v2159 = vunpack.c.l.b16 %v1771
        %v2160 = vunpack.c.l.b16 %v1775
        %v2161 = vunpack.c.l.b16 %v1778
        %v2162 = vunpack.c.l.b16 %v1782
        %v2163 = vunpack.c.l.b16 %v1785
        %v2164 = vunpack.c.l.b16 %v1789
        %v2165 = vunpack.c.l.b16 %v1792
        %v2166 = vunpack.c.l.b16 %v1796
        %v2167 = vunpack.c.l.b16 %v1799
        %v2168 = vunpack.c.l.b16 %v1803
        %v2169 = vunpack.c.l.b16 %v1806
        %v2170 = vunpack.c.l.b16 %v1810
        %v2171 = vunpack.c.l.b16 %v1813
        %v2172 = vpack.c.b16 %v2157, %v2156
        %v2173 = vpack.c.b16 %v2159, %v2158
        %v2174 = vpack.c.b16 %v2161, %v2160
        %v2175 = vpack.c.b16 %v2163, %v2162
        %v2176 = vpack.c.b16 %v2165, %v2164
        %v2177 = vpack.c.b16 %v2167, %v2166
        %v2178 = vpack.c.b16 %v2169, %v2168
        %v2179 = vpack.c.b16 %v2171, %v2170
        %v2184 = vunpack.c.l.b16 %v707
        %v2185 = vunpack.c.l.b16 %v708
        %v2186 = vunpack.c.l.b16 %v709
        %v2187 = vunpack.c.l.b16 %v710
        %v2188 = vpack.c.b16 %v2185, %v2184
        %v2189 = vpack.c.b16 %v2187, %v2186
        %v2193 = vsel %vm2034, %v2172, 0
        %v2196 = vsel %vm2034, %v2173, 0
        %v2199 = vsel %vm2034, %v2174, 0
        %v2202 = vsel %vm2034, %v2175, 0
        %v2205 = vsel %vm2034, %v2176, 0
        %v2208 = vsel %vm2034, %v2177, 0
        %v2211 = vsel %vm2034, %v2178, 0
        %v2214 = vsel %vm2034, %v2179, 0
        %2216 = vmatprep.subr.bf16.mxu0 0
        %2217 = vmatpush1.bf16.msra.mxu0 0
        %2218 = vmatprep.subr.bf16.mxu0 0
        %2219 = vmatpush1.bf16.msra.mxu0 0
        %2220 = vmatprep.subr.bf16.mxu0 0
        %2221 = vmatpush1.bf16.msra.mxu0 0
        %2222 = vmatprep.subr.bf16.mxu0 0
        %2223 = vmatpush1.bf16.msra.mxu0 0
        %2224 = vmatprep.subr.bf16.mxu0 0
        %2225 = vmatpush1.bf16.msra.mxu0 0
        %2226 = vmatprep.subr.bf16.mxu0 0
        %2227 = vmatpush1.bf16.msra.mxu0 0
        %2228 = vmatprep.subr.bf16.mxu0 0
        %2229 = vmatpush1.bf16.msra.mxu0 %v2189
        %2230 = vmatprep.subr.bf16.mxu0 0
        %2231 = vmatpush1.bf16.msra.mxu0 %v2188
        %2232 = vmatprep.subr.bf16.mxu0 0
        %2233 = vmatpush2.bf16.msra.mxu0 0
        %2234 = vmatprep.subr.bf16.mxu0 0
        %2235 = vmatpush2.bf16.msra.mxu0 0
        %2236 = vmatprep.subr.bf16.mxu0 0
        %2237 = vmatpush2.bf16.msra.mxu0 0
        %2238 = vmatprep.subr.bf16.mxu0 0
        %2239 = vmatpush2.bf16.msra.mxu0 0
        %2240 = vmatprep.subr.bf16.mxu0 0
        %2241 = vmatpush2.bf16.msra.mxu0 0
        %2242 = vmatprep.subr.bf16.mxu0 0
        %2243 = vmatpush2.bf16.msra.mxu0 0
        %2244 = vmatprep.subr.bf16.mxu0 0
        %2245 = vmatpush2.bf16.msra.mxu0 0
        %2246 = vmatprep.subr.bf16.mxu0 0
        %2247 = vmatpush2.bf16.msra.mxu0 0
        %2248 = vmatprep.mubr.bf16.mxu0 0
        %2249 = vmatmul.mubr.bf16.gmra.mxu0 %v2193
        %v2250 = vpop.f32.mrf.mxu0
        %v2251 = vadd.f32 %v2094, %v2250
        %v2252 = vpop.f32.mrf.mxu0
        %v2253 = vpop.f32.mrf.mxu0
        %v2254 = vadd.f32 %v2097, %v2253
        %v2255 = vpop.f32.mrf.mxu0
        %2256 = vmatprep.mubr.bf16.mxu0 0
        %2257 = vmatmul.mubr.bf16.gmra.mxu0 %v2196
        %v2258 = vpop.f32.mrf.mxu0
        %v2259 = vadd.f32 %v2102, %v2258
        %v2260 = vpop.f32.mrf.mxu0
        %v2261 = vpop.f32.mrf.mxu0
        %v2262 = vadd.f32 %v2105, %v2261
        %v2263 = vpop.f32.mrf.mxu0
        %2264 = vmatprep.mubr.bf16.mxu0 0
        %2265 = vmatmul.mubr.bf16.gmra.mxu0 %v2199
        %v2266 = vpop.f32.mrf.mxu0
        %v2267 = vadd.f32 %v2110, %v2266
        %v2268 = vpop.f32.mrf.mxu0
        %v2269 = vpop.f32.mrf.mxu0
        %v2270 = vadd.f32 %v2113, %v2269
        %v2271 = vpop.f32.mrf.mxu0
        %2272 = vmatprep.mubr.bf16.mxu0 0
        %2273 = vmatmul.mubr.bf16.gmra.mxu0 %v2202
        %v2274 = vpop.f32.mrf.mxu0
        %v2275 = vadd.f32 %v2118, %v2274
        %v2276 = vpop.f32.mrf.mxu0
        %v2277 = vpop.f32.mrf.mxu0
        %v2278 = vadd.f32 %v2121, %v2277
        %v2279 = vpop.f32.mrf.mxu0
        %2280 = vmatprep.mubr.bf16.mxu0 0
        %2281 = vmatmul.mubr.bf16.gmra.mxu0 %v2205
        %v2282 = vpop.f32.mrf.mxu0
        %v2283 = vadd.f32 %v2126, %v2282
        %v2284 = vpop.f32.mrf.mxu0
        %v2285 = vpop.f32.mrf.mxu0
        %v2286 = vadd.f32 %v2129, %v2285
        %v2287 = vpop.f32.mrf.mxu0
        %2288 = vmatprep.mubr.bf16.mxu0 0
        %2289 = vmatmul.mubr.bf16.gmra.mxu0 %v2208
        %v2290 = vpop.f32.mrf.mxu0
        %v2291 = vadd.f32 %v2134, %v2290
        %v2292 = vpop.f32.mrf.mxu0
        %v2293 = vpop.f32.mrf.mxu0
        %v2294 = vadd.f32 %v2137, %v2293
        %v2295 = vpop.f32.mrf.mxu0
        %2296 = vmatprep.mubr.bf16.mxu0 0
        %2297 = vmatmul.mubr.bf16.gmra.mxu0 %v2211
        %v2298 = vpop.f32.mrf.mxu0
        %v2299 = vadd.f32 %v2142, %v2298
        %v2300 = vpop.f32.mrf.mxu0
        %v2301 = vpop.f32.mrf.mxu0
        %v2302 = vadd.f32 %v2145, %v2301
        %v2303 = vpop.f32.mrf.mxu0
        %2304 = vmatprep.mubr.bf16.mxu0 0
        %2305 = vmatmul.mubr.bf16.gmra.mxu0 %v2214
        %v2306 = vpop.f32.mrf.mxu0
        %v2307 = vadd.f32 %v2150, %v2306
        %v2308 = vpop.f32.mrf.mxu0
        %v2309 = vpop.f32.mrf.mxu0
        %v2310 = vadd.f32 %v2153, %v2309
        %v2311 = vpop.f32.mrf.mxu0
        %2312 = vdwg.mxu0
        %v2321 = vunpack.c.l.b16 %v1711
        %v2322 = vunpack.c.l.b16 %v1814
        %v2323 = vunpack.c.l.b16 %v1714
        %v2324 = vunpack.c.l.b16 %v1815
        %v2325 = vunpack.c.l.b16 %v1717
        %v2326 = vunpack.c.l.b16 %v1816
        %v2327 = vunpack.c.l.b16 %v1720
        %v2328 = vunpack.c.l.b16 %v1817
        %v2329 = vunpack.c.l.b16 %v1723
        %v2330 = vunpack.c.l.b16 %v1818
        %v2331 = vunpack.c.l.b16 %v1726
        %v2332 = vunpack.c.l.b16 %v1819
        %v2333 = vunpack.c.l.b16 %v1729
        %v2334 = vunpack.c.l.b16 %v1820
        %v2335 = vunpack.c.l.b16 %v1732
        %v2336 = vunpack.c.l.b16 %v1821
        %v2337 = vpack.c.b16 %v2322, %v2321
        %v2338 = vpack.c.b16 %v2324, %v2323
        %v2339 = vpack.c.b16 %v2326, %v2325
        %v2340 = vpack.c.b16 %v2328, %v2327
        %v2341 = vpack.c.b16 %v2330, %v2329
        %v2342 = vpack.c.b16 %v2332, %v2331
        %v2343 = vpack.c.b16 %v2334, %v2333
        %v2344 = vpack.c.b16 %v2336, %v2335
        %v2349 = vunpack.c.l.b16 %v715
        %v2350 = vunpack.c.l.b16 %v716
        %v2351 = vunpack.c.l.b16 %v717
        %v2352 = vunpack.c.l.b16 %v718
        %v2353 = vpack.c.b16 %v2350, %v2349
        %v2354 = vpack.c.b16 %v2352, %v2351
        %v2358 = vsel %vm2034, %v2337, 0
        %v2361 = vsel %vm2034, %v2338, 0
        %v2364 = vsel %vm2034, %v2339, 0
        %v2367 = vsel %vm2034, %v2340, 0
        %v2370 = vsel %vm2034, %v2341, 0
        %v2373 = vsel %vm2034, %v2342, 0
        %v2376 = vsel %vm2034, %v2343, 0
        %v2379 = vsel %vm2034, %v2344, 0
        %2381 = vmatprep.subr.bf16.mxu0 0
        %2382 = vmatpush1.bf16.msra.mxu0 0
        %2383 = vmatprep.subr.bf16.mxu0 0
        %2384 = vmatpush1.bf16.msra.mxu0 0
        %2385 = vmatprep.subr.bf16.mxu0 0
        %2386 = vmatpush1.bf16.msra.mxu0 0
        %2387 = vmatprep.subr.bf16.mxu0 0
        %2388 = vmatpush1.bf16.msra.mxu0 0
        %2389 = vmatprep.subr.bf16.mxu0 0
        %2390 = vmatpush1.bf16.msra.mxu0 0
        %2391 = vmatprep.subr.bf16.mxu0 0
        %2392 = vmatpush1.bf16.msra.mxu0 0
        %2393 = vmatprep.subr.bf16.mxu0 0
        %2394 = vmatpush1.bf16.msra.mxu0 %v2354
        %2395 = vmatprep.subr.bf16.mxu0 0
        %2396 = vmatpush1.bf16.msra.mxu0 %v2353
        %2397 = vmatprep.subr.bf16.mxu0 0
        %2398 = vmatpush2.bf16.msra.mxu0 0
        %2399 = vmatprep.subr.bf16.mxu0 0
        %2400 = vmatpush2.bf16.msra.mxu0 0
        %2401 = vmatprep.subr.bf16.mxu0 0
        %2402 = vmatpush2.bf16.msra.mxu0 0
        %2403 = vmatprep.subr.bf16.mxu0 0
        %2404 = vmatpush2.bf16.msra.mxu0 0
        %2405 = vmatprep.subr.bf16.mxu0 0
        %2406 = vmatpush2.bf16.msra.mxu0 0
        %2407 = vmatprep.subr.bf16.mxu0 0
        %2408 = vmatpush2.bf16.msra.mxu0 0
        %2409 = vmatprep.subr.bf16.mxu0 0
        %2410 = vmatpush2.bf16.msra.mxu0 0
        %2411 = vmatprep.subr.bf16.mxu0 0
        %2412 = vmatpush2.bf16.msra.mxu0 0
        %2413 = vmatprep.mubr.bf16.mxu0 0
        %2414 = vmatmul.mubr.bf16.gmra.mxu0 %v2358
        %v2415 = vpop.f32.mrf.mxu0
        %v2416 = vadd.f32 0.0, %v2415
        %v2417 = vpop.f32.mrf.mxu0
        %v2418 = vpop.f32.mrf.mxu0
        %v2419 = vadd.f32 0.0, %v2418
        %v2420 = vpop.f32.mrf.mxu0
        %2421 = vmatprep.mubr.bf16.mxu0 0
        %2422 = vmatmul.mubr.bf16.gmra.mxu0 %v2361
        %v2423 = vpop.f32.mrf.mxu0
        %v2424 = vadd.f32 0.0, %v2423
        %v2425 = vpop.f32.mrf.mxu0
        %v2426 = vpop.f32.mrf.mxu0
        %v2427 = vadd.f32 0.0, %v2426
        %v2428 = vpop.f32.mrf.mxu0
        %2429 = vmatprep.mubr.bf16.mxu0 0
        %2430 = vmatmul.mubr.bf16.gmra.mxu0 %v2364
        %v2431 = vpop.f32.mrf.mxu0
        %v2432 = vadd.f32 0.0, %v2431
        %v2433 = vpop.f32.mrf.mxu0
        %v2434 = vpop.f32.mrf.mxu0
        %v2435 = vadd.f32 0.0, %v2434
        %v2436 = vpop.f32.mrf.mxu0
        %2437 = vmatprep.mubr.bf16.mxu0 0
        %2438 = vmatmul.mubr.bf16.gmra.mxu0 %v2367
        %v2439 = vpop.f32.mrf.mxu0
        %v2440 = vadd.f32 0.0, %v2439
        %v2441 = vpop.f32.mrf.mxu0
        %v2442 = vpop.f32.mrf.mxu0
        %v2443 = vadd.f32 0.0, %v2442
        %v2444 = vpop.f32.mrf.mxu0
        %2445 = vmatprep.mubr.bf16.mxu0 0
        %2446 = vmatmul.mubr.bf16.gmra.mxu0 %v2370
        %v2447 = vpop.f32.mrf.mxu0
        %v2448 = vadd.f32 0.0, %v2447
        %v2449 = vpop.f32.mrf.mxu0
        %v2450 = vpop.f32.mrf.mxu0
        %v2451 = vadd.f32 0.0, %v2450
        %v2452 = vpop.f32.mrf.mxu0
        %2453 = vmatprep.mubr.bf16.mxu0 0
        %2454 = vmatmul.mubr.bf16.gmra.mxu0 %v2373
        %v2455 = vpop.f32.mrf.mxu0
        %v2456 = vadd.f32 0.0, %v2455
        %v2457 = vpop.f32.mrf.mxu0
        %v2458 = vpop.f32.mrf.mxu0
        %v2459 = vadd.f32 0.0, %v2458
        %v2460 = vpop.f32.mrf.mxu0
        %2461 = vmatprep.mubr.bf16.mxu0 0
        %2462 = vmatmul.mubr.bf16.gmra.mxu0 %v2376
        %v2463 = vpop.f32.mrf.mxu0
        %v2464 = vadd.f32 0.0, %v2463
        %v2465 = vpop.f32.mrf.mxu0
        %v2466 = vpop.f32.mrf.mxu0
        %v2467 = vadd.f32 0.0, %v2466
        %v2468 = vpop.f32.mrf.mxu0
        %2469 = vmatprep.mubr.bf16.mxu0 0
        %2470 = vmatmul.mubr.bf16.gmra.mxu0 %v2379
        %v2471 = vpop.f32.mrf.mxu0
        %v2472 = vadd.f32 0.0, %v2471
        %v2473 = vpop.f32.mrf.mxu0
        %v2474 = vpop.f32.mrf.mxu0
        %v2475 = vadd.f32 0.0, %v2474
        %v2476 = vpop.f32.mrf.mxu0
        %2477 = vdwg.mxu0
        %v2478 = vadd.f32 %v2251, %v2416
        %v2479 = vadd.f32 %v2254, %v2419
        %v2480 = vadd.f32 %v2259, %v2424
        %v2481 = vadd.f32 %v2262, %v2427
        %v2482 = vadd.f32 %v2267, %v2432
        %v2483 = vadd.f32 %v2270, %v2435
        %v2484 = vadd.f32 %v2275, %v2440
        %v2485 = vadd.f32 %v2278, %v2443
        %v2486 = vadd.f32 %v2283, %v2448
        %v2487 = vadd.f32 %v2286, %v2451
        %v2488 = vadd.f32 %v2291, %v2456
        %v2489 = vadd.f32 %v2294, %v2459
        %v2490 = vadd.f32 %v2299, %v2464
        %v2491 = vadd.f32 %v2302, %v2467
        %v2492 = vadd.f32 %v2307, %v2472
        %v2493 = vadd.f32 %v2310, %v2475
        %v2495 = vlaneseq
        %v2496 = vshrl.u32 %v2495, 7
        %v2497 = vsub.s32 0, %v2496
        %v2498 = vrot.slane %v719, %v2497
        %v2500 = vadd.f32 %v2478, %v2498
        %v2501 = vadd.f32 %v2479, %v2498
        %v2502 = vadd.f32 %v2480, %v2498
        %v2503 = vadd.f32 %v2481, %v2498
        %v2504 = vadd.f32 %v2482, %v2498
        %v2505 = vadd.f32 %v2483, %v2498
        %v2506 = vadd.f32 %v2484, %v2498
        %v2507 = vadd.f32 %v2485, %v2498
        %v2508 = vadd.f32 %v2486, %v2498
        %v2509 = vadd.f32 %v2487, %v2498
        %v2510 = vadd.f32 %v2488, %v2498
        %v2511 = vadd.f32 %v2489, %v2498
        %v2512 = vadd.f32 %v2490, %v2498
        %v2513 = vadd.f32 %v2491, %v2498
        %v2514 = vadd.f32 %v2492, %v2498
        %v2515 = vadd.f32 %v2493, %v2498
        %v2516 = vmax.f32 %v2500, 0.0
        %v2517 = vmax.f32 %v2501, 0.0
        %v2518 = vmax.f32 %v2502, 0.0
        %v2519 = vmax.f32 %v2503, 0.0
        %v2520 = vmax.f32 %v2504, 0.0
        %v2521 = vmax.f32 %v2505, 0.0
        %v2522 = vmax.f32 %v2506, 0.0
        %v2523 = vmax.f32 %v2507, 0.0
        %v2524 = vmax.f32 %v2508, 0.0
        %v2525 = vmax.f32 %v2509, 0.0
        %v2526 = vmax.f32 %v2510, 0.0
        %v2527 = vmax.f32 %v2511, 0.0
        %v2528 = vmax.f32 %v2512, 0.0
        %v2529 = vmax.f32 %v2513, 0.0
        %v2530 = vmax.f32 %v2514, 0.0
        %v2531 = vmax.f32 %v2515, 0.0
        %v2532 = vadd.f32 %v2516, %v848
        %v2533 = vadd.f32 %v2517, %v851
        %v2534 = vadd.f32 %v2518, %v856
        %v2535 = vadd.f32 %v2519, %v859
        %v2536 = vadd.f32 %v2520, %v864
        %v2537 = vadd.f32 %v2521, %v867
        %v2538 = vadd.f32 %v2522, %v872
        %v2539 = vadd.f32 %v2523, %v875
        %v2540 = vadd.f32 %v2524, %v880
        %v2541 = vadd.f32 %v2525, %v883
        %v2542 = vadd.f32 %v2526, %v888
        %v2543 = vadd.f32 %v2527, %v891
        %v2544 = vadd.f32 %v2528, %v896
        %v2545 = vadd.f32 %v2529, %v899
        %v2546 = vadd.f32 %v2530, %v904
        %v2547 = vadd.f32 %v2531, %v907
        %v2548 = vmax.f32 %v2532, 0.0
        %v2549 = vmax.f32 %v2533, 0.0
        %v2550 = vmax.f32 %v2534, 0.0
        %v2551 = vmax.f32 %v2535, 0.0
        %v2552 = vmax.f32 %v2536, 0.0
        %v2553 = vmax.f32 %v2537, 0.0
        %v2554 = vmax.f32 %v2538, 0.0
        %v2555 = vmax.f32 %v2539, 0.0
        %v2556 = vmax.f32 %v2540, 0.0
        %v2557 = vmax.f32 %v2541, 0.0
        %v2558 = vmax.f32 %v2542, 0.0
        %v2559 = vmax.f32 %v2543, 0.0
        %v2560 = vmax.f32 %v2544, 0.0
        %v2561 = vmax.f32 %v2545, 0.0
        %v2562 = vmax.f32 %v2546, 0.0
        %v2563 = vmax.f32 %v2547, 0.0
        %v2564 = vpack.c.bf16 %v2549, %v2548
        %v2565 = vpack.c.bf16 %v2551, %v2550
        %v2566 = vpack.c.bf16 %v2553, %v2552
        %v2567 = vpack.c.bf16 %v2555, %v2554
        %v2568 = vpack.c.bf16 %v2557, %v2556
        %v2569 = vpack.c.bf16 %v2559, %v2558
        %v2570 = vpack.c.bf16 %v2561, %v2560
        %v2571 = vpack.c.bf16 %v2563, %v2562
        %v2580 = vunpack.c.l.b16 %v2564
        %v2581 = vunpack.c.h.b16 %v2564
        %v2582 = vunpack.c.l.b16 %v2565
        %v2583 = vunpack.c.h.b16 %v2565
        %v2584 = vunpack.c.l.b16 %v2566
        %v2585 = vunpack.c.h.b16 %v2566
        %v2586 = vunpack.c.l.b16 %v2567
        %v2587 = vunpack.c.h.b16 %v2567
        %v2588 = vunpack.c.l.b16 %v2568
        %v2589 = vunpack.c.h.b16 %v2568
        %v2590 = vunpack.c.l.b16 %v2569
        %v2591 = vunpack.c.h.b16 %v2569
        %v2592 = vunpack.c.l.b16 %v2570
        %v2593 = vunpack.c.h.b16 %v2570
        %v2594 = vunpack.c.l.b16 %v2571
        %v2595 = vunpack.c.h.b16 %v2571
        %v2596 = vpack.c.b16 %v2580, %v2580
        %v2597 = vpack.c.b16 %v2581, %v2581
        %v2598 = vpack.c.b16 %v2582, %v2582
        %v2599 = vpack.c.b16 %v2583, %v2583
        %v2600 = vpack.c.b16 %v2584, %v2584
        %v2601 = vpack.c.b16 %v2585, %v2585
        %v2602 = vpack.c.b16 %v2586, %v2586
        %v2603 = vpack.c.b16 %v2587, %v2587
        %v2604 = vpack.c.b16 %v2588, %v2588
        %v2605 = vpack.c.b16 %v2589, %v2589
        %v2606 = vpack.c.b16 %v2590, %v2590
        %v2607 = vpack.c.b16 %v2591, %v2591
        %v2608 = vpack.c.b16 %v2592, %v2592
        %v2609 = vpack.c.b16 %v2593, %v2593
        %v2610 = vpack.c.b16 %v2594, %v2594
        %v2611 = vpack.c.b16 %v2595, %v2595
        %2628 = vst.msk [vmem:[#allocation2 + $0x4] sm:$0xf] %vm661, %v2596
        %2629 = vst.msk [vmem:[#allocation2 + $0x8] sm:$0xf] %vm661, %v2597
        %2630 = vst.msk [vmem:[#allocation2 + $0x10] sm:$0xf] %vm661, %v2598
        %2631 = vst.msk [vmem:[#allocation2 + $0x14] sm:$0xf] %vm661, %v2599
        %2632 = vst.msk [vmem:[#allocation2 + $0x1c] sm:$0xf] %vm661, %v2600
        %2633 = vst.msk [vmem:[#allocation2 + $0x20] sm:$0xf] %vm661, %v2601
        %2634 = vst.msk [vmem:[#allocation2 + $0x28] sm:$0xf] %vm661, %v2602
        %2635 = vst.msk [vmem:[#allocation2 + $0x2c] sm:$0xf] %vm661, %v2603
        %2636 = vst.msk [vmem:[#allocation2 + $0x34] sm:$0xf] %vm661, %v2604
        %2637 = vst.msk [vmem:[#allocation2 + $0x38] sm:$0xf] %vm661, %v2605
        %2638 = vst.msk [vmem:[#allocation2 + $0x40] sm:$0xf] %vm661, %v2606
        %2639 = vst.msk [vmem:[#allocation2 + $0x44] sm:$0xf] %vm661, %v2607
        %2640 = vst.msk [vmem:[#allocation2 + $0x4c] sm:$0xf] %vm661, %v2608
        %2641 = vst.msk [vmem:[#allocation2 + $0x50] sm:$0xf] %vm661, %v2609
        %2642 = vst.msk [vmem:[#allocation2 + $0x58] sm:$0xf] %vm661, %v2610
        %2643 = vst.msk [vmem:[#allocation2 + $0x5c] sm:$0xf] %vm661, %v2611
        %v2644 = vld [vmem:[%s653] sm:$0xf]
        %v2645 = vld [vmem:[%s653 + $0x4] sm:$0xf]
        %v2646 = vld [vmem:[%s653 + $0x8] sm:$0xf]
        %v2647 = vld [vmem:[%s653 + $0xc] sm:$0xf]
        %v2648 = vld [vmem:[%s653 + $0x10] sm:$0xf]
        %v2649 = vld [vmem:[%s653 + $0x14] sm:$0xf]
        %v2650 = vld [vmem:[%s653 + $0x18] sm:$0xf]
        %v2651 = vld [vmem:[%s653 + $0x1c] sm:$0xf]
        %v2652 = vld [vmem:[%s653 + $0x20] sm:$0xf]
        %v2653 = vld [vmem:[%s653 + $0x24] sm:$0xf]
        %v2654 = vld [vmem:[%s653 + $0x28] sm:$0xf]
        %v2655 = vld [vmem:[%s653 + $0x2c] sm:$0xf]
        %v2656 = vld [vmem:[%s656] sm:$0x1]
        %v2657 = vld [vmem:[%s516] sm:$0xf]
        %v2658 = vld [vmem:[%s516 + $0x4] sm:$0xf]
        %v2659 = vld [vmem:[%s516 + $0x8] sm:$0xf]
        %v2660 = vld [vmem:[%s516 + $0xc] sm:$0xf]
        %v2661 = vld [vmem:[%s516 + $0x10] sm:$0xf]
        %v2662 = vld [vmem:[%s516 + $0x14] sm:$0xf]
        %v2663 = vld [vmem:[%s516 + $0x18] sm:$0xf]
        %v2664 = vld [vmem:[%s516 + $0x1c] sm:$0xf]
        %v2665 = vld [vmem:[%s516 + $0x20] sm:$0xf]
        %v2666 = vld [vmem:[%s516 + $0x24] sm:$0xf]
        %v2667 = vld [vmem:[%s516 + $0x28] sm:$0xf]
        %v2668 = vld [vmem:[%s516 + $0x2c] sm:$0xf]
        %v2669 = vld [vmem:[%s659] sm:$0x1]
        %v2670 = vld [vmem:[#allocation2] sm:$0xc]
        %v2671 = vld [vmem:[#allocation2 + $0x4] sm:$0xf]
        %v2672 = vld [vmem:[#allocation2 + $0x8] sm:$0x3]
        %v2673 = vld [vmem:[#allocation2 + $0xc] sm:$0xc]
        %v2674 = vld [vmem:[#allocation2 + $0x10] sm:$0xf]
        %v2675 = vld [vmem:[#allocation2 + $0x14] sm:$0x3]
        %v2676 = vld [vmem:[#allocation2 + $0x18] sm:$0xc]
        %v2677 = vld [vmem:[#allocation2 + $0x1c] sm:$0xf]
        %v2678 = vld [vmem:[#allocation2 + $0x20] sm:$0x3]
        %v2679 = vld [vmem:[#allocation2 + $0x24] sm:$0xc]
        %v2680 = vld [vmem:[#allocation2 + $0x28] sm:$0xf]
        %v2681 = vld [vmem:[#allocation2 + $0x2c] sm:$0x3]
        %v2682 = vld [vmem:[#allocation2 + $0x30] sm:$0xc]
        %v2683 = vld [vmem:[#allocation2 + $0x34] sm:$0xf]
        %v2684 = vld [vmem:[#allocation2 + $0x38] sm:$0x3]
        %v2685 = vld [vmem:[#allocation2 + $0x3c] sm:$0xc]
        %v2686 = vld [vmem:[#allocation2 + $0x40] sm:$0xf]
        %v2687 = vld [vmem:[#allocation2 + $0x44] sm:$0x3]
        %v2688 = vld [vmem:[#allocation2 + $0x48] sm:$0xc]
        %v2689 = vld [vmem:[#allocation2 + $0x4c] sm:$0xf]
        %v2690 = vld [vmem:[#allocation2 + $0x50] sm:$0x3]
        %v2691 = vld [vmem:[#allocation2 + $0x54] sm:$0xc]
        %v2692 = vld [vmem:[#allocation2 + $0x58] sm:$0xf]
        %v2693 = vld [vmem:[#allocation2 + $0x5c] sm:$0x3]
        %vm2718 = vcmask 1041408
        %vm2719 = vcmask 1045508
        %vm2720 = vmor %vm2718, %vm2719
        %v2721 = vrot.slane %v2670, 6
        %v2722 = vrot.slane %v2721, 4
        %v2723 = vrot.slane %v2671, 6
        %v2724 = vsel %vm2720, %v2722, %v2723
        %v2725 = vrot.slane %v2723, 4
        %v2726 = vrot.slane %v2672, 6
        %v2727 = vsel %vm2720, %v2725, %v2726
        %v2728 = vrot.slane %v2673, 6
        %v2729 = vrot.slane %v2728, 4
        %v2730 = vrot.slane %v2674, 6
        %v2731 = vsel %vm2720, %v2729, %v2730
        %v2732 = vrot.slane %v2730, 4
        %v2733 = vrot.slane %v2675, 6
        %v2734 = vsel %vm2720, %v2732, %v2733
        %v2735 = vrot.slane %v2676, 6
        %v2736 = vrot.slane %v2735, 4
        %v2737 = vrot.slane %v2677, 6
        %v2738 = vsel %vm2720, %v2736, %v2737
        %v2739 = vrot.slane %v2737, 4
        %v2740 = vrot.slane %v2678, 6
        %v2741 = vsel %vm2720, %v2739, %v2740
        %v2742 = vrot.slane %v2679, 6
        %v2743 = vrot.slane %v2742, 4
        %v2744 = vrot.slane %v2680, 6
        %v2745 = vsel %vm2720, %v2743, %v2744
        %v2746 = vrot.slane %v2744, 4
        %v2747 = vrot.slane %v2681, 6
        %v2748 = vsel %vm2720, %v2746, %v2747
        %v2749 = vrot.slane %v2682, 6
        %v2750 = vrot.slane %v2749, 4
        %v2751 = vrot.slane %v2683, 6
        %v2752 = vsel %vm2720, %v2750, %v2751
        %v2753 = vrot.slane %v2751, 4
        %v2754 = vrot.slane %v2684, 6
        %v2755 = vsel %vm2720, %v2753, %v2754
        %v2756 = vrot.slane %v2685, 6
        %v2757 = vrot.slane %v2756, 4
        %v2758 = vrot.slane %v2686, 6
        %v2759 = vsel %vm2720, %v2757, %v2758
        %v2760 = vrot.slane %v2758, 4
        %v2761 = vrot.slane %v2687, 6
        %v2762 = vsel %vm2720, %v2760, %v2761
        %v2763 = vrot.slane %v2688, 6
        %v2764 = vrot.slane %v2763, 4
        %v2765 = vrot.slane %v2689, 6
        %v2766 = vsel %vm2720, %v2764, %v2765
        %v2767 = vrot.slane %v2765, 4
        %v2768 = vrot.slane %v2690, 6
        %v2769 = vsel %vm2720, %v2767, %v2768
        %v2770 = vrot.slane %v2691, 6
        %v2771 = vrot.slane %v2770, 4
        %v2772 = vrot.slane %v2692, 6
        %v2773 = vsel %vm2720, %v2771, %v2772
        %v2774 = vrot.slane %v2772, 4
        %v2775 = vrot.slane %v2693, 6
        %v2776 = vsel %vm2720, %v2774, %v2775
        %v2777 = vld [vmem:[#allocation2] sm:$0x8]
        %v2778 = vld [vmem:[#allocation2 + $0x8] sm:$0x7]
        %v2779 = vld [vmem:[#allocation2 + $0xc] sm:$0x8]
        %v2780 = vld [vmem:[#allocation2 + $0x14] sm:$0x7]
        %v2781 = vld [vmem:[#allocation2 + $0x18] sm:$0x8]
        %v2782 = vld [vmem:[#allocation2 + $0x20] sm:$0x7]
        %v2783 = vld [vmem:[#allocation2 + $0x24] sm:$0x8]
        %v2784 = vld [vmem:[#allocation2 + $0x2c] sm:$0x7]
        %v2785 = vld [vmem:[#allocation2 + $0x30] sm:$0x8]
        %v2786 = vld [vmem:[#allocation2 + $0x38] sm:$0x7]
        %v2787 = vld [vmem:[#allocation2 + $0x3c] sm:$0x8]
        %v2788 = vld [vmem:[#allocation2 + $0x44] sm:$0x7]
        %v2789 = vld [vmem:[#allocation2 + $0x48] sm:$0x8]
        %v2790 = vld [vmem:[#allocation2 + $0x50] sm:$0x7]
        %v2791 = vld [vmem:[#allocation2 + $0x54] sm:$0x8]
        %v2792 = vld [vmem:[#allocation2 + $0x5c] sm:$0x7]
        %v2809 = vrot.slane %v2777, 7
        %v2810 = vrot.slane %v2809, 4
        %v2811 = vrot.slane %v2671, 7
        %v2812 = vsel %vm944, %v2810, %v2811
        %v2813 = vrot.slane %v2811, 4
        %v2814 = vrot.slane %v2778, 7
        %v2815 = vsel %vm944, %v2813, %v2814
        %v2816 = vrot.slane %v2779, 7
        %v2817 = vrot.slane %v2816, 4
        %v2818 = vrot.slane %v2674, 7
        %v2819 = vsel %vm944, %v2817, %v2818
        %v2820 = vrot.slane %v2818, 4
        %v2821 = vrot.slane %v2780, 7
        %v2822 = vsel %vm944, %v2820, %v2821
        %v2823 = vrot.slane %v2781, 7
        %v2824 = vrot.slane %v2823, 4
        %v2825 = vrot.slane %v2677, 7
        %v2826 = vsel %vm944, %v2824, %v2825
        %v2827 = vrot.slane %v2825, 4
        %v2828 = vrot.slane %v2782, 7
        %v2829 = vsel %vm944, %v2827, %v2828
        %v2830 = vrot.slane %v2783, 7
        %v2831 = vrot.slane %v2830, 4
        %v2832 = vrot.slane %v2680, 7
        %v2833 = vsel %vm944, %v2831, %v2832
        %v2834 = vrot.slane %v2832, 4
        %v2835 = vrot.slane %v2784, 7
        %v2836 = vsel %vm944, %v2834, %v2835
        %v2837 = vrot.slane %v2785, 7
        %v2838 = vrot.slane %v2837, 4
        %v2839 = vrot.slane %v2683, 7
        %v2840 = vsel %vm944, %v2838, %v2839
        %v2841 = vrot.slane %v2839, 4
        %v2842 = vrot.slane %v2786, 7
        %v2843 = vsel %vm944, %v2841, %v2842
        %v2844 = vrot.slane %v2787, 7
        %v2845 = vrot.slane %v2844, 4
        %v2846 = vrot.slane %v2686, 7
        %v2847 = vsel %vm944, %v2845, %v2846
        %v2848 = vrot.slane %v2846, 4
        %v2849 = vrot.slane %v2788, 7
        %v2850 = vsel %vm944, %v2848, %v2849
        %v2851 = vrot.slane %v2789, 7
        %v2852 = vrot.slane %v2851, 4
        %v2853 = vrot.slane %v2689, 7
        %v2854 = vsel %vm944, %v2852, %v2853
        %v2855 = vrot.slane %v2853, 4
        %v2856 = vrot.slane %v2790, 7
        %v2857 = vsel %vm944, %v2855, %v2856
        %v2858 = vrot.slane %v2791, 7
        %v2859 = vrot.slane %v2858, 4
        %v2860 = vrot.slane %v2692, 7
        %v2861 = vsel %vm944, %v2859, %v2860
        %v2862 = vrot.slane %v2860, 4
        %v2863 = vrot.slane %v2792, 7
        %v2864 = vsel %vm944, %v2862, %v2863
        %v2865 = vunpack.c.l.b16 %v2812
        %v2866 = vunpack.c.l.b16 %v2815
        %v2867 = vunpack.c.l.b16 %v2819
        %v2868 = vunpack.c.l.b16 %v2822
        %v2869 = vunpack.c.l.b16 %v2826
        %v2870 = vunpack.c.l.b16 %v2829
        %v2871 = vunpack.c.l.b16 %v2833
        %v2872 = vunpack.c.l.b16 %v2836
        %v2873 = vunpack.c.l.b16 %v2840
        %v2874 = vunpack.c.l.b16 %v2843
        %v2875 = vunpack.c.l.b16 %v2847
        %v2876 = vunpack.c.l.b16 %v2850
        %v2877 = vunpack.c.l.b16 %v2854
        %v2878 = vunpack.c.l.b16 %v2857
        %v2879 = vunpack.c.l.b16 %v2861
        %v2880 = vunpack.c.l.b16 %v2864
        %v2881 = vpack.c.b16 %v2866, %v2865
        %v2882 = vpack.c.b16 %v2868, %v2867
        %v2883 = vpack.c.b16 %v2870, %v2869
        %v2884 = vpack.c.b16 %v2872, %v2871
        %v2885 = vpack.c.b16 %v2874, %v2873
        %v2886 = vpack.c.b16 %v2876, %v2875
        %v2887 = vpack.c.b16 %v2878, %v2877
        %v2888 = vpack.c.b16 %v2880, %v2879
        %v2893 = vunpack.c.l.b16 %v2648
        %v2894 = vunpack.c.l.b16 %v2649
        %v2895 = vunpack.c.l.b16 %v2650
        %v2896 = vunpack.c.l.b16 %v2651
        %v2897 = vpack.c.b16 %v2894, %v2893
        %v2898 = vpack.c.b16 %v2896, %v2895
        %v2902 = vsel %vm2034, %v2881, 0
        %v2905 = vsel %vm2034, %v2882, 0
        %v2908 = vsel %vm2034, %v2883, 0
        %v2911 = vsel %vm2034, %v2884, 0
        %v2914 = vsel %vm2034, %v2885, 0
        %v2917 = vsel %vm2034, %v2886, 0
        %v2920 = vsel %vm2034, %v2887, 0
        %v2923 = vsel %vm2034, %v2888, 0
        %2925 = vmatprep.subr.bf16.mxu0 0
        %2926 = vmatpush1.bf16.msra.mxu0 0
        %2927 = vmatprep.subr.bf16.mxu0 0
        %2928 = vmatpush1.bf16.msra.mxu0 0
        %2929 = vmatprep.subr.bf16.mxu0 0
        %2930 = vmatpush1.bf16.msra.mxu0 0
        %2931 = vmatprep.subr.bf16.mxu0 0
        %2932 = vmatpush1.bf16.msra.mxu0 0
        %2933 = vmatprep.subr.bf16.mxu0 0
        %2934 = vmatpush1.bf16.msra.mxu0 0
        %2935 = vmatprep.subr.bf16.mxu0 0
        %2936 = vmatpush1.bf16.msra.mxu0 0
        %2937 = vmatprep.subr.bf16.mxu0 0
        %2938 = vmatpush1.bf16.msra.mxu0 %v2898
        %2939 = vmatprep.subr.bf16.mxu0 0
        %2940 = vmatpush1.bf16.msra.mxu0 %v2897
        %2941 = vmatprep.subr.bf16.mxu0 0
        %2942 = vmatpush2.bf16.msra.mxu0 0
        %2943 = vmatprep.subr.bf16.mxu0 0
        %2944 = vmatpush2.bf16.msra.mxu0 0
        %2945 = vmatprep.subr.bf16.mxu0 0
        %2946 = vmatpush2.bf16.msra.mxu0 0
        %2947 = vmatprep.subr.bf16.mxu0 0
        %2948 = vmatpush2.bf16.msra.mxu0 0
        %2949 = vmatprep.subr.bf16.mxu0 0
        %2950 = vmatpush2.bf16.msra.mxu0 0
        %2951 = vmatprep.subr.bf16.mxu0 0
        %2952 = vmatpush2.bf16.msra.mxu0 0
        %2953 = vmatprep.subr.bf16.mxu0 0
        %2954 = vmatpush2.bf16.msra.mxu0 0
        %2955 = vmatprep.subr.bf16.mxu0 0
        %2956 = vmatpush2.bf16.msra.mxu0 0
        %2957 = vmatprep.mubr.bf16.mxu0 0
        %2958 = vmatmul.mubr.bf16.gmra.mxu0 %v2902
        %v2959 = vpop.f32.mrf.mxu0
        %v2960 = vadd.f32 0.0, %v2959
        %v2961 = vpop.f32.mrf.mxu0
        %v2962 = vpop.f32.mrf.mxu0
        %v2963 = vadd.f32 0.0, %v2962
        %v2964 = vpop.f32.mrf.mxu0
        %2965 = vmatprep.mubr.bf16.mxu0 0
        %2966 = vmatmul.mubr.bf16.gmra.mxu0 %v2905
        %v2967 = vpop.f32.mrf.mxu0
        %v2968 = vadd.f32 0.0, %v2967
        %v2969 = vpop.f32.mrf.mxu0
        %v2970 = vpop.f32.mrf.mxu0
        %v2971 = vadd.f32 0.0, %v2970
        %v2972 = vpop.f32.mrf.mxu0
        %2973 = vmatprep.mubr.bf16.mxu0 0
        %2974 = vmatmul.mubr.bf16.gmra.mxu0 %v2908
        %v2975 = vpop.f32.mrf.mxu0
        %v2976 = vadd.f32 0.0, %v2975
        %v2977 = vpop.f32.mrf.mxu0
        %v2978 = vpop.f32.mrf.mxu0
        %v2979 = vadd.f32 0.0, %v2978
        %v2980 = vpop.f32.mrf.mxu0
        %2981 = vmatprep.mubr.bf16.mxu0 0
        %2982 = vmatmul.mubr.bf16.gmra.mxu0 %v2911
        %v2983 = vpop.f32.mrf.mxu0
        %v2984 = vadd.f32 0.0, %v2983
        %v2985 = vpop.f32.mrf.mxu0
        %v2986 = vpop.f32.mrf.mxu0
        %v2987 = vadd.f32 0.0, %v2986
        %v2988 = vpop.f32.mrf.mxu0
        %2989 = vmatprep.mubr.bf16.mxu0 0
        %2990 = vmatmul.mubr.bf16.gmra.mxu0 %v2914
        %v2991 = vpop.f32.mrf.mxu0
        %v2992 = vadd.f32 0.0, %v2991
        %v2993 = vpop.f32.mrf.mxu0
        %v2994 = vpop.f32.mrf.mxu0
        %v2995 = vadd.f32 0.0, %v2994
        %v2996 = vpop.f32.mrf.mxu0
        %2997 = vmatprep.mubr.bf16.mxu0 0
        %2998 = vmatmul.mubr.bf16.gmra.mxu0 %v2917
        %v2999 = vpop.f32.mrf.mxu0
        %v3000 = vadd.f32 0.0, %v2999
        %v3001 = vpop.f32.mrf.mxu0
        %v3002 = vpop.f32.mrf.mxu0
        %v3003 = vadd.f32 0.0, %v3002
        %v3004 = vpop.f32.mrf.mxu0
        %3005 = vmatprep.mubr.bf16.mxu0 0
        %3006 = vmatmul.mubr.bf16.gmra.mxu0 %v2920
        %v3007 = vpop.f32.mrf.mxu0
        %v3008 = vadd.f32 0.0, %v3007
        %v3009 = vpop.f32.mrf.mxu0
        %v3010 = vpop.f32.mrf.mxu0
        %v3011 = vadd.f32 0.0, %v3010
        %v3012 = vpop.f32.mrf.mxu0
        %3013 = vmatprep.mubr.bf16.mxu0 0
        %3014 = vmatmul.mubr.bf16.gmra.mxu0 %v2923
        %v3015 = vpop.f32.mrf.mxu0
        %v3016 = vadd.f32 0.0, %v3015
        %v3017 = vpop.f32.mrf.mxu0
        %v3018 = vpop.f32.mrf.mxu0
        %v3019 = vadd.f32 0.0, %v3018
        %v3020 = vpop.f32.mrf.mxu0
        %3021 = vdwg.mxu0
        %v3022 = vunpack.c.l.b16 %v2724
        %v3023 = vunpack.c.l.b16 %v2727
        %v3024 = vunpack.c.l.b16 %v2731
        %v3025 = vunpack.c.l.b16 %v2734
        %v3026 = vunpack.c.l.b16 %v2738
        %v3027 = vunpack.c.l.b16 %v2741
        %v3028 = vunpack.c.l.b16 %v2745
        %v3029 = vunpack.c.l.b16 %v2748
        %v3030 = vunpack.c.l.b16 %v2752
        %v3031 = vunpack.c.l.b16 %v2755
        %v3032 = vunpack.c.l.b16 %v2759
        %v3033 = vunpack.c.l.b16 %v2762
        %v3034 = vunpack.c.l.b16 %v2766
        %v3035 = vunpack.c.l.b16 %v2769
        %v3036 = vunpack.c.l.b16 %v2773
        %v3037 = vunpack.c.l.b16 %v2776
        %v3038 = vpack.c.b16 %v3023, %v3022
        %v3039 = vpack.c.b16 %v3025, %v3024
        %v3040 = vpack.c.b16 %v3027, %v3026
        %v3041 = vpack.c.b16 %v3029, %v3028
        %v3042 = vpack.c.b16 %v3031, %v3030
        %v3043 = vpack.c.b16 %v3033, %v3032
        %v3044 = vpack.c.b16 %v3035, %v3034
        %v3045 = vpack.c.b16 %v3037, %v3036
        %v3050 = vunpack.c.l.b16 %v2644
        %v3051 = vunpack.c.l.b16 %v2645
        %v3052 = vunpack.c.l.b16 %v2646
        %v3053 = vunpack.c.l.b16 %v2647
        %v3054 = vpack.c.b16 %v3051, %v3050
        %v3055 = vpack.c.b16 %v3053, %v3052
        %v3059 = vsel %vm2034, %v3038, 0
        %v3062 = vsel %vm2034, %v3039, 0
        %v3065 = vsel %vm2034, %v3040, 0
        %v3068 = vsel %vm2034, %v3041, 0
        %v3071 = vsel %vm2034, %v3042, 0
        %v3074 = vsel %vm2034, %v3043, 0
        %v3077 = vsel %vm2034, %v3044, 0
        %v3080 = vsel %vm2034, %v3045, 0
        %3082 = vmatprep.subr.bf16.mxu0 0
        %3083 = vmatpush1.bf16.msra.mxu0 0
        %3084 = vmatprep.subr.bf16.mxu0 0
        %3085 = vmatpush1.bf16.msra.mxu0 0
        %3086 = vmatprep.subr.bf16.mxu0 0
        %3087 = vmatpush1.bf16.msra.mxu0 0
        %3088 = vmatprep.subr.bf16.mxu0 0
        %3089 = vmatpush1.bf16.msra.mxu0 0
        %3090 = vmatprep.subr.bf16.mxu0 0
        %3091 = vmatpush1.bf16.msra.mxu0 0
        %3092 = vmatprep.subr.bf16.mxu0 0
        %3093 = vmatpush1.bf16.msra.mxu0 0
        %3094 = vmatprep.subr.bf16.mxu0 0
        %3095 = vmatpush1.bf16.msra.mxu0 %v3055
        %3096 = vmatprep.subr.bf16.mxu0 0
        %3097 = vmatpush1.bf16.msra.mxu0 %v3054
        %3098 = vmatprep.subr.bf16.mxu0 0
        %3099 = vmatpush2.bf16.msra.mxu0 0
        %3100 = vmatprep.subr.bf16.mxu0 0
        %3101 = vmatpush2.bf16.msra.mxu0 0
        %3102 = vmatprep.subr.bf16.mxu0 0
        %3103 = vmatpush2.bf16.msra.mxu0 0
        %3104 = vmatprep.subr.bf16.mxu0 0
        %3105 = vmatpush2.bf16.msra.mxu0 0
        %3106 = vmatprep.subr.bf16.mxu0 0
        %3107 = vmatpush2.bf16.msra.mxu0 0
        %3108 = vmatprep.subr.bf16.mxu0 0
        %3109 = vmatpush2.bf16.msra.mxu0 0
        %3110 = vmatprep.subr.bf16.mxu0 0
        %3111 = vmatpush2.bf16.msra.mxu0 0
        %3112 = vmatprep.subr.bf16.mxu0 0
        %3113 = vmatpush2.bf16.msra.mxu0 0
        %3114 = vmatprep.mubr.bf16.mxu0 0
        %3115 = vmatmul.mubr.bf16.gmra.mxu0 %v3059
        %v3116 = vpop.f32.mrf.mxu0
        %v3117 = vadd.f32 %v2960, %v3116
        %v3118 = vpop.f32.mrf.mxu0
        %v3119 = vpop.f32.mrf.mxu0
        %v3120 = vadd.f32 %v2963, %v3119
        %v3121 = vpop.f32.mrf.mxu0
        %3122 = vmatprep.mubr.bf16.mxu0 0
        %3123 = vmatmul.mubr.bf16.gmra.mxu0 %v3062
        %v3124 = vpop.f32.mrf.mxu0
        %v3125 = vadd.f32 %v2968, %v3124
        %v3126 = vpop.f32.mrf.mxu0
        %v3127 = vpop.f32.mrf.mxu0
        %v3128 = vadd.f32 %v2971, %v3127
        %v3129 = vpop.f32.mrf.mxu0
        %3130 = vmatprep.mubr.bf16.mxu0 0
        %3131 = vmatmul.mubr.bf16.gmra.mxu0 %v3065
        %v3132 = vpop.f32.mrf.mxu0
        %v3133 = vadd.f32 %v2976, %v3132
        %v3134 = vpop.f32.mrf.mxu0
        %v3135 = vpop.f32.mrf.mxu0
        %v3136 = vadd.f32 %v2979, %v3135
        %v3137 = vpop.f32.mrf.mxu0
        %3138 = vmatprep.mubr.bf16.mxu0 0
        %3139 = vmatmul.mubr.bf16.gmra.mxu0 %v3068
        %v3140 = vpop.f32.mrf.mxu0
        %v3141 = vadd.f32 %v2984, %v3140
        %v3142 = vpop.f32.mrf.mxu0
        %v3143 = vpop.f32.mrf.mxu0
        %v3144 = vadd.f32 %v2987, %v3143
        %v3145 = vpop.f32.mrf.mxu0
        %3146 = vmatprep.mubr.bf16.mxu0 0
        %3147 = vmatmul.mubr.bf16.gmra.mxu0 %v3071
        %v3148 = vpop.f32.mrf.mxu0
        %v3149 = vadd.f32 %v2992, %v3148
        %v3150 = vpop.f32.mrf.mxu0
        %v3151 = vpop.f32.mrf.mxu0
        %v3152 = vadd.f32 %v2995, %v3151
        %v3153 = vpop.f32.mrf.mxu0
        %3154 = vmatprep.mubr.bf16.mxu0 0
        %3155 = vmatmul.mubr.bf16.gmra.mxu0 %v3074
        %v3156 = vpop.f32.mrf.mxu0
        %v3157 = vadd.f32 %v3000, %v3156
        %v3158 = vpop.f32.mrf.mxu0
        %v3159 = vpop.f32.mrf.mxu0
        %v3160 = vadd.f32 %v3003, %v3159
        %v3161 = vpop.f32.mrf.mxu0
        %3162 = vmatprep.mubr.bf16.mxu0 0
        %3163 = vmatmul.mubr.bf16.gmra.mxu0 %v3077
        %v3164 = vpop.f32.mrf.mxu0
        %v3165 = vadd.f32 %v3008, %v3164
        %v3166 = vpop.f32.mrf.mxu0
        %v3167 = vpop.f32.mrf.mxu0
        %v3168 = vadd.f32 %v3011, %v3167
        %v3169 = vpop.f32.mrf.mxu0
        %3170 = vmatprep.mubr.bf16.mxu0 0
        %3171 = vmatmul.mubr.bf16.gmra.mxu0 %v3080
        %v3172 = vpop.f32.mrf.mxu0
        %v3173 = vadd.f32 %v3016, %v3172
        %v3174 = vpop.f32.mrf.mxu0
        %v3175 = vpop.f32.mrf.mxu0
        %v3176 = vadd.f32 %v3019, %v3175
        %v3177 = vpop.f32.mrf.mxu0
        %3178 = vdwg.mxu0
        %v3179 = vld [vmem:[#allocation2 + $0x8] sm:$0xf]
        %v3180 = vld [vmem:[#allocation2 + $0x14] sm:$0xf]
        %v3181 = vld [vmem:[#allocation2 + $0x20] sm:$0xf]
        %v3182 = vld [vmem:[#allocation2 + $0x2c] sm:$0xf]
        %v3183 = vld [vmem:[#allocation2 + $0x38] sm:$0xf]
        %v3184 = vld [vmem:[#allocation2 + $0x44] sm:$0xf]
        %v3185 = vld [vmem:[#allocation2 + $0x50] sm:$0xf]
        %v3186 = vld [vmem:[#allocation2 + $0x5c] sm:$0xf]
        %v3195 = vunpack.c.l.b16 %v2671
        %v3196 = vunpack.c.l.b16 %v3179
        %v3197 = vunpack.c.l.b16 %v2674
        %v3198 = vunpack.c.l.b16 %v3180
        %v3199 = vunpack.c.l.b16 %v2677
        %v3200 = vunpack.c.l.b16 %v3181
        %v3201 = vunpack.c.l.b16 %v2680
        %v3202 = vunpack.c.l.b16 %v3182
        %v3203 = vunpack.c.l.b16 %v2683
        %v3204 = vunpack.c.l.b16 %v3183
        %v3205 = vunpack.c.l.b16 %v2686
        %v3206 = vunpack.c.l.b16 %v3184
        %v3207 = vunpack.c.l.b16 %v2689
        %v3208 = vunpack.c.l.b16 %v3185
        %v3209 = vunpack.c.l.b16 %v2692
        %v3210 = vunpack.c.l.b16 %v3186
        %v3211 = vpack.c.b16 %v3196, %v3195
        %v3212 = vpack.c.b16 %v3198, %v3197
        %v3213 = vpack.c.b16 %v3200, %v3199
        %v3214 = vpack.c.b16 %v3202, %v3201
        %v3215 = vpack.c.b16 %v3204, %v3203
        %v3216 = vpack.c.b16 %v3206, %v3205
        %v3217 = vpack.c.b16 %v3208, %v3207
        %v3218 = vpack.c.b16 %v3210, %v3209
        %v3223 = vunpack.c.l.b16 %v2652
        %v3224 = vunpack.c.l.b16 %v2653
        %v3225 = vunpack.c.l.b16 %v2654
        %v3226 = vunpack.c.l.b16 %v2655
        %v3227 = vpack.c.b16 %v3224, %v3223
        %v3228 = vpack.c.b16 %v3226, %v3225
        %v3232 = vsel %vm2034, %v3211, 0
        %v3235 = vsel %vm2034, %v3212, 0
        %v3238 = vsel %vm2034, %v3213, 0
        %v3241 = vsel %vm2034, %v3214, 0
        %v3244 = vsel %vm2034, %v3215, 0
        %v3247 = vsel %vm2034, %v3216, 0
        %v3250 = vsel %vm2034, %v3217, 0
        %v3253 = vsel %vm2034, %v3218, 0
        %3255 = vmatprep.subr.bf16.mxu0 0
        %3256 = vmatpush1.bf16.msra.mxu0 0
        %3257 = vmatprep.subr.bf16.mxu0 0
        %3258 = vmatpush1.bf16.msra.mxu0 0
        %3259 = vmatprep.subr.bf16.mxu0 0
        %3260 = vmatpush1.bf16.msra.mxu0 0
        %3261 = vmatprep.subr.bf16.mxu0 0
        %3262 = vmatpush1.bf16.msra.mxu0 0
        %3263 = vmatprep.subr.bf16.mxu0 0
        %3264 = vmatpush1.bf16.msra.mxu0 0
        %3265 = vmatprep.subr.bf16.mxu0 0
        %3266 = vmatpush1.bf16.msra.mxu0 0
        %3267 = vmatprep.subr.bf16.mxu0 0
        %3268 = vmatpush1.bf16.msra.mxu0 %v3228
        %3269 = vmatprep.subr.bf16.mxu0 0
        %3270 = vmatpush1.bf16.msra.mxu0 %v3227
        %3271 = vmatprep.subr.bf16.mxu0 0
        %3272 = vmatpush2.bf16.msra.mxu0 0
        %3273 = vmatprep.subr.bf16.mxu0 0
        %3274 = vmatpush2.bf16.msra.mxu0 0
        %3275 = vmatprep.subr.bf16.mxu0 0
        %3276 = vmatpush2.bf16.msra.mxu0 0
        %3277 = vmatprep.subr.bf16.mxu0 0
        %3278 = vmatpush2.bf16.msra.mxu0 0
        %3279 = vmatprep.subr.bf16.mxu0 0
        %3280 = vmatpush2.bf16.msra.mxu0 0
        %3281 = vmatprep.subr.bf16.mxu0 0
        %3282 = vmatpush2.bf16.msra.mxu0 0
        %3283 = vmatprep.subr.bf16.mxu0 0
        %3284 = vmatpush2.bf16.msra.mxu0 0
        %3285 = vmatprep.subr.bf16.mxu0 0
        %3286 = vmatpush2.bf16.msra.mxu0 0
        %3287 = vmatprep.mubr.bf16.mxu0 0
        %3288 = vmatmul.mubr.bf16.gmra.mxu0 %v3232
        %v3289 = vpop.f32.mrf.mxu0
        %v3290 = vadd.f32 0.0, %v3289
        %v3291 = vpop.f32.mrf.mxu0
        %v3292 = vpop.f32.mrf.mxu0
        %v3293 = vadd.f32 0.0, %v3292
        %v3294 = vpop.f32.mrf.mxu0
        %3295 = vmatprep.mubr.bf16.mxu0 0
        %3296 = vmatmul.mubr.bf16.gmra.mxu0 %v3235
        %v3297 = vpop.f32.mrf.mxu0
        %v3298 = vadd.f32 0.0, %v3297
        %v3299 = vpop.f32.mrf.mxu0
        %v3300 = vpop.f32.mrf.mxu0
        %v3301 = vadd.f32 0.0, %v3300
        %v3302 = vpop.f32.mrf.mxu0
        %3303 = vmatprep.mubr.bf16.mxu0 0
        %3304 = vmatmul.mubr.bf16.gmra.mxu0 %v3238
        %v3305 = vpop.f32.mrf.mxu0
        %v3306 = vadd.f32 0.0, %v3305
        %v3307 = vpop.f32.mrf.mxu0
        %v3308 = vpop.f32.mrf.mxu0
        %v3309 = vadd.f32 0.0, %v3308
        %v3310 = vpop.f32.mrf.mxu0
        %3311 = vmatprep.mubr.bf16.mxu0 0
        %3312 = vmatmul.mubr.bf16.gmra.mxu0 %v3241
        %v3313 = vpop.f32.mrf.mxu0
        %v3314 = vadd.f32 0.0, %v3313
        %v3315 = vpop.f32.mrf.mxu0
        %v3316 = vpop.f32.mrf.mxu0
        %v3317 = vadd.f32 0.0, %v3316
        %v3318 = vpop.f32.mrf.mxu0
        %3319 = vmatprep.mubr.bf16.mxu0 0
        %3320 = vmatmul.mubr.bf16.gmra.mxu0 %v3244
        %v3321 = vpop.f32.mrf.mxu0
        %v3322 = vadd.f32 0.0, %v3321
        %v3323 = vpop.f32.mrf.mxu0
        %v3324 = vpop.f32.mrf.mxu0
        %v3325 = vadd.f32 0.0, %v3324
        %v3326 = vpop.f32.mrf.mxu0
        %3327 = vmatprep.mubr.bf16.mxu0 0
        %3328 = vmatmul.mubr.bf16.gmra.mxu0 %v3247
        %v3329 = vpop.f32.mrf.mxu0
        %v3330 = vadd.f32 0.0, %v3329
        %v3331 = vpop.f32.mrf.mxu0
        %v3332 = vpop.f32.mrf.mxu0
        %v3333 = vadd.f32 0.0, %v3332
        %v3334 = vpop.f32.mrf.mxu0
        %3335 = vmatprep.mubr.bf16.mxu0 0
        %3336 = vmatmul.mubr.bf16.gmra.mxu0 %v3250
        %v3337 = vpop.f32.mrf.mxu0
        %v3338 = vadd.f32 0.0, %v3337
        %v3339 = vpop.f32.mrf.mxu0
        %v3340 = vpop.f32.mrf.mxu0
        %v3341 = vadd.f32 0.0, %v3340
        %v3342 = vpop.f32.mrf.mxu0
        %3343 = vmatprep.mubr.bf16.mxu0 0
        %3344 = vmatmul.mubr.bf16.gmra.mxu0 %v3253
        %v3345 = vpop.f32.mrf.mxu0
        %v3346 = vadd.f32 0.0, %v3345
        %v3347 = vpop.f32.mrf.mxu0
        %v3348 = vpop.f32.mrf.mxu0
        %v3349 = vadd.f32 0.0, %v3348
        %v3350 = vpop.f32.mrf.mxu0
        %3351 = vdwg.mxu0
        %v3352 = vadd.f32 %v3117, %v3290
        %v3353 = vadd.f32 %v3120, %v3293
        %v3354 = vadd.f32 %v3125, %v3298
        %v3355 = vadd.f32 %v3128, %v3301
        %v3356 = vadd.f32 %v3133, %v3306
        %v3357 = vadd.f32 %v3136, %v3309
        %v3358 = vadd.f32 %v3141, %v3314
        %v3359 = vadd.f32 %v3144, %v3317
        %v3360 = vadd.f32 %v3149, %v3322
        %v3361 = vadd.f32 %v3152, %v3325
        %v3362 = vadd.f32 %v3157, %v3330
        %v3363 = vadd.f32 %v3160, %v3333
        %v3364 = vadd.f32 %v3165, %v3338
        %v3365 = vadd.f32 %v3168, %v3341
        %v3366 = vadd.f32 %v3173, %v3346
        %v3367 = vadd.f32 %v3176, %v3349
        %v3369 = vlaneseq
        %v3370 = vshrl.u32 %v3369, 7
        %v3371 = vsub.s32 0, %v3370
        %v3372 = vrot.slane %v2656, %v3371
        %v3374 = vadd.f32 %v3352, %v3372
        %v3375 = vadd.f32 %v3353, %v3372
        %v3376 = vadd.f32 %v3354, %v3372
        %v3377 = vadd.f32 %v3355, %v3372
        %v3378 = vadd.f32 %v3356, %v3372
        %v3379 = vadd.f32 %v3357, %v3372
        %v3380 = vadd.f32 %v3358, %v3372
        %v3381 = vadd.f32 %v3359, %v3372
        %v3382 = vadd.f32 %v3360, %v3372
        %v3383 = vadd.f32 %v3361, %v3372
        %v3384 = vadd.f32 %v3362, %v3372
        %v3385 = vadd.f32 %v3363, %v3372
        %v3386 = vadd.f32 %v3364, %v3372
        %v3387 = vadd.f32 %v3365, %v3372
        %v3388 = vadd.f32 %v3366, %v3372
        %v3389 = vadd.f32 %v3367, %v3372
        %v3390 = vmax.f32 %v3374, 0.0
        %v3391 = vmax.f32 %v3375, 0.0
        %v3392 = vmax.f32 %v3376, 0.0
        %v3393 = vmax.f32 %v3377, 0.0
        %v3394 = vmax.f32 %v3378, 0.0
        %v3395 = vmax.f32 %v3379, 0.0
        %v3396 = vmax.f32 %v3380, 0.0
        %v3397 = vmax.f32 %v3381, 0.0
        %v3398 = vmax.f32 %v3382, 0.0
        %v3399 = vmax.f32 %v3383, 0.0
        %v3400 = vmax.f32 %v3384, 0.0
        %v3401 = vmax.f32 %v3385, 0.0
        %v3402 = vmax.f32 %v3386, 0.0
        %v3403 = vmax.f32 %v3387, 0.0
        %v3404 = vmax.f32 %v3388, 0.0
        %v3405 = vmax.f32 %v3389, 0.0
        %v3406 = vpack.c.bf16 %v3391, %v3390
        %v3407 = vpack.c.bf16 %v3393, %v3392
        %v3408 = vpack.c.bf16 %v3395, %v3394
        %v3409 = vpack.c.bf16 %v3397, %v3396
        %v3410 = vpack.c.bf16 %v3399, %v3398
        %v3411 = vpack.c.bf16 %v3401, %v3400
        %v3412 = vpack.c.bf16 %v3403, %v3402
        %v3413 = vpack.c.bf16 %v3405, %v3404
        %v3422 = vunpack.c.l.b16 %v3406
        %v3423 = vunpack.c.h.b16 %v3406
        %v3424 = vunpack.c.l.b16 %v3407
        %v3425 = vunpack.c.h.b16 %v3407
        %v3426 = vunpack.c.l.b16 %v3408
        %v3427 = vunpack.c.h.b16 %v3408
        %v3428 = vunpack.c.l.b16 %v3409
        %v3429 = vunpack.c.h.b16 %v3409
        %v3430 = vunpack.c.l.b16 %v3410
        %v3431 = vunpack.c.h.b16 %v3410
        %v3432 = vunpack.c.l.b16 %v3411
        %v3433 = vunpack.c.h.b16 %v3411
        %v3434 = vunpack.c.l.b16 %v3412
        %v3435 = vunpack.c.h.b16 %v3412
        %v3436 = vunpack.c.l.b16 %v3413
        %v3437 = vunpack.c.h.b16 %v3413
        %v3438 = vpack.c.b16 %v3422, %v3422
        %v3439 = vpack.c.b16 %v3423, %v3423
        %v3440 = vpack.c.b16 %v3424, %v3424
        %v3441 = vpack.c.b16 %v3425, %v3425
        %v3442 = vpack.c.b16 %v3426, %v3426
        %v3443 = vpack.c.b16 %v3427, %v3427
        %v3444 = vpack.c.b16 %v3428, %v3428
        %v3445 = vpack.c.b16 %v3429, %v3429
        %v3446 = vpack.c.b16 %v3430, %v3430
        %v3447 = vpack.c.b16 %v3431, %v3431
        %v3448 = vpack.c.b16 %v3432, %v3432
        %v3449 = vpack.c.b16 %v3433, %v3433
        %v3450 = vpack.c.b16 %v3434, %v3434
        %v3451 = vpack.c.b16 %v3435, %v3435
        %v3452 = vpack.c.b16 %v3436, %v3436
        %v3453 = vpack.c.b16 %v3437, %v3437
        %3470 = vst.msk [vmem:[#allocation2 + $0x4] sm:$0xf] %vm661, %v3438
        %3471 = vst.msk [vmem:[#allocation2 + $0x8] sm:$0xf] %vm661, %v3439
        %3472 = vst.msk [vmem:[#allocation2 + $0x10] sm:$0xf] %vm661, %v3440
        %3473 = vst.msk [vmem:[#allocation2 + $0x14] sm:$0xf] %vm661, %v3441
        %3474 = vst.msk [vmem:[#allocation2 + $0x1c] sm:$0xf] %vm661, %v3442
        %3475 = vst.msk [vmem:[#allocation2 + $0x20] sm:$0xf] %vm661, %v3443
        %3476 = vst.msk [vmem:[#allocation2 + $0x28] sm:$0xf] %vm661, %v3444
        %3477 = vst.msk [vmem:[#allocation2 + $0x2c] sm:$0xf] %vm661, %v3445
        %3478 = vst.msk [vmem:[#allocation2 + $0x34] sm:$0xf] %vm661, %v3446
        %3479 = vst.msk [vmem:[#allocation2 + $0x38] sm:$0xf] %vm661, %v3447
        %3480 = vst.msk [vmem:[#allocation2 + $0x40] sm:$0xf] %vm661, %v3448
        %3481 = vst.msk [vmem:[#allocation2 + $0x44] sm:$0xf] %vm661, %v3449
        %3482 = vst.msk [vmem:[#allocation2 + $0x4c] sm:$0xf] %vm661, %v3450
        %3483 = vst.msk [vmem:[#allocation2 + $0x50] sm:$0xf] %vm661, %v3451
        %3484 = vst.msk [vmem:[#allocation2 + $0x58] sm:$0xf] %vm661, %v3452
        %3485 = vst.msk [vmem:[#allocation2 + $0x5c] sm:$0xf] %vm661, %v3453
        %v3486 = vld [vmem:[#allocation2] sm:$0xc]
        %v3487 = vld [vmem:[#allocation2 + $0x4] sm:$0xf]
        %v3488 = vld [vmem:[#allocation2 + $0x8] sm:$0x3]
        %v3489 = vld [vmem:[#allocation2 + $0xc] sm:$0xc]
        %v3490 = vld [vmem:[#allocation2 + $0x10] sm:$0xf]
        %v3491 = vld [vmem:[#allocation2 + $0x14] sm:$0x3]
        %v3492 = vld [vmem:[#allocation2 + $0x18] sm:$0xc]
        %v3493 = vld [vmem:[#allocation2 + $0x1c] sm:$0xf]
        %v3494 = vld [vmem:[#allocation2 + $0x20] sm:$0x3]
        %v3495 = vld [vmem:[#allocation2 + $0x24] sm:$0xc]
        %v3496 = vld [vmem:[#allocation2 + $0x28] sm:$0xf]
        %v3497 = vld [vmem:[#allocation2 + $0x2c] sm:$0x3]
        %v3498 = vld [vmem:[#allocation2 + $0x30] sm:$0xc]
        %v3499 = vld [vmem:[#allocation2 + $0x34] sm:$0xf]
        %v3500 = vld [vmem:[#allocation2 + $0x38] sm:$0x3]
        %v3501 = vld [vmem:[#allocation2 + $0x3c] sm:$0xc]
        %v3502 = vld [vmem:[#allocation2 + $0x40] sm:$0xf]
        %v3503 = vld [vmem:[#allocation2 + $0x44] sm:$0x3]
        %v3504 = vld [vmem:[#allocation2 + $0x48] sm:$0xc]
        %v3505 = vld [vmem:[#allocation2 + $0x4c] sm:$0xf]
        %v3506 = vld [vmem:[#allocation2 + $0x50] sm:$0x3]
        %v3507 = vld [vmem:[#allocation2 + $0x54] sm:$0xc]
        %v3508 = vld [vmem:[#allocation2 + $0x58] sm:$0xf]
        %v3509 = vld [vmem:[#allocation2 + $0x5c] sm:$0x3]
        %v3534 = vrot.slane %v3486, 6
        %v3535 = vrot.slane %v3534, 4
        %v3536 = vrot.slane %v3487, 6
        %v3537 = vsel %vm2720, %v3535, %v3536
        %v3538 = vrot.slane %v3536, 4
        %v3539 = vrot.slane %v3488, 6
        %v3540 = vsel %vm2720, %v3538, %v3539
        %v3541 = vrot.slane %v3489, 6
        %v3542 = vrot.slane %v3541, 4
        %v3543 = vrot.slane %v3490, 6
        %v3544 = vsel %vm2720, %v3542, %v3543
        %v3545 = vrot.slane %v3543, 4
        %v3546 = vrot.slane %v3491, 6
        %v3547 = vsel %vm2720, %v3545, %v3546
        %v3548 = vrot.slane %v3492, 6
        %v3549 = vrot.slane %v3548, 4
        %v3550 = vrot.slane %v3493, 6
        %v3551 = vsel %vm2720, %v3549, %v3550
        %v3552 = vrot.slane %v3550, 4
        %v3553 = vrot.slane %v3494, 6
        %v3554 = vsel %vm2720, %v3552, %v3553
        %v3555 = vrot.slane %v3495, 6
        %v3556 = vrot.slane %v3555, 4
        %v3557 = vrot.slane %v3496, 6
        %v3558 = vsel %vm2720, %v3556, %v3557
        %v3559 = vrot.slane %v3557, 4
        %v3560 = vrot.slane %v3497, 6
        %v3561 = vsel %vm2720, %v3559, %v3560
        %v3562 = vrot.slane %v3498, 6
        %v3563 = vrot.slane %v3562, 4
        %v3564 = vrot.slane %v3499, 6
        %v3565 = vsel %vm2720, %v3563, %v3564
        %v3566 = vrot.slane %v3564, 4
        %v3567 = vrot.slane %v3500, 6
        %v3568 = vsel %vm2720, %v3566, %v3567
        %v3569 = vrot.slane %v3501, 6
        %v3570 = vrot.slane %v3569, 4
        %v3571 = vrot.slane %v3502, 6
        %v3572 = vsel %vm2720, %v3570, %v3571
        %v3573 = vrot.slane %v3571, 4
        %v3574 = vrot.slane %v3503, 6
        %v3575 = vsel %vm2720, %v3573, %v3574
        %v3576 = vrot.slane %v3504, 6
        %v3577 = vrot.slane %v3576, 4
        %v3578 = vrot.slane %v3505, 6
        %v3579 = vsel %vm2720, %v3577, %v3578
        %v3580 = vrot.slane %v3578, 4
        %v3581 = vrot.slane %v3506, 6
        %v3582 = vsel %vm2720, %v3580, %v3581
        %v3583 = vrot.slane %v3507, 6
        %v3584 = vrot.slane %v3583, 4
        %v3585 = vrot.slane %v3508, 6
        %v3586 = vsel %vm2720, %v3584, %v3585
        %v3587 = vrot.slane %v3585, 4
        %v3588 = vrot.slane %v3509, 6
        %v3589 = vsel %vm2720, %v3587, %v3588
        %v3590 = vld [vmem:[#allocation2] sm:$0x8]
        %v3591 = vld [vmem:[#allocation2 + $0x8] sm:$0x7]
        %v3592 = vld [vmem:[#allocation2 + $0xc] sm:$0x8]
        %v3593 = vld [vmem:[#allocation2 + $0x14] sm:$0x7]
        %v3594 = vld [vmem:[#allocation2 + $0x18] sm:$0x8]
        %v3595 = vld [vmem:[#allocation2 + $0x20] sm:$0x7]
        %v3596 = vld [vmem:[#allocation2 + $0x24] sm:$0x8]
        %v3597 = vld [vmem:[#allocation2 + $0x2c] sm:$0x7]
        %v3598 = vld [vmem:[#allocation2 + $0x30] sm:$0x8]
        %v3599 = vld [vmem:[#allocation2 + $0x38] sm:$0x7]
        %v3600 = vld [vmem:[#allocation2 + $0x3c] sm:$0x8]
        %v3601 = vld [vmem:[#allocation2 + $0x44] sm:$0x7]
        %v3602 = vld [vmem:[#allocation2 + $0x48] sm:$0x8]
        %v3603 = vld [vmem:[#allocation2 + $0x50] sm:$0x7]
        %v3604 = vld [vmem:[#allocation2 + $0x54] sm:$0x8]
        %v3605 = vld [vmem:[#allocation2 + $0x5c] sm:$0x7]
        %v3622 = vrot.slane %v3590, 7
        %v3623 = vrot.slane %v3622, 4
        %v3624 = vrot.slane %v3487, 7
        %v3625 = vsel %vm944, %v3623, %v3624
        %v3626 = vrot.slane %v3624, 4
        %v3627 = vrot.slane %v3591, 7
        %v3628 = vsel %vm944, %v3626, %v3627
        %v3629 = vrot.slane %v3592, 7
        %v3630 = vrot.slane %v3629, 4
        %v3631 = vrot.slane %v3490, 7
        %v3632 = vsel %vm944, %v3630, %v3631
        %v3633 = vrot.slane %v3631, 4
        %v3634 = vrot.slane %v3593, 7
        %v3635 = vsel %vm944, %v3633, %v3634
        %v3636 = vrot.slane %v3594, 7
        %v3637 = vrot.slane %v3636, 4
        %v3638 = vrot.slane %v3493, 7
        %v3639 = vsel %vm944, %v3637, %v3638
        %v3640 = vrot.slane %v3638, 4
        %v3641 = vrot.slane %v3595, 7
        %v3642 = vsel %vm944, %v3640, %v3641
        %v3643 = vrot.slane %v3596, 7
        %v3644 = vrot.slane %v3643, 4
        %v3645 = vrot.slane %v3496, 7
        %v3646 = vsel %vm944, %v3644, %v3645
        %v3647 = vrot.slane %v3645, 4
        %v3648 = vrot.slane %v3597, 7
        %v3649 = vsel %vm944, %v3647, %v3648
        %v3650 = vrot.slane %v3598, 7
        %v3651 = vrot.slane %v3650, 4
        %v3652 = vrot.slane %v3499, 7
        %v3653 = vsel %vm944, %v3651, %v3652
        %v3654 = vrot.slane %v3652, 4
        %v3655 = vrot.slane %v3599, 7
        %v3656 = vsel %vm944, %v3654, %v3655
        %v3657 = vrot.slane %v3600, 7
        %v3658 = vrot.slane %v3657, 4
        %v3659 = vrot.slane %v3502, 7
        %v3660 = vsel %vm944, %v3658, %v3659
        %v3661 = vrot.slane %v3659, 4
        %v3662 = vrot.slane %v3601, 7
        %v3663 = vsel %vm944, %v3661, %v3662
        %v3664 = vrot.slane %v3602, 7
        %v3665 = vrot.slane %v3664, 4
        %v3666 = vrot.slane %v3505, 7
        %v3667 = vsel %vm944, %v3665, %v3666
        %v3668 = vrot.slane %v3666, 4
        %v3669 = vrot.slane %v3603, 7
        %v3670 = vsel %vm944, %v3668, %v3669
        %v3671 = vrot.slane %v3604, 7
        %v3672 = vrot.slane %v3671, 4
        %v3673 = vrot.slane %v3508, 7
        %v3674 = vsel %vm944, %v3672, %v3673
        %v3675 = vrot.slane %v3673, 4
        %v3676 = vrot.slane %v3605, 7
        %v3677 = vsel %vm944, %v3675, %v3676
        %v3678 = vunpack.c.l.b16 %v3625
        %v3679 = vunpack.c.l.b16 %v3628
        %v3680 = vunpack.c.l.b16 %v3632
        %v3681 = vunpack.c.l.b16 %v3635
        %v3682 = vunpack.c.l.b16 %v3639
        %v3683 = vunpack.c.l.b16 %v3642
        %v3684 = vunpack.c.l.b16 %v3646
        %v3685 = vunpack.c.l.b16 %v3649
        %v3686 = vunpack.c.l.b16 %v3653
        %v3687 = vunpack.c.l.b16 %v3656
        %v3688 = vunpack.c.l.b16 %v3660
        %v3689 = vunpack.c.l.b16 %v3663
        %v3690 = vunpack.c.l.b16 %v3667
        %v3691 = vunpack.c.l.b16 %v3670
        %v3692 = vunpack.c.l.b16 %v3674
        %v3693 = vunpack.c.l.b16 %v3677
        %v3694 = vpack.c.b16 %v3679, %v3678
        %v3695 = vpack.c.b16 %v3681, %v3680
        %v3696 = vpack.c.b16 %v3683, %v3682
        %v3697 = vpack.c.b16 %v3685, %v3684
        %v3698 = vpack.c.b16 %v3687, %v3686
        %v3699 = vpack.c.b16 %v3689, %v3688
        %v3700 = vpack.c.b16 %v3691, %v3690
        %v3701 = vpack.c.b16 %v3693, %v3692
        %v3706 = vunpack.c.l.b16 %v2661
        %v3707 = vunpack.c.l.b16 %v2662
        %v3708 = vunpack.c.l.b16 %v2663
        %v3709 = vunpack.c.l.b16 %v2664
        %v3710 = vpack.c.b16 %v3707, %v3706
        %v3711 = vpack.c.b16 %v3709, %v3708
        %v3715 = vsel %vm2034, %v3694, 0
        %v3718 = vsel %vm2034, %v3695, 0
        %v3721 = vsel %vm2034, %v3696, 0
        %v3724 = vsel %vm2034, %v3697, 0
        %v3727 = vsel %vm2034, %v3698, 0
        %v3730 = vsel %vm2034, %v3699, 0
        %v3733 = vsel %vm2034, %v3700, 0
        %v3736 = vsel %vm2034, %v3701, 0
        %3738 = vmatprep.subr.bf16.mxu0 0
        %3739 = vmatpush1.bf16.msra.mxu0 0
        %3740 = vmatprep.subr.bf16.mxu0 0
        %3741 = vmatpush1.bf16.msra.mxu0 0
        %3742 = vmatprep.subr.bf16.mxu0 0
        %3743 = vmatpush1.bf16.msra.mxu0 0
        %3744 = vmatprep.subr.bf16.mxu0 0
        %3745 = vmatpush1.bf16.msra.mxu0 0
        %3746 = vmatprep.subr.bf16.mxu0 0
        %3747 = vmatpush1.bf16.msra.mxu0 0
        %3748 = vmatprep.subr.bf16.mxu0 0
        %3749 = vmatpush1.bf16.msra.mxu0 0
        %3750 = vmatprep.subr.bf16.mxu0 0
        %3751 = vmatpush1.bf16.msra.mxu0 %v3711
        %3752 = vmatprep.subr.bf16.mxu0 0
        %3753 = vmatpush1.bf16.msra.mxu0 %v3710
        %3754 = vmatprep.subr.bf16.mxu0 0
        %3755 = vmatpush2.bf16.msra.mxu0 0
        %3756 = vmatprep.subr.bf16.mxu0 0
        %3757 = vmatpush2.bf16.msra.mxu0 0
        %3758 = vmatprep.subr.bf16.mxu0 0
        %3759 = vmatpush2.bf16.msra.mxu0 0
        %3760 = vmatprep.subr.bf16.mxu0 0
        %3761 = vmatpush2.bf16.msra.mxu0 0
        %3762 = vmatprep.subr.bf16.mxu0 0
        %3763 = vmatpush2.bf16.msra.mxu0 0
        %3764 = vmatprep.subr.bf16.mxu0 0
        %3765 = vmatpush2.bf16.msra.mxu0 0
        %3766 = vmatprep.subr.bf16.mxu0 0
        %3767 = vmatpush2.bf16.msra.mxu0 0
        %3768 = vmatprep.subr.bf16.mxu0 0
        %3769 = vmatpush2.bf16.msra.mxu0 0
        %3770 = vmatprep.mubr.bf16.mxu0 0
        %3771 = vmatmul.mubr.bf16.gmra.mxu0 %v3715
        %v3772 = vpop.f32.mrf.mxu0
        %v3773 = vadd.f32 0.0, %v3772
        %v3774 = vpop.f32.mrf.mxu0
        %v3775 = vpop.f32.mrf.mxu0
        %v3776 = vadd.f32 0.0, %v3775
        %v3777 = vpop.f32.mrf.mxu0
        %3778 = vmatprep.mubr.bf16.mxu0 0
        %3779 = vmatmul.mubr.bf16.gmra.mxu0 %v3718
        %v3780 = vpop.f32.mrf.mxu0
        %v3781 = vadd.f32 0.0, %v3780
        %v3782 = vpop.f32.mrf.mxu0
        %v3783 = vpop.f32.mrf.mxu0
        %v3784 = vadd.f32 0.0, %v3783
        %v3785 = vpop.f32.mrf.mxu0
        %3786 = vmatprep.mubr.bf16.mxu0 0
        %3787 = vmatmul.mubr.bf16.gmra.mxu0 %v3721
        %v3788 = vpop.f32.mrf.mxu0
        %v3789 = vadd.f32 0.0, %v3788
        %v3790 = vpop.f32.mrf.mxu0
        %v3791 = vpop.f32.mrf.mxu0
        %v3792 = vadd.f32 0.0, %v3791
        %v3793 = vpop.f32.mrf.mxu0
        %3794 = vmatprep.mubr.bf16.mxu0 0
        %3795 = vmatmul.mubr.bf16.gmra.mxu0 %v3724
        %v3796 = vpop.f32.mrf.mxu0
        %v3797 = vadd.f32 0.0, %v3796
        %v3798 = vpop.f32.mrf.mxu0
        %v3799 = vpop.f32.mrf.mxu0
        %v3800 = vadd.f32 0.0, %v3799
        %v3801 = vpop.f32.mrf.mxu0
        %3802 = vmatprep.mubr.bf16.mxu0 0
        %3803 = vmatmul.mubr.bf16.gmra.mxu0 %v3727
        %v3804 = vpop.f32.mrf.mxu0
        %v3805 = vadd.f32 0.0, %v3804
        %v3806 = vpop.f32.mrf.mxu0
        %v3807 = vpop.f32.mrf.mxu0
        %v3808 = vadd.f32 0.0, %v3807
        %v3809 = vpop.f32.mrf.mxu0
        %3810 = vmatprep.mubr.bf16.mxu0 0
        %3811 = vmatmul.mubr.bf16.gmra.mxu0 %v3730
        %v3812 = vpop.f32.mrf.mxu0
        %v3813 = vadd.f32 0.0, %v3812
        %v3814 = vpop.f32.mrf.mxu0
        %v3815 = vpop.f32.mrf.mxu0
        %v3816 = vadd.f32 0.0, %v3815
        %v3817 = vpop.f32.mrf.mxu0
        %3818 = vmatprep.mubr.bf16.mxu0 0
        %3819 = vmatmul.mubr.bf16.gmra.mxu0 %v3733
        %v3820 = vpop.f32.mrf.mxu0
        %v3821 = vadd.f32 0.0, %v3820
        %v3822 = vpop.f32.mrf.mxu0
        %v3823 = vpop.f32.mrf.mxu0
        %v3824 = vadd.f32 0.0, %v3823
        %v3825 = vpop.f32.mrf.mxu0
        %3826 = vmatprep.mubr.bf16.mxu0 0
        %3827 = vmatmul.mubr.bf16.gmra.mxu0 %v3736
        %v3828 = vpop.f32.mrf.mxu0
        %v3829 = vadd.f32 0.0, %v3828
        %v3830 = vpop.f32.mrf.mxu0
        %v3831 = vpop.f32.mrf.mxu0
        %v3832 = vadd.f32 0.0, %v3831
        %v3833 = vpop.f32.mrf.mxu0
        %3834 = vdwg.mxu0
        %v3835 = vunpack.c.l.b16 %v3537
        %v3836 = vunpack.c.l.b16 %v3540
        %v3837 = vunpack.c.l.b16 %v3544
        %v3838 = vunpack.c.l.b16 %v3547
        %v3839 = vunpack.c.l.b16 %v3551
        %v3840 = vunpack.c.l.b16 %v3554
        %v3841 = vunpack.c.l.b16 %v3558
        %v3842 = vunpack.c.l.b16 %v3561
        %v3843 = vunpack.c.l.b16 %v3565
        %v3844 = vunpack.c.l.b16 %v3568
        %v3845 = vunpack.c.l.b16 %v3572
        %v3846 = vunpack.c.l.b16 %v3575
        %v3847 = vunpack.c.l.b16 %v3579
        %v3848 = vunpack.c.l.b16 %v3582
        %v3849 = vunpack.c.l.b16 %v3586
        %v3850 = vunpack.c.l.b16 %v3589
        %v3851 = vpack.c.b16 %v3836, %v3835
        %v3852 = vpack.c.b16 %v3838, %v3837
        %v3853 = vpack.c.b16 %v3840, %v3839
        %v3854 = vpack.c.b16 %v3842, %v3841
        %v3855 = vpack.c.b16 %v3844, %v3843
        %v3856 = vpack.c.b16 %v3846, %v3845
        %v3857 = vpack.c.b16 %v3848, %v3847
        %v3858 = vpack.c.b16 %v3850, %v3849
        %v3863 = vunpack.c.l.b16 %v2657
        %v3864 = vunpack.c.l.b16 %v2658
        %v3865 = vunpack.c.l.b16 %v2659
        %v3866 = vunpack.c.l.b16 %v2660
        %v3867 = vpack.c.b16 %v3864, %v3863
        %v3868 = vpack.c.b16 %v3866, %v3865
        %v3872 = vsel %vm2034, %v3851, 0
        %v3875 = vsel %vm2034, %v3852, 0
        %v3878 = vsel %vm2034, %v3853, 0
        %v3881 = vsel %vm2034, %v3854, 0
        %v3884 = vsel %vm2034, %v3855, 0
        %v3887 = vsel %vm2034, %v3856, 0
        %v3890 = vsel %vm2034, %v3857, 0
        %v3893 = vsel %vm2034, %v3858, 0
        %3895 = vmatprep.subr.bf16.mxu0 0
        %3896 = vmatpush1.bf16.msra.mxu0 0
        %3897 = vmatprep.subr.bf16.mxu0 0
        %3898 = vmatpush1.bf16.msra.mxu0 0
        %3899 = vmatprep.subr.bf16.mxu0 0
        %3900 = vmatpush1.bf16.msra.mxu0 0
        %3901 = vmatprep.subr.bf16.mxu0 0
        %3902 = vmatpush1.bf16.msra.mxu0 0
        %3903 = vmatprep.subr.bf16.mxu0 0
        %3904 = vmatpush1.bf16.msra.mxu0 0
        %3905 = vmatprep.subr.bf16.mxu0 0
        %3906 = vmatpush1.bf16.msra.mxu0 0
        %3907 = vmatprep.subr.bf16.mxu0 0
        %3908 = vmatpush1.bf16.msra.mxu0 %v3868
        %3909 = vmatprep.subr.bf16.mxu0 0
        %3910 = vmatpush1.bf16.msra.mxu0 %v3867
        %3911 = vmatprep.subr.bf16.mxu0 0
        %3912 = vmatpush2.bf16.msra.mxu0 0
        %3913 = vmatprep.subr.bf16.mxu0 0
        %3914 = vmatpush2.bf16.msra.mxu0 0
        %3915 = vmatprep.subr.bf16.mxu0 0
        %3916 = vmatpush2.bf16.msra.mxu0 0
        %3917 = vmatprep.subr.bf16.mxu0 0
        %3918 = vmatpush2.bf16.msra.mxu0 0
        %3919 = vmatprep.subr.bf16.mxu0 0
        %3920 = vmatpush2.bf16.msra.mxu0 0
        %3921 = vmatprep.subr.bf16.mxu0 0
        %3922 = vmatpush2.bf16.msra.mxu0 0
        %3923 = vmatprep.subr.bf16.mxu0 0
        %3924 = vmatpush2.bf16.msra.mxu0 0
        %3925 = vmatprep.subr.bf16.mxu0 0
        %3926 = vmatpush2.bf16.msra.mxu0 0
        %3927 = vmatprep.mubr.bf16.mxu0 0
        %3928 = vmatmul.mubr.bf16.gmra.mxu0 %v3872
        %v3929 = vpop.f32.mrf.mxu0
        %v3930 = vadd.f32 %v3773, %v3929
        %v3931 = vpop.f32.mrf.mxu0
        %v3932 = vpop.f32.mrf.mxu0
        %v3933 = vadd.f32 %v3776, %v3932
        %v3934 = vpop.f32.mrf.mxu0
        %3935 = vmatprep.mubr.bf16.mxu0 0
        %3936 = vmatmul.mubr.bf16.gmra.mxu0 %v3875
        %v3937 = vpop.f32.mrf.mxu0
        %v3938 = vadd.f32 %v3781, %v3937
        %v3939 = vpop.f32.mrf.mxu0
        %v3940 = vpop.f32.mrf.mxu0
        %v3941 = vadd.f32 %v3784, %v3940
        %v3942 = vpop.f32.mrf.mxu0
        %3943 = vmatprep.mubr.bf16.mxu0 0
        %3944 = vmatmul.mubr.bf16.gmra.mxu0 %v3878
        %v3945 = vpop.f32.mrf.mxu0
        %v3946 = vadd.f32 %v3789, %v3945
        %v3947 = vpop.f32.mrf.mxu0
        %v3948 = vpop.f32.mrf.mxu0
        %v3949 = vadd.f32 %v3792, %v3948
        %v3950 = vpop.f32.mrf.mxu0
        %3951 = vmatprep.mubr.bf16.mxu0 0
        %3952 = vmatmul.mubr.bf16.gmra.mxu0 %v3881
        %v3953 = vpop.f32.mrf.mxu0
        %v3954 = vadd.f32 %v3797, %v3953
        %v3955 = vpop.f32.mrf.mxu0
        %v3956 = vpop.f32.mrf.mxu0
        %v3957 = vadd.f32 %v3800, %v3956
        %v3958 = vpop.f32.mrf.mxu0
        %3959 = vmatprep.mubr.bf16.mxu0 0
        %3960 = vmatmul.mubr.bf16.gmra.mxu0 %v3884
        %v3961 = vpop.f32.mrf.mxu0
        %v3962 = vadd.f32 %v3805, %v3961
        %v3963 = vpop.f32.mrf.mxu0
        %v3964 = vpop.f32.mrf.mxu0
        %v3965 = vadd.f32 %v3808, %v3964
        %v3966 = vpop.f32.mrf.mxu0
        %3967 = vmatprep.mubr.bf16.mxu0 0
        %3968 = vmatmul.mubr.bf16.gmra.mxu0 %v3887
        %v3969 = vpop.f32.mrf.mxu0
        %v3970 = vadd.f32 %v3813, %v3969
        %v3971 = vpop.f32.mrf.mxu0
        %v3972 = vpop.f32.mrf.mxu0
        %v3973 = vadd.f32 %v3816, %v3972
        %v3974 = vpop.f32.mrf.mxu0
        %3975 = vmatprep.mubr.bf16.mxu0 0
        %3976 = vmatmul.mubr.bf16.gmra.mxu0 %v3890
        %v3977 = vpop.f32.mrf.mxu0
        %v3978 = vadd.f32 %v3821, %v3977
        %v3979 = vpop.f32.mrf.mxu0
        %v3980 = vpop.f32.mrf.mxu0
        %v3981 = vadd.f32 %v3824, %v3980
        %v3982 = vpop.f32.mrf.mxu0
        %3983 = vmatprep.mubr.bf16.mxu0 0
        %3984 = vmatmul.mubr.bf16.gmra.mxu0 %v3893
        %v3985 = vpop.f32.mrf.mxu0
        %v3986 = vadd.f32 %v3829, %v3985
        %v3987 = vpop.f32.mrf.mxu0
        %v3988 = vpop.f32.mrf.mxu0
        %v3989 = vadd.f32 %v3832, %v3988
        %v3990 = vpop.f32.mrf.mxu0
        %3991 = vdwg.mxu0
        %v3992 = vld [vmem:[#allocation2 + $0x8] sm:$0xf]
        %v3993 = vld [vmem:[#allocation2 + $0x14] sm:$0xf]
        %v3994 = vld [vmem:[#allocation2 + $0x20] sm:$0xf]
        %v3995 = vld [vmem:[#allocation2 + $0x2c] sm:$0xf]
        %v3996 = vld [vmem:[#allocation2 + $0x38] sm:$0xf]
        %v3997 = vld [vmem:[#allocation2 + $0x44] sm:$0xf]
        %v3998 = vld [vmem:[#allocation2 + $0x50] sm:$0xf]
        %v3999 = vld [vmem:[#allocation2 + $0x5c] sm:$0xf]
        %v4008 = vunpack.c.l.b16 %v3487
        %v4009 = vunpack.c.l.b16 %v3992
        %v4010 = vunpack.c.l.b16 %v3490
        %v4011 = vunpack.c.l.b16 %v3993
        %v4012 = vunpack.c.l.b16 %v3493
        %v4013 = vunpack.c.l.b16 %v3994
        %v4014 = vunpack.c.l.b16 %v3496
        %v4015 = vunpack.c.l.b16 %v3995
        %v4016 = vunpack.c.l.b16 %v3499
        %v4017 = vunpack.c.l.b16 %v3996
        %v4018 = vunpack.c.l.b16 %v3502
        %v4019 = vunpack.c.l.b16 %v3997
        %v4020 = vunpack.c.l.b16 %v3505
        %v4021 = vunpack.c.l.b16 %v3998
        %v4022 = vunpack.c.l.b16 %v3508
        %v4023 = vunpack.c.l.b16 %v3999
        %v4024 = vpack.c.b16 %v4009, %v4008
        %v4025 = vpack.c.b16 %v4011, %v4010
        %v4026 = vpack.c.b16 %v4013, %v4012
        %v4027 = vpack.c.b16 %v4015, %v4014
        %v4028 = vpack.c.b16 %v4017, %v4016
        %v4029 = vpack.c.b16 %v4019, %v4018
        %v4030 = vpack.c.b16 %v4021, %v4020
        %v4031 = vpack.c.b16 %v4023, %v4022
        %v4036 = vunpack.c.l.b16 %v2665
        %v4037 = vunpack.c.l.b16 %v2666
        %v4038 = vunpack.c.l.b16 %v2667
        %v4039 = vunpack.c.l.b16 %v2668
        %v4040 = vpack.c.b16 %v4037, %v4036
        %v4041 = vpack.c.b16 %v4039, %v4038
        %v4045 = vsel %vm2034, %v4024, 0
        %v4048 = vsel %vm2034, %v4025, 0
        %v4051 = vsel %vm2034, %v4026, 0
        %v4054 = vsel %vm2034, %v4027, 0
        %v4057 = vsel %vm2034, %v4028, 0
        %v4060 = vsel %vm2034, %v4029, 0
        %v4063 = vsel %vm2034, %v4030, 0
        %v4066 = vsel %vm2034, %v4031, 0
        %4068 = vmatprep.subr.bf16.mxu0 0
        %4069 = vmatpush1.bf16.msra.mxu0 0
        %4070 = vmatprep.subr.bf16.mxu0 0
        %4071 = vmatpush1.bf16.msra.mxu0 0
        %4072 = vmatprep.subr.bf16.mxu0 0
        %4073 = vmatpush1.bf16.msra.mxu0 0
        %4074 = vmatprep.subr.bf16.mxu0 0
        %4075 = vmatpush1.bf16.msra.mxu0 0
        %4076 = vmatprep.subr.bf16.mxu0 0
        %4077 = vmatpush1.bf16.msra.mxu0 0
        %4078 = vmatprep.subr.bf16.mxu0 0
        %4079 = vmatpush1.bf16.msra.mxu0 0
        %4080 = vmatprep.subr.bf16.mxu0 0
        %4081 = vmatpush1.bf16.msra.mxu0 %v4041
        %4082 = vmatprep.subr.bf16.mxu0 0
        %4083 = vmatpush1.bf16.msra.mxu0 %v4040
        %4084 = vmatprep.subr.bf16.mxu0 0
        %4085 = vmatpush2.bf16.msra.mxu0 0
        %4086 = vmatprep.subr.bf16.mxu0 0
        %4087 = vmatpush2.bf16.msra.mxu0 0
        %4088 = vmatprep.subr.bf16.mxu0 0
        %4089 = vmatpush2.bf16.msra.mxu0 0
        %4090 = vmatprep.subr.bf16.mxu0 0
        %4091 = vmatpush2.bf16.msra.mxu0 0
        %4092 = vmatprep.subr.bf16.mxu0 0
        %4093 = vmatpush2.bf16.msra.mxu0 0
        %4094 = vmatprep.subr.bf16.mxu0 0
        %4095 = vmatpush2.bf16.msra.mxu0 0
        %4096 = vmatprep.subr.bf16.mxu0 0
        %4097 = vmatpush2.bf16.msra.mxu0 0
        %4098 = vmatprep.subr.bf16.mxu0 0
        %4099 = vmatpush2.bf16.msra.mxu0 0
        %4100 = vmatprep.mubr.bf16.mxu0 0
        %4101 = vmatmul.mubr.bf16.gmra.mxu0 %v4045
        %v4102 = vpop.f32.mrf.mxu0
        %v4103 = vadd.f32 0.0, %v4102
        %v4104 = vpop.f32.mrf.mxu0
        %v4105 = vpop.f32.mrf.mxu0
        %v4106 = vadd.f32 0.0, %v4105
        %v4107 = vpop.f32.mrf.mxu0
        %4108 = vmatprep.mubr.bf16.mxu0 0
        %4109 = vmatmul.mubr.bf16.gmra.mxu0 %v4048
        %v4110 = vpop.f32.mrf.mxu0
        %v4111 = vadd.f32 0.0, %v4110
        %v4112 = vpop.f32.mrf.mxu0
        %v4113 = vpop.f32.mrf.mxu0
        %v4114 = vadd.f32 0.0, %v4113
        %v4115 = vpop.f32.mrf.mxu0
        %4116 = vmatprep.mubr.bf16.mxu0 0
        %4117 = vmatmul.mubr.bf16.gmra.mxu0 %v4051
        %v4118 = vpop.f32.mrf.mxu0
        %v4119 = vadd.f32 0.0, %v4118
        %v4120 = vpop.f32.mrf.mxu0
        %v4121 = vpop.f32.mrf.mxu0
        %v4122 = vadd.f32 0.0, %v4121
        %v4123 = vpop.f32.mrf.mxu0
        %4124 = vmatprep.mubr.bf16.mxu0 0
        %4125 = vmatmul.mubr.bf16.gmra.mxu0 %v4054
        %v4126 = vpop.f32.mrf.mxu0
        %v4127 = vadd.f32 0.0, %v4126
        %v4128 = vpop.f32.mrf.mxu0
        %v4129 = vpop.f32.mrf.mxu0
        %v4130 = vadd.f32 0.0, %v4129
        %v4131 = vpop.f32.mrf.mxu0
        %4132 = vmatprep.mubr.bf16.mxu0 0
        %4133 = vmatmul.mubr.bf16.gmra.mxu0 %v4057
        %v4134 = vpop.f32.mrf.mxu0
        %v4135 = vadd.f32 0.0, %v4134
        %v4136 = vpop.f32.mrf.mxu0
        %v4137 = vpop.f32.mrf.mxu0
        %v4138 = vadd.f32 0.0, %v4137
        %v4139 = vpop.f32.mrf.mxu0
        %4140 = vmatprep.mubr.bf16.mxu0 0
        %4141 = vmatmul.mubr.bf16.gmra.mxu0 %v4060
        %v4142 = vpop.f32.mrf.mxu0
        %v4143 = vadd.f32 0.0, %v4142
        %v4144 = vpop.f32.mrf.mxu0
        %v4145 = vpop.f32.mrf.mxu0
        %v4146 = vadd.f32 0.0, %v4145
        %v4147 = vpop.f32.mrf.mxu0
        %4148 = vmatprep.mubr.bf16.mxu0 0
        %4149 = vmatmul.mubr.bf16.gmra.mxu0 %v4063
        %v4150 = vpop.f32.mrf.mxu0
        %v4151 = vadd.f32 0.0, %v4150
        %v4152 = vpop.f32.mrf.mxu0
        %v4153 = vpop.f32.mrf.mxu0
        %v4154 = vadd.f32 0.0, %v4153
        %v4155 = vpop.f32.mrf.mxu0
        %4156 = vmatprep.mubr.bf16.mxu0 0
        %4157 = vmatmul.mubr.bf16.gmra.mxu0 %v4066
        %v4158 = vpop.f32.mrf.mxu0
        %v4159 = vadd.f32 0.0, %v4158
        %v4160 = vpop.f32.mrf.mxu0
        %v4161 = vpop.f32.mrf.mxu0
        %v4162 = vadd.f32 0.0, %v4161
        %v4163 = vpop.f32.mrf.mxu0
        %4164 = vdwg.mxu0
        %v4165 = vadd.f32 %v3930, %v4103
        %v4166 = vadd.f32 %v3933, %v4106
        %v4167 = vadd.f32 %v3938, %v4111
        %v4168 = vadd.f32 %v3941, %v4114
        %v4169 = vadd.f32 %v3946, %v4119
        %v4170 = vadd.f32 %v3949, %v4122
        %v4171 = vadd.f32 %v3954, %v4127
        %v4172 = vadd.f32 %v3957, %v4130
        %v4173 = vadd.f32 %v3962, %v4135
        %v4174 = vadd.f32 %v3965, %v4138
        %v4175 = vadd.f32 %v3970, %v4143
        %v4176 = vadd.f32 %v3973, %v4146
        %v4177 = vadd.f32 %v3978, %v4151
        %v4178 = vadd.f32 %v3981, %v4154
        %v4179 = vadd.f32 %v3986, %v4159
        %v4180 = vadd.f32 %v3989, %v4162
        %v4182 = vlaneseq
        %v4183 = vshrl.u32 %v4182, 7
        %v4184 = vsub.s32 0, %v4183
        %v4185 = vrot.slane %v2669, %v4184
        %v4187 = vadd.f32 %v4165, %v4185
        %v4188 = vadd.f32 %v4166, %v4185
        %v4189 = vadd.f32 %v4167, %v4185
        %v4190 = vadd.f32 %v4168, %v4185
        %v4191 = vadd.f32 %v4169, %v4185
        %v4192 = vadd.f32 %v4170, %v4185
        %v4193 = vadd.f32 %v4171, %v4185
        %v4194 = vadd.f32 %v4172, %v4185
        %v4195 = vadd.f32 %v4173, %v4185
        %v4196 = vadd.f32 %v4174, %v4185
        %v4197 = vadd.f32 %v4175, %v4185
        %v4198 = vadd.f32 %v4176, %v4185
        %v4199 = vadd.f32 %v4177, %v4185
        %v4200 = vadd.f32 %v4178, %v4185
        %v4201 = vadd.f32 %v4179, %v4185
        %v4202 = vadd.f32 %v4180, %v4185
        %v4203 = vmax.f32 %v4187, 0.0
        %v4204 = vmax.f32 %v4188, 0.0
        %v4205 = vmax.f32 %v4189, 0.0
        %v4206 = vmax.f32 %v4190, 0.0
        %v4207 = vmax.f32 %v4191, 0.0
        %v4208 = vmax.f32 %v4192, 0.0
        %v4209 = vmax.f32 %v4193, 0.0
        %v4210 = vmax.f32 %v4194, 0.0
        %v4211 = vmax.f32 %v4195, 0.0
        %v4212 = vmax.f32 %v4196, 0.0
        %v4213 = vmax.f32 %v4197, 0.0
        %v4214 = vmax.f32 %v4198, 0.0
        %v4215 = vmax.f32 %v4199, 0.0
        %v4216 = vmax.f32 %v4200, 0.0
        %v4217 = vmax.f32 %v4201, 0.0
        %v4218 = vmax.f32 %v4202, 0.0
        %v4219 = vadd.f32 %v4203, %v2548
        %v4220 = vadd.f32 %v4204, %v2549
        %v4221 = vadd.f32 %v4205, %v2550
        %v4222 = vadd.f32 %v4206, %v2551
        %v4223 = vadd.f32 %v4207, %v2552
        %v4224 = vadd.f32 %v4208, %v2553
        %v4225 = vadd.f32 %v4209, %v2554
        %v4226 = vadd.f32 %v4210, %v2555
        %v4227 = vadd.f32 %v4211, %v2556
        %v4228 = vadd.f32 %v4212, %v2557
        %v4229 = vadd.f32 %v4213, %v2558
        %v4230 = vadd.f32 %v4214, %v2559
        %v4231 = vadd.f32 %v4215, %v2560
        %v4232 = vadd.f32 %v4216, %v2561
        %v4233 = vadd.f32 %v4217, %v2562
        %v4234 = vadd.f32 %v4218, %v2563
        %v4235 = vmax.f32 %v4219, 0.0
        %v4236 = vmax.f32 %v4220, 0.0
        %v4237 = vmax.f32 %v4221, 0.0
        %v4238 = vmax.f32 %v4222, 0.0
        %v4239 = vmax.f32 %v4223, 0.0
        %v4240 = vmax.f32 %v4224, 0.0
        %v4241 = vmax.f32 %v4225, 0.0
        %v4242 = vmax.f32 %v4226, 0.0
        %v4243 = vmax.f32 %v4227, 0.0
        %v4244 = vmax.f32 %v4228, 0.0
        %v4245 = vmax.f32 %v4229, 0.0
        %v4246 = vmax.f32 %v4230, 0.0
        %v4247 = vmax.f32 %v4231, 0.0
        %v4248 = vmax.f32 %v4232, 0.0
        %v4249 = vmax.f32 %v4233, 0.0
        %v4250 = vmax.f32 %v4234, 0.0
        %v4251 = vpack.c.bf16 %v4236, %v4235
        %v4252 = vpack.c.bf16 %v4238, %v4237
        %v4253 = vpack.c.bf16 %v4240, %v4239
        %v4254 = vpack.c.bf16 %v4242, %v4241
        %v4255 = vpack.c.bf16 %v4244, %v4243
        %v4256 = vpack.c.bf16 %v4246, %v4245
        %v4257 = vpack.c.bf16 %v4248, %v4247
        %v4258 = vpack.c.bf16 %v4250, %v4249
        %v4267 = vunpack.c.l.b16 %v4251
        %v4268 = vunpack.c.h.b16 %v4251
        %v4269 = vunpack.c.l.b16 %v4252
        %v4270 = vunpack.c.h.b16 %v4252
        %v4271 = vunpack.c.l.b16 %v4253
        %v4272 = vunpack.c.h.b16 %v4253
        %v4273 = vunpack.c.l.b16 %v4254
        %v4274 = vunpack.c.h.b16 %v4254
        %v4275 = vunpack.c.l.b16 %v4255
        %v4276 = vunpack.c.h.b16 %v4255
        %v4277 = vunpack.c.l.b16 %v4256
        %v4278 = vunpack.c.h.b16 %v4256
        %v4279 = vunpack.c.l.b16 %v4257
        %v4280 = vunpack.c.h.b16 %v4257
        %v4281 = vunpack.c.l.b16 %v4258
        %v4282 = vunpack.c.h.b16 %v4258
        %v4283 = vpack.c.b16 %v4267, %v4267
        %v4284 = vpack.c.b16 %v4268, %v4268
        %v4285 = vpack.c.b16 %v4269, %v4269
        %v4286 = vpack.c.b16 %v4270, %v4270
        %v4287 = vpack.c.b16 %v4271, %v4271
        %v4288 = vpack.c.b16 %v4272, %v4272
        %v4289 = vpack.c.b16 %v4273, %v4273
        %v4290 = vpack.c.b16 %v4274, %v4274
        %v4291 = vpack.c.b16 %v4275, %v4275
        %v4292 = vpack.c.b16 %v4276, %v4276
        %v4293 = vpack.c.b16 %v4277, %v4277
        %v4294 = vpack.c.b16 %v4278, %v4278
        %v4295 = vpack.c.b16 %v4279, %v4279
        %v4296 = vpack.c.b16 %v4280, %v4280
        %v4297 = vpack.c.b16 %v4281, %v4281
        %v4298 = vpack.c.b16 %v4282, %v4282
        %4315 = vst.msk [vmem:[#allocation2 + $0x4] sm:$0xf] %vm661, %v4283
        %4316 = vst.msk [vmem:[#allocation2 + $0x8] sm:$0xf] %vm661, %v4284
        %4317 = vst.msk [vmem:[#allocation2 + $0x10] sm:$0xf] %vm661, %v4285
        %4318 = vst.msk [vmem:[#allocation2 + $0x14] sm:$0xf] %vm661, %v4286
        %4319 = vst.msk [vmem:[#allocation2 + $0x1c] sm:$0xf] %vm661, %v4287
        %4320 = vst.msk [vmem:[#allocation2 + $0x20] sm:$0xf] %vm661, %v4288
        %4321 = vst.msk [vmem:[#allocation2 + $0x28] sm:$0xf] %vm661, %v4289
        %4322 = vst.msk [vmem:[#allocation2 + $0x2c] sm:$0xf] %vm661, %v4290
        %4323 = vst.msk [vmem:[#allocation2 + $0x34] sm:$0xf] %vm661, %v4291
        %4324 = vst.msk [vmem:[#allocation2 + $0x38] sm:$0xf] %vm661, %v4292
        %4325 = vst.msk [vmem:[#allocation2 + $0x40] sm:$0xf] %vm661, %v4293
        %4326 = vst.msk [vmem:[#allocation2 + $0x44] sm:$0xf] %vm661, %v4294
        %4327 = vst.msk [vmem:[#allocation2 + $0x4c] sm:$0xf] %vm661, %v4295
        %4328 = vst.msk [vmem:[#allocation2 + $0x50] sm:$0xf] %vm661, %v4296
        %4329 = vst.msk [vmem:[#allocation2 + $0x58] sm:$0xf] %vm661, %v4297
        %4330 = vst.msk [vmem:[#allocation2 + $0x5c] sm:$0xf] %vm661, %v4298
        %v4331 = vld [vmem:[%s625] sm:$0xff]
        %v4332 = vlaneseq
        %v4333 = vshrl.u32 %v4332, 7
        %v4334 = vsub.s32 0, %v4333
        %v4335 = vrot.slane %v4331, %v4334
        %4337 = vbcast.lane.b32.xlu0 %v4335, 256
        %v4338 = vpop.permute.xlu0 %4337
        %s4340 = sor.u32 256, 8
        %4341 = vbcast.lane.b32.xlu0 %v4335, %s4340
        %v4342 = vpop.permute.xlu0 %4341
        %v4343 = vlaneseq
        %v4344 = vshrl.u32 %v4343, 7
        %v4345 = vsub.s32 1, %v4344
        %v4346 = vrot.slane %v4331, %v4345
        %4348 = vbcast.lane.b32.xlu0 %v4346, 256
        %v4349 = vpop.permute.xlu0 %4348
        %s4351 = sor.u32 256, 8
        %4352 = vbcast.lane.b32.xlu0 %v4346, %s4351
        %v4353 = vpop.permute.xlu0 %4352
        %v4354 = vlaneseq
        %v4355 = vshrl.u32 %v4354, 7
        %v4356 = vsub.s32 2, %v4355
        %v4357 = vrot.slane %v4331, %v4356
        %4359 = vbcast.lane.b32.xlu0 %v4357, 256
        %v4360 = vpop.permute.xlu0 %4359
        %s4362 = sor.u32 256, 8
        %4363 = vbcast.lane.b32.xlu0 %v4357, %s4362
        %v4364 = vpop.permute.xlu0 %4363
        %v4365 = vlaneseq
        %v4366 = vshrl.u32 %v4365, 7
        %v4367 = vsub.s32 3, %v4366
        %v4368 = vrot.slane %v4331, %v4367
        %4370 = vbcast.lane.b32.xlu0 %v4368, 256
        %v4371 = vpop.permute.xlu0 %4370
        %s4373 = sor.u32 256, 8
        %4374 = vbcast.lane.b32.xlu0 %v4368, %s4373
        %v4375 = vpop.permute.xlu0 %4374
        %v4376 = vlaneseq
        %v4377 = vshrl.u32 %v4376, 7
        %v4378 = vsub.s32 4, %v4377
        %v4379 = vrot.slane %v4331, %v4378
        %4381 = vbcast.lane.b32.xlu0 %v4379, 256
        %v4382 = vpop.permute.xlu0 %4381
        %s4384 = sor.u32 256, 8
        %4385 = vbcast.lane.b32.xlu0 %v4379, %s4384
        %v4386 = vpop.permute.xlu0 %4385
        %v4387 = vlaneseq
        %v4388 = vshrl.u32 %v4387, 7
        %v4389 = vsub.s32 5, %v4388
        %v4390 = vrot.slane %v4331, %v4389
        %4392 = vbcast.lane.b32.xlu0 %v4390, 256
        %v4393 = vpop.permute.xlu0 %4392
        %s4395 = sor.u32 256, 8
        %4396 = vbcast.lane.b32.xlu0 %v4390, %s4395
        %v4397 = vpop.permute.xlu0 %4396
        %v4398 = vlaneseq
        %v4399 = vshrl.u32 %v4398, 7
        %v4400 = vsub.s32 6, %v4399
        %v4401 = vrot.slane %v4331, %v4400
        %4403 = vbcast.lane.b32.xlu0 %v4401, 256
        %v4404 = vpop.permute.xlu0 %4403
        %s4406 = sor.u32 256, 8
        %4407 = vbcast.lane.b32.xlu0 %v4401, %s4406
        %v4408 = vpop.permute.xlu0 %4407
        %v4409 = vlaneseq
        %v4410 = vshrl.u32 %v4409, 7
        %v4411 = vsub.s32 7, %v4410
        %v4412 = vrot.slane %v4331, %v4411
        %4414 = vbcast.lane.b32.xlu0 %v4412, 256
        %v4415 = vpop.permute.xlu0 %4414
        %s4417 = sor.u32 256, 8
        %4418 = vbcast.lane.b32.xlu0 %v4412, %s4417
        %v4419 = vpop.permute.xlu0 %4418
        %v4420 = vmul.f32 %v4235, %v4338
        %v4421 = vmul.f32 %v4236, %v4342
        %v4422 = vmul.f32 %v4237, %v4349
        %v4423 = vmul.f32 %v4238, %v4353
        %v4424 = vmul.f32 %v4239, %v4360
        %v4425 = vmul.f32 %v4240, %v4364
        %v4426 = vmul.f32 %v4241, %v4371
        %v4427 = vmul.f32 %v4242, %v4375
        %v4428 = vmul.f32 %v4243, %v4382
        %v4429 = vmul.f32 %v4244, %v4386
        %v4430 = vmul.f32 %v4245, %v4393
        %v4431 = vmul.f32 %v4246, %v4397
        %v4432 = vmul.f32 %v4247, %v4404
        %v4433 = vmul.f32 %v4248, %v4408
        %v4434 = vmul.f32 %v4249, %v4415
        %v4435 = vmul.f32 %v4250, %v4419
        %v4436 = vsel %vm2034, %v4420, 0.0
        %v4437 = vsel %vm2034, %v4421, 0.0
        %v4438 = vadd.f32 %v4436, %v4437
        %v4439 = vrot.slane %v4438, 4
        %v4440 = vadd.f32 %v4438, %v4439
        %v4441 = vrot.slane %v4440, 2
        %v4442 = vadd.f32 %v4440, %v4441
        %v4443 = vrot.slane %v4442, 1
        %v4444 = vadd.f32 %v4442, %v4443
        %v4445 = vsel %vm2034, %v4422, 0.0
        %v4446 = vsel %vm2034, %v4423, 0.0
        %v4447 = vadd.f32 %v4445, %v4446
        %v4448 = vrot.slane %v4447, 4
        %v4449 = vadd.f32 %v4447, %v4448
        %v4450 = vrot.slane %v4449, 2
        %v4451 = vadd.f32 %v4449, %v4450
        %v4452 = vrot.slane %v4451, 1
        %v4453 = vadd.f32 %v4451, %v4452
        %v4454 = vsel %vm2034, %v4424, 0.0
        %v4455 = vsel %vm2034, %v4425, 0.0
        %v4456 = vadd.f32 %v4454, %v4455
        %v4457 = vrot.slane %v4456, 4
        %v4458 = vadd.f32 %v4456, %v4457
        %v4459 = vrot.slane %v4458, 2
        %v4460 = vadd.f32 %v4458, %v4459
        %v4461 = vrot.slane %v4460, 1
        %v4462 = vadd.f32 %v4460, %v4461
        %v4463 = vsel %vm2034, %v4426, 0.0
        %v4464 = vsel %vm2034, %v4427, 0.0
        %v4465 = vadd.f32 %v4463, %v4464
        %v4466 = vrot.slane %v4465, 4
        %v4467 = vadd.f32 %v4465, %v4466
        %v4468 = vrot.slane %v4467, 2
        %v4469 = vadd.f32 %v4467, %v4468
        %v4470 = vrot.slane %v4469, 1
        %v4471 = vadd.f32 %v4469, %v4470
        %v4472 = vsel %vm2034, %v4428, 0.0
        %v4473 = vsel %vm2034, %v4429, 0.0
        %v4474 = vadd.f32 %v4472, %v4473
        %v4475 = vrot.slane %v4474, 4
        %v4476 = vadd.f32 %v4474, %v4475
        %v4477 = vrot.slane %v4476, 2
        %v4478 = vadd.f32 %v4476, %v4477
        %v4479 = vrot.slane %v4478, 1
        %v4480 = vadd.f32 %v4478, %v4479
        %v4481 = vsel %vm2034, %v4430, 0.0
        %v4482 = vsel %vm2034, %v4431, 0.0
        %v4483 = vadd.f32 %v4481, %v4482
        %v4484 = vrot.slane %v4483, 4
        %v4485 = vadd.f32 %v4483, %v4484
        %v4486 = vrot.slane %v4485, 2
        %v4487 = vadd.f32 %v4485, %v4486
        %v4488 = vrot.slane %v4487, 1
        %v4489 = vadd.f32 %v4487, %v4488
        %v4490 = vsel %vm2034, %v4432, 0.0
        %v4491 = vsel %vm2034, %v4433, 0.0
        %v4492 = vadd.f32 %v4490, %v4491
        %v4493 = vrot.slane %v4492, 4
        %v4494 = vadd.f32 %v4492, %v4493
        %v4495 = vrot.slane %v4494, 2
        %v4496 = vadd.f32 %v4494, %v4495
        %v4497 = vrot.slane %v4496, 1
        %v4498 = vadd.f32 %v4496, %v4497
        %v4499 = vsel %vm2034, %v4434, 0.0
        %v4500 = vsel %vm2034, %v4435, 0.0
        %v4501 = vadd.f32 %v4499, %v4500
        %v4502 = vrot.slane %v4501, 4
        %v4503 = vadd.f32 %v4501, %v4502
        %v4504 = vrot.slane %v4503, 2
        %v4505 = vadd.f32 %v4503, %v4504
        %v4506 = vrot.slane %v4505, 1
        %v4507 = vadd.f32 %v4505, %v4506
        %vm4516 = vcmask 1041409
        %v4517 = vsel %vm4516, %v4453, %v4444
        %vm4518 = vcmask 1042434
        %v4519 = vsel %vm4518, %v4462, %v4517
        %vm4520 = vcmask 1043459
        %v4521 = vsel %vm4520, %v4471, %v4519
        %vm4522 = vcmask 1044484
        %v4523 = vsel %vm4522, %v4480, %v4521
        %vm4524 = vcmask 1045509
        %v4525 = vsel %vm4524, %v4489, %v4523
        %vm4526 = vcmask 1046534
        %v4527 = vsel %vm4526, %v4498, %v4525
        %vm4528 = vcmask 1047559
        %v4529 = vsel %vm4528, %v4507, %v4527
        %4531 = vst.msk [vmem:[%s607] sm:$0xff] %vm2034, %v4529
        %s4532 = sand.u32 %s367, 1
        %s4533 = scalar_lea.sflag [#allocation5], %s4532
        %s4534 = sand.u32 %s367, 1
        %s4535 = smul.addr %s4534, 8
        %s4536 = scalar_lea.vmem [#allocation6], %s4535
        // Predicated region
        $region73: #{tpu_custom_call.1} parent=67 // pred_check
          %p4537 = pneg %p377
        $region74: #{tpu_custom_call.1} parent=67 // pred_check_branch
          %4539 = sbr.rel (%p4537) target = $region76
        $region75: #{tpu_custom_call.1} parent=67 // pred_region
          %s4541 = ssub.s32 128, 128
          %4542 = vsyncadd %s4533, %s4541
          %s4543 = sadd.s32 %s34, %s33
          %s4544 = smul.addr %s4543, 128
          %s4545 = scalar_lea.hbm %s12, %s4544
          %s4547 = sshll.u32 %s4536, 4
          %s4548 = int_to_ptr.vmem [resolvable:$true] %s4547
          %4550 = dma.vmem_to_hbm [thread:$0]  %s4548, 128, %s4545, %s4533
        $region76: #{tpu_custom_call.1} parent=67 // pred_fallthru
          _
      $region68: #{tpu_custom_call.1} parent=5 // pred_fallthru
        _
      %p4551 = scmp.le.s32.totalorder 2, %s24
      // Predicated region
      $region77: #{tpu_custom_call.1} parent=5 // pred_check
        %p4552 = pneg %p4551
      $region78: #{tpu_custom_call.1} parent=5 // pred_check_branch
        %4554 = sbr.rel (%p4552) target = $region80
      $region79: #{tpu_custom_call.1} parent=5 // pred_region
        %s4555 = ssub.s32 %s24, 2
        // Predicated region
        $region81: #{tpu_custom_call.1} parent=79 // pred_check
          %p4556 = pneg %p383
        $region82: #{tpu_custom_call.1} parent=79 // pred_check_branch
          %4558 = sbr.rel (%p4556) target = $region84
        $region83: #{tpu_custom_call.1} parent=79 // pred_region
          %s4559 = sand.u32 %s368, 1
          %s4560 = scalar_lea.sflag [#allocation5], %s4559
          %s4561 = sand.u32 %s368, 1
          %s4562 = smul.addr %s4561, 8
          %s4563 = scalar_lea.vmem [#allocation6], %s4562
          %4564 = dma.done %s4560, 128
        $region84: #{tpu_custom_call.1} parent=79 // pred_fallthru
          _
      $region80: #{tpu_custom_call.1} parent=5 // pred_fallthru
        _
    $region6: #{tpu_custom_call.1} parent=1 // loop_footer
      %s28 = sadd.s32 1, %s24
    $region7: #{tpu_custom_call.1} parent=1 // loop_footer_branch
      %23 = sbr.rel target = $region3
    $region8: #{tpu_custom_call.1} parent=1 // loop_exit
      _
    %4565 = vsyncpa [#allocation4], 1
    %s4566 = scalar_lea.sflag [#allocation4], 1
    %4567 = vsyncpa %s4566, 1
    %4568 = vsyncpa [#allocation5], 1
    %s4569 = scalar_lea.sflag [#allocation5], 1
    %4570 = vsyncpa %s4569, 1

</llo_original>
